<compile_context>
chip_gen: v7x
topology: tpu7x:2x2x1
jax: 0.10.0
libtpu: 0.0.40
codegen_flags: <defaults>
</compile_context>

<pallas_src>
import functools

import numpy as np
import jax
import jax.numpy as jnp
from jax import lax
from jax.experimental import pallas as pl
from jax.experimental.pallas import tpu as pltpu


def _round_up(x, m):
    return (x + m - 1) // m * m


# ----------------------------------------------------------------------------
# Pallas kernel: one bf16 MXU matmul + f32 bias + optional ReLU per M-tile.
# ----------------------------------------------------------------------------
def _matmul_bias_kernel(x_ref, w_ref, b_ref, o_ref, *, apply_relu):
    acc = jnp.dot(x_ref[...], w_ref[...], preferred_element_type=jnp.float32)
    acc = acc + b_ref[...]            # (1, N) broadcasts over pixel rows
    if apply_relu:
        acc = jnp.maximum(acc, 0.0)
    o_ref[...] = acc.astype(o_ref.dtype)


def matmul_bias(x, w, bias, *, apply_relu, tile_m=512):
    """(M, K) @ (K, N) + bias(N,), optional ReLU.  bf16 MXU inputs, f32 accum."""
    m, k = x.shape
    n = w.shape[1]

    tm = min(tile_m, _round_up(m, 8))          # sublane-aligned pixel-row tile
    m_pad = _round_up(m, tm)
    if m_pad != m:
        x = jnp.pad(x, ((0, m_pad - m), (0, 0)))
    grid = (m_pad // tm,)

    out = pl.pallas_call(
        functools.partial(_matmul_bias_kernel, apply_relu=apply_relu),
        out_shape=jax.ShapeDtypeStruct((m_pad, n), jnp.float32),
        grid_spec=pltpu.PrefetchScalarGridSpec(
            num_scalar_prefetch=0,
            grid=grid,
            in_specs=[
                pl.BlockSpec((tm, k), lambda i: (i, 0)),   # activation tile
                pl.BlockSpec((k, n), lambda i: (0, 0)),    # weights resident
                pl.BlockSpec((1, n), lambda i: (0, 0)),    # bias resident
            ],
            out_specs=pl.BlockSpec((tm, n), lambda i: (i, 0)),
        ),
        compiler_params=pltpu.CompilerParams(
            dimension_semantics=("parallel",),             # split M across TCs
        ),
        cost_estimate=pl.CostEstimate(
            flops=2 * m_pad * k * n,
            transcendentals=0,
            bytes_accessed=2 * (m_pad * k + k * n) + 4 * (n + m_pad * n),
        ),
    )(x.astype(jnp.bfloat16), w.astype(jnp.bfloat16),
      bias.reshape(1, n).astype(jnp.float32))
    return out[:m]


# ----------------------------------------------------------------------------
# Layer building blocks (NHWC layout; layout glue stays in JAX)
# ----------------------------------------------------------------------------
def conv_transpose_2x2_s2(x, w, b):
    """ConvTranspose2d(kernel=2, stride=2, padding=0), NHWC.

    x: (N, H, W, Cin); w: (Cin, Cout, 2, 2) (PyTorch layout); b: (Cout,).
    stride == kernel -> no overlap -> single matmul per input pixel.
    """
    nb, h, wd, cin = x.shape
    cout = w.shape[1]
    x_mat = x.reshape(nb * h * wd, cin)
    w_mat = jnp.transpose(w, (0, 2, 3, 1)).reshape(cin, 4 * cout)  # col=(ki*2+kj)*Cout+co
    b4 = jnp.tile(b, 4)                                            # same column ordering
    y = matmul_bias(x_mat, w_mat, b4, apply_relu=False)            # (M, 4*Cout)
    y = y.reshape(nb, h, wd, 2, 2, cout)
    # TODO(synk): scatter the 2x2 sub-pixel positions directly from the kernel
    # via the output index_map to avoid this post-kernel interleave copy.
    y = jnp.transpose(y, (0, 1, 3, 2, 4, 5)).reshape(nb, 2 * h, 2 * wd, cout)
    return y


def conv3x3_relu(x, w, b, padding):
    """Conv2d(kernel=3, padding=padding) + ReLU, NHWC.

    x: (N, H, W, Cin); w: (Cout, Cin, 3, 3); b: (Cout,).
    Taps are folded into the contraction axis: one K = 9*Cin MXU matmul.
    """
    if padding:
        x = jnp.pad(x, ((0, 0), (padding, padding), (padding, padding), (0, 0)))
    nb, h, wd, cin = x.shape
    cout = w.shape[0]
    ho, wo = h - 2, wd - 2
    # TODO(synk): replace this im2col materialization with in-kernel pl.ds
    # shifted reads over a halo'd NHWC strip to cut HBM read traffic ~9x.
    cols = [x[:, ki:ki + ho, kj:kj + wo, :] for ki in range(3) for kj in range(3)]
    x_cols = jnp.concatenate(cols, axis=-1).reshape(nb * ho * wo, 9 * cin)
    w_mat = jnp.transpose(w, (2, 3, 1, 0)).reshape(9 * cin, cout)  # row=(ki*3+kj)*Cin+c
    y = matmul_bias(x_cols, w_mat, b, apply_relu=True)             # (M, Cout)
    return y.reshape(nb, ho, wo, cout)


def crop_cat(x, enc):
    """NHWC crop+concat; mirrors the PyTorch module (width-based delta for both axes)."""
    delta = (enc.shape[2] - x.shape[2]) // 2
    s = x.shape[2]
    enc = enc[:, delta:delta + s, delta:delta + s, :]
    return jnp.concatenate([enc, x], axis=-1)


def decoder_forward(params, config, x, encoder_outputs):
    x = jnp.transpose(x, (0, 2, 3, 1))                      # NCHW -> NHWC once
    for name, block in config.items():
        p = params[name]
        pad = block["padding"]
        # TODO(synk): generalize up-conv to kernel_size != stride (overlapping
        # transposed conv); current kernel handles the module defaults (2, 2, 0).
        assert block["kernel_size"] == 2 and block["stride"] == 2 and pad[0] == 0
        x = conv_transpose_2x2_s2(x, p["up_w"], p["up_b"])
        enc = jnp.transpose(encoder_outputs[name], (0, 2, 3, 1))
        x = crop_cat(x, enc)
        x = conv3x3_relu(x, p["c1_w"], p["c1_b"], pad[1])
        x = conv3x3_relu(x, p["c2_w"], p["c2_b"], pad[1])
    return jnp.transpose(x, (0, 3, 1, 2))                   # back to NCHW


# ----------------------------------------------------------------------------
# Deterministic parameter init (shapes follow DecoderLayer.__init__)
# ----------------------------------------------------------------------------
def init_decoder_params(config, key):
    params = {}
    for name, block in config.items():
        cin, cout, k = block["in_channels"], block["out_channels"], block["kernel_size"]
        key, k0, k1, k2, k3, k4, k5 = jax.random.split(key, 7)
        params[name] = {
            "up_w": 0.1 * jax.random.normal(k0, (cin, cin // 2, k, k), jnp.float32),
            "up_b": 0.1 * jax.random.normal(k1, (cin // 2,), jnp.float32),
            "c1_w": 0.1 * jax.random.normal(k2, (cout, cin, 3, 3), jnp.float32),
            "c1_b": 0.1 * jax.random.normal(k3, (cout,), jnp.float32),
            "c2_w": 0.1 * jax.random.normal(k4, (cout, cout, 3, 3), jnp.float32),
            "c2_b": 0.1 * jax.random.normal(k5, (cout,), jnp.float32),
        }
    return params


# ----------------------------------------------------------------------------
# Pure-JAX reference (same bf16-input / f32-accumulate numerics as the kernel)
# ----------------------------------------------------------------------------
def _ref_conv_transpose(x, w, b):
    nb, cin, h, wd = x.shape
    cout = w.shape[1]
    y = jnp.einsum("ncij,cokl->noikjl",
                   x.astype(jnp.bfloat16), w.astype(jnp.bfloat16),
                   preferred_element_type=jnp.float32)
    y = y.reshape(nb, cout, 2 * h, 2 * wd)
    return y + b.reshape(1, cout, 1, 1)


def _ref_conv3x3_relu(x, w, b, padding):
    y = lax.conv_general_dilated(
        x.astype(jnp.bfloat16), w.astype(jnp.bfloat16),
        window_strides=(1, 1), padding=[(padding, padding)] * 2,
        dimension_numbers=("NCHW", "OIHW", "NCHW"),
        preferred_element_type=jnp.float32)
    return jnp.maximum(y + b.reshape(1, -1, 1, 1), 0.0)


def _ref_crop_cat(x, enc):
    delta = (enc.shape[-1] - x.shape[-1]) // 2
    s = x.shape[-1]
    enc = enc[:, :, delta:delta + s, delta:delta + s]
    return jnp.concatenate([enc, x], axis=1)


def ref_decoder_forward(params, config, x, encoder_outputs):
    for name, block in config.items():
        p = params[name]
        pad = block["padding"]
        x = _ref_conv_transpose(x, p["up_w"], p["up_b"])
        x = _ref_crop_cat(x, encoder_outputs[name])
        x = _ref_conv3x3_relu(x, p["c1_w"], p["c1_b"], pad[1])
        x = _ref_conv3x3_relu(x, p["c2_w"], p["c2_b"], pad[1])
    return x


# ----------------------------------------------------------------------------
if __name__ == "__main__":
    config = {
        "up1": {"in_channels": 8, "out_channels": 4, "kernel_size": 2, "stride": 2, "padding": [0, 0]},
        "up2": {"in_channels": 4, "out_channels": 2, "kernel_size": 2, "stride": 2, "padding": [0, 0]},
    }

    key = jax.random.PRNGKey(0)
    kp, kx, ke1, ke2 = jax.random.split(key, 4)
    params = init_decoder_params(config, kp)

    x = jax.random.normal(kx, (2, 8, 8, 8), jnp.float32)              # NCHW
    encoder_outputs = {
        "up1": jax.random.normal(ke1, (2, 4, 20, 20), jnp.float32),   # cropped to 16x16
        "up2": jax.random.normal(ke2, (2, 2, 28, 28), jnp.float32),   # cropped to 24x24
    }

    fwd = jax.jit(functools.partial(decoder_forward, params, config))
    out = jax.block_until_ready(fwd(x, encoder_outputs))
    assert out.shape == (2, 2, 20, 20), out.shape

    ref_fwd = jax.jit(functools.partial(ref_decoder_forward, params, config))
    ref = jax.block_until_ready(ref_fwd(x, encoder_outputs))
    np.testing.assert_allclose(np.asarray(out), np.asarray(ref), rtol=2e-2, atol=2e-2)

    print("KERNEL_OK")
</pallas_src>

<mosaic_0001>
module attributes {stable_mosaic.version = 11 : i64} {
  func.func @_matmul_bias_kernel(%arg0: i32, %arg1: memref<128x8xbf16, #tpu.memory_space<vmem>>, %arg2: memref<8x16xbf16, #tpu.memory_space<vmem>>, %arg3: memref<1x16xf32, #tpu.memory_space<vmem>>, %arg4: memref<128x16xf32, #tpu.memory_space<vmem>>) attributes {dimension_semantics = [#tpu.dimension_semantics<parallel>], iteration_bounds = array<i64: 1>, scalar_prefetch = 0 : i64, scratch_operands = 0 : i64, tpu.core_type = #tpu.core_type<tc>, window_params = [{transform_indices = @transform_0, window_bounds = array<i64: 128, 8>}, {pipeline_mode = #tpu.pipeline_mode<synchronous>, transform_indices = @transform_1, window_bounds = array<i64: 8, 16>}, {pipeline_mode = #tpu.pipeline_mode<synchronous>, transform_indices = @transform_2, window_bounds = array<i64: 1, 16>}, {transform_indices = @transform_3, window_bounds = array<i64: 128, 16>}]} {
    %c0 = arith.constant 0 : index
    %c0_0 = arith.constant 0 : index
    %0 = vector.load %arg1[%c0, %c0_0] : memref<128x8xbf16, #tpu.memory_space<vmem>>, vector<128x8xbf16>
    %c0_1 = arith.constant 0 : index
    %c0_2 = arith.constant 0 : index
    %1 = vector.load %arg2[%c0_1, %c0_2] : memref<8x16xbf16, #tpu.memory_space<vmem>>, vector<8x16xbf16>
    %cst = arith.constant dense<0.000000e+00> : vector<128x16xf32>
    %2 = tpu.matmul %0, %1, %cst {dimension_numbers = #tpu.dot_dimension_numbers<[1], [0], [0], [1], [0, 0, 1, 1], [], []>} : vector<128x8xbf16>, vector<8x16xbf16>, vector<128x16xf32> -> vector<128x16xf32>
    %c0_3 = arith.constant 0 : index
    %c0_4 = arith.constant 0 : index
    %3 = vector.load %arg3[%c0_3, %c0_4] : memref<1x16xf32, #tpu.memory_space<vmem>>, vector<1x16xf32>
    %4 = vector.broadcast %3 : vector<1x16xf32> to vector<128x16xf32>
    %5 = arith.addf %2, %4 : vector<128x16xf32>
    %c0_5 = arith.constant 0 : index
    %c0_6 = arith.constant 0 : index
    %6 = vector.load %arg4[%c0_5, %c0_6] : memref<128x16xf32, #tpu.memory_space<vmem>>, vector<128x16xf32>
    tpu.vector_store %arg4[%c0_5, %c0_6], %5 {strides = array<i32>} : memref<128x16xf32, #tpu.memory_space<vmem>>, vector<128x16xf32>,
    return
  }
  func.func @transform_0(%arg0: i32) -> (i32, i32) {
    %c0_i32 = arith.constant 0 : i32
    %c0_i32_0 = arith.constant 0 : i32
    return %arg0, %c0_i32 : i32, i32
  }
  func.func @transform_1(%arg0: i32) -> (i32, i32) {
    %c0_i32 = arith.constant 0 : i32
    %c0_i32_0 = arith.constant 0 : i32
    %c0_i32_1 = arith.constant 0 : i32
    return %c0_i32, %c0_i32_0 : i32, i32
  }
  func.func @transform_2(%arg0: i32) -> (i32, i32) {
    %c0_i32 = arith.constant 0 : i32
    %c0_i32_0 = arith.constant 0 : i32
    %c0_i32_1 = arith.constant 0 : i32
    return %c0_i32, %c0_i32_0 : i32, i32
  }
  func.func @transform_3(%arg0: i32) -> (i32, i32) {
    %c0_i32 = arith.constant 0 : i32
    %c0_i32_0 = arith.constant 0 : i32
    return %arg0, %c0_i32 : i32, i32
  }
}

module attributes {stable_mosaic.version = 11 : i64} {
  func.func @_matmul_bias_kernel(%arg0: i32, %arg1: memref<392x72xbf16, #tpu.memory_space<vmem>>, %arg2: memref<72x4xbf16, #tpu.memory_space<vmem>>, %arg3: memref<1x4xf32, #tpu.memory_space<vmem>>, %arg4: memref<392x4xf32, #tpu.memory_space<vmem>>) attributes {dimension_semantics = [#tpu.dimension_semantics<parallel>], iteration_bounds = array<i64: 1>, scalar_prefetch = 0 : i64, scratch_operands = 0 : i64, tpu.core_type = #tpu.core_type<tc>, window_params = [{transform_indices = @transform_0, window_bounds = array<i64: 392, 72>}, {pipeline_mode = #tpu.pipeline_mode<synchronous>, transform_indices = @transform_1, window_bounds = array<i64: 72, 4>}, {pipeline_mode = #tpu.pipeline_mode<synchronous>, transform_indices = @transform_2, window_bounds = array<i64: 1, 4>}, {transform_indices = @transform_3, window_bounds = array<i64: 392, 4>}]} {
    %c0 = arith.constant 0 : index
    %c0_0 = arith.constant 0 : index
    %0 = vector.load %arg1[%c0, %c0_0] : memref<392x72xbf16, #tpu.memory_space<vmem>>, vector<392x72xbf16>
    %c0_1 = arith.constant 0 : index
    %c0_2 = arith.constant 0 : index
    %1 = vector.load %arg2[%c0_1, %c0_2] : memref<72x4xbf16, #tpu.memory_space<vmem>>, vector<72x4xbf16>
    %cst = arith.constant dense<0.000000e+00> : vector<392x4xf32>
    %2 = tpu.matmul %0, %1, %cst {dimension_numbers = #tpu.dot_dimension_numbers<[1], [0], [0], [1], [0, 0, 1, 1], [], []>} : vector<392x72xbf16>, vector<72x4xbf16>, vector<392x4xf32> -> vector<392x4xf32>
    %c0_3 = arith.constant 0 : index
    %c0_4 = arith.constant 0 : index
    %3 = vector.load %arg3[%c0_3, %c0_4] : memref<1x4xf32, #tpu.memory_space<vmem>>, vector<1x4xf32>
    %4 = vector.broadcast %3 : vector<1x4xf32> to vector<392x4xf32>
    %5 = arith.addf %2, %4 : vector<392x4xf32>
    %cst_5 = arith.constant 0.000000e+00 : f32
    %6 = vector.broadcast %cst_5 : f32 to vector<392x4xf32>
    %7 = arith.maximumf %5, %6 : vector<392x4xf32>
    %c0_6 = arith.constant 0 : index
    %c0_7 = arith.constant 0 : index
    %8 = vector.load %arg4[%c0_6, %c0_7] : memref<392x4xf32, #tpu.memory_space<vmem>>, vector<392x4xf32>
    tpu.vector_store %arg4[%c0_6, %c0_7], %7 {strides = array<i32>} : memref<392x4xf32, #tpu.memory_space<vmem>>, vector<392x4xf32>,
    return
  }
  func.func @transform_0(%arg0: i32) -> (i32, i32) {
    %c0_i32 = arith.constant 0 : i32
    %c0_i32_0 = arith.constant 0 : i32
    return %arg0, %c0_i32 : i32, i32
  }
  func.func @transform_1(%arg0: i32) -> (i32, i32) {
    %c0_i32 = arith.constant 0 : i32
    %c0_i32_0 = arith.constant 0 : i32
    %c0_i32_1 = arith.constant 0 : i32
    return %c0_i32, %c0_i32_0 : i32, i32
  }
  func.func @transform_2(%arg0: i32) -> (i32, i32) {
    %c0_i32 = arith.constant 0 : i32
    %c0_i32_0 = arith.constant 0 : i32
    %c0_i32_1 = arith.constant 0 : i32
    return %c0_i32, %c0_i32_0 : i32, i32
  }
  func.func @transform_3(%arg0: i32) -> (i32, i32) {
    %c0_i32 = arith.constant 0 : i32
    %c0_i32_0 = arith.constant 0 : i32
    return %arg0, %c0_i32 : i32, i32
  }
}

module attributes {stable_mosaic.version = 11 : i64} {
  func.func @_matmul_bias_kernel(%arg0: i32, %arg1: memref<288x36xbf16, #tpu.memory_space<vmem>>, %arg2: memref<36x4xbf16, #tpu.memory_space<vmem>>, %arg3: memref<1x4xf32, #tpu.memory_space<vmem>>, %arg4: memref<288x4xf32, #tpu.memory_space<vmem>>) attributes {dimension_semantics = [#tpu.dimension_semantics<parallel>], iteration_bounds = array<i64: 1>, scalar_prefetch = 0 : i64, scratch_operands = 0 : i64, tpu.core_type = #tpu.core_type<tc>, window_params = [{transform_indices = @transform_0, window_bounds = array<i64: 288, 36>}, {pipeline_mode = #tpu.pipeline_mode<synchronous>, transform_indices = @transform_1, window_bounds = array<i64: 36, 4>}, {pipeline_mode = #tpu.pipeline_mode<synchronous>, transform_indices = @transform_2, window_bounds = array<i64: 1, 4>}, {transform_indices = @transform_3, window_bounds = array<i64: 288, 4>}]} {
    %c0 = arith.constant 0 : index
    %c0_0 = arith.constant 0 : index
    %0 = vector.load %arg1[%c0, %c0_0] : memref<288x36xbf16, #tpu.memory_space<vmem>>, vector<288x36xbf16>
    %c0_1 = arith.constant 0 : index
    %c0_2 = arith.constant 0 : index
    %1 = vector.load %arg2[%c0_1, %c0_2] : memref<36x4xbf16, #tpu.memory_space<vmem>>, vector<36x4xbf16>
    %cst = arith.constant dense<0.000000e+00> : vector<288x4xf32>
    %2 = tpu.matmul %0, %1, %cst {dimension_numbers = #tpu.dot_dimension_numbers<[1], [0], [0], [1], [0, 0, 1, 1], [], []>} : vector<288x36xbf16>, vector<36x4xbf16>, vector<288x4xf32> -> vector<288x4xf32>
    %c0_3 = arith.constant 0 : index
    %c0_4 = arith.constant 0 : index
    %3 = vector.load %arg3[%c0_3, %c0_4] : memref<1x4xf32, #tpu.memory_space<vmem>>, vector<1x4xf32>
    %4 = vector.broadcast %3 : vector<1x4xf32> to vector<288x4xf32>
    %5 = arith.addf %2, %4 : vector<288x4xf32>
    %cst_5 = arith.constant 0.000000e+00 : f32
    %6 = vector.broadcast %cst_5 : f32 to vector<288x4xf32>
    %7 = arith.maximumf %5, %6 : vector<288x4xf32>
    %c0_6 = arith.constant 0 : index
    %c0_7 = arith.constant 0 : index
    %8 = vector.load %arg4[%c0_6, %c0_7] : memref<288x4xf32, #tpu.memory_space<vmem>>, vector<288x4xf32>
    tpu.vector_store %arg4[%c0_6, %c0_7], %7 {strides = array<i32>} : memref<288x4xf32, #tpu.memory_space<vmem>>, vector<288x4xf32>,
    return
  }
  func.func @transform_0(%arg0: i32) -> (i32, i32) {
    %c0_i32 = arith.constant 0 : i32
    %c0_i32_0 = arith.constant 0 : i32
    return %arg0, %c0_i32 : i32, i32
  }
  func.func @transform_1(%arg0: i32) -> (i32, i32) {
    %c0_i32 = arith.constant 0 : i32
    %c0_i32_0 = arith.constant 0 : i32
    %c0_i32_1 = arith.constant 0 : i32
    return %c0_i32, %c0_i32_0 : i32, i32
  }
  func.func @transform_2(%arg0: i32) -> (i32, i32) {
    %c0_i32 = arith.constant 0 : i32
    %c0_i32_0 = arith.constant 0 : i32
    %c0_i32_1 = arith.constant 0 : i32
    return %c0_i32, %c0_i32_0 : i32, i32
  }
  func.func @transform_3(%arg0: i32) -> (i32, i32) {
    %c0_i32 = arith.constant 0 : i32
    %c0_i32_0 = arith.constant 0 : i32
    return %arg0, %c0_i32 : i32, i32
  }
}

module attributes {stable_mosaic.version = 11 : i64} {
  func.func @_matmul_bias_kernel(%arg0: i32, %arg1: memref<288x4xbf16, #tpu.memory_space<vmem>>, %arg2: memref<4x8xbf16, #tpu.memory_space<vmem>>, %arg3: memref<1x8xf32, #tpu.memory_space<vmem>>, %arg4: memref<288x8xf32, #tpu.memory_space<vmem>>) attributes {dimension_semantics = [#tpu.dimension_semantics<parallel>], iteration_bounds = array<i64: 1>, scalar_prefetch = 0 : i64, scratch_operands = 0 : i64, tpu.core_type = #tpu.core_type<tc>, window_params = [{transform_indices = @transform_0, window_bounds = array<i64: 288, 4>}, {pipeline_mode = #tpu.pipeline_mode<synchronous>, transform_indices = @transform_1, window_bounds = array<i64: 4, 8>}, {pipeline_mode = #tpu.pipeline_mode<synchronous>, transform_indices = @transform_2, window_bounds = array<i64: 1, 8>}, {transform_indices = @transform_3, window_bounds = array<i64: 288, 8>}]} {
    %c0 = arith.constant 0 : index
    %c0_0 = arith.constant 0 : index
    %0 = vector.load %arg1[%c0, %c0_0] : memref<288x4xbf16, #tpu.memory_space<vmem>>, vector<288x4xbf16>
    %c0_1 = arith.constant 0 : index
    %c0_2 = arith.constant 0 : index
    %1 = vector.load %arg2[%c0_1, %c0_2] : memref<4x8xbf16, #tpu.memory_space<vmem>>, vector<4x8xbf16>
    %cst = arith.constant dense<0.000000e+00> : vector<288x8xf32>
    %2 = tpu.matmul %0, %1, %cst {dimension_numbers = #tpu.dot_dimension_numbers<[1], [0], [0], [1], [0, 0, 1, 1], [], []>} : vector<288x4xbf16>, vector<4x8xbf16>, vector<288x8xf32> -> vector<288x8xf32>
    %c0_3 = arith.constant 0 : index
    %c0_4 = arith.constant 0 : index
    %3 = vector.load %arg3[%c0_3, %c0_4] : memref<1x8xf32, #tpu.memory_space<vmem>>, vector<1x8xf32>
    %4 = vector.broadcast %3 : vector<1x8xf32> to vector<288x8xf32>
    %5 = arith.addf %2, %4 : vector<288x8xf32>
    %c0_5 = arith.constant 0 : index
    %c0_6 = arith.constant 0 : index
    %6 = vector.load %arg4[%c0_5, %c0_6] : memref<288x8xf32, #tpu.memory_space<vmem>>, vector<288x8xf32>
    tpu.vector_store %arg4[%c0_5, %c0_6], %5 {strides = array<i32>} : memref<288x8xf32, #tpu.memory_space<vmem>>, vector<288x8xf32>,
    return
  }
  func.func @transform_0(%arg0: i32) -> (i32, i32) {
    %c0_i32 = arith.constant 0 : i32
    %c0_i32_0 = arith.constant 0 : i32
    return %arg0, %c0_i32 : i32, i32
  }
  func.func @transform_1(%arg0: i32) -> (i32, i32) {
    %c0_i32 = arith.constant 0 : i32
    %c0_i32_0 = arith.constant 0 : i32
    %c0_i32_1 = arith.constant 0 : i32
    return %c0_i32, %c0_i32_0 : i32, i32
  }
  func.func @transform_2(%arg0: i32) -> (i32, i32) {
    %c0_i32 = arith.constant 0 : i32
    %c0_i32_0 = arith.constant 0 : i32
    %c0_i32_1 = arith.constant 0 : i32
    return %c0_i32, %c0_i32_0 : i32, i32
  }
  func.func @transform_3(%arg0: i32) -> (i32, i32) {
    %c0_i32 = arith.constant 0 : i32
    %c0_i32_0 = arith.constant 0 : i32
    return %arg0, %c0_i32 : i32, i32
  }
}

module attributes {stable_mosaic.version = 11 : i64} {
  func.func @_matmul_bias_kernel(%arg0: i32, %arg1: memref<512x36xbf16, #tpu.memory_space<vmem>>, %arg2: memref<36x2xbf16, #tpu.memory_space<vmem>>, %arg3: memref<1x2xf32, #tpu.memory_space<vmem>>, %arg4: memref<512x2xf32, #tpu.memory_space<vmem>>) attributes {dimension_semantics = [#tpu.dimension_semantics<parallel>], iteration_bounds = array<i64: 2>, scalar_prefetch = 0 : i64, scratch_operands = 0 : i64, tpu.core_type = #tpu.core_type<tc>, window_params = [{transform_indices = @transform_0, window_bounds = array<i64: 512, 36>}, {pipeline_mode = #tpu.pipeline_mode<synchronous>, transform_indices = @transform_1, window_bounds = array<i64: 36, 2>}, {pipeline_mode = #tpu.pipeline_mode<synchronous>, transform_indices = @transform_2, window_bounds = array<i64: 1, 2>}, {transform_indices = @transform_3, window_bounds = array<i64: 512, 2>}]} {
    %c0 = arith.constant 0 : index
    %c0_0 = arith.constant 0 : index
    %0 = vector.load %arg1[%c0, %c0_0] : memref<512x36xbf16, #tpu.memory_space<vmem>>, vector<512x36xbf16>
    %c0_1 = arith.constant 0 : index
    %c0_2 = arith.constant 0 : index
    %1 = vector.load %arg2[%c0_1, %c0_2] : memref<36x2xbf16, #tpu.memory_space<vmem>>, vector<36x2xbf16>
    %cst = arith.constant dense<0.000000e+00> : vector<512x2xf32>
    %2 = tpu.matmul %0, %1, %cst {dimension_numbers = #tpu.dot_dimension_numbers<[1], [0], [0], [1], [0, 0, 1, 1], [], []>} : vector<512x36xbf16>, vector<36x2xbf16>, vector<512x2xf32> -> vector<512x2xf32>
    %c0_3 = arith.constant 0 : index
    %c0_4 = arith.constant 0 : index
    %3 = vector.load %arg3[%c0_3, %c0_4] : memref<1x2xf32, #tpu.memory_space<vmem>>, vector<1x2xf32>
    %4 = vector.broadcast %3 : vector<1x2xf32> to vector<512x2xf32>
    %5 = arith.addf %2, %4 : vector<512x2xf32>
    %cst_5 = arith.constant 0.000000e+00 : f32
    %6 = vector.broadcast %cst_5 : f32 to vector<512x2xf32>
    %7 = arith.maximumf %5, %6 : vector<512x2xf32>
    %c0_6 = arith.constant 0 : index
    %c0_7 = arith.constant 0 : index
    %8 = vector.load %arg4[%c0_6, %c0_7] : memref<512x2xf32, #tpu.memory_space<vmem>>, vector<512x2xf32>
    tpu.vector_store %arg4[%c0_6, %c0_7], %7 {strides = array<i32>} : memref<512x2xf32, #tpu.memory_space<vmem>>, vector<512x2xf32>,
    return
  }
  func.func @transform_0(%arg0: i32) -> (i32, i32) {
    %c0_i32 = arith.constant 0 : i32
    %c0_i32_0 = arith.constant 0 : i32
    return %arg0, %c0_i32 : i32, i32
  }
  func.func @transform_1(%arg0: i32) -> (i32, i32) {
    %c0_i32 = arith.constant 0 : i32
    %c0_i32_0 = arith.constant 0 : i32
    %c0_i32_1 = arith.constant 0 : i32
    return %c0_i32, %c0_i32_0 : i32, i32
  }
  func.func @transform_2(%arg0: i32) -> (i32, i32) {
    %c0_i32 = arith.constant 0 : i32
    %c0_i32_0 = arith.constant 0 : i32
    %c0_i32_1 = arith.constant 0 : i32
    return %c0_i32, %c0_i32_0 : i32, i32
  }
  func.func @transform_3(%arg0: i32) -> (i32, i32) {
    %c0_i32 = arith.constant 0 : i32
    %c0_i32_0 = arith.constant 0 : i32
    return %arg0, %c0_i32 : i32, i32
  }
}

module attributes {stable_mosaic.version = 11 : i64} {
  func.func @_matmul_bias_kernel(%arg0: i32, %arg1: memref<512x18xbf16, #tpu.memory_space<vmem>>, %arg2: memref<18x2xbf16, #tpu.memory_space<vmem>>, %arg3: memref<1x2xf32, #tpu.memory_space<vmem>>, %arg4: memref<512x2xf32, #tpu.memory_space<vmem>>) attributes {dimension_semantics = [#tpu.dimension_semantics<parallel>], iteration_bounds = array<i64: 2>, scalar_prefetch = 0 : i64, scratch_operands = 0 : i64, tpu.core_type = #tpu.core_type<tc>, window_params = [{transform_indices = @transform_0, window_bounds = array<i64: 512, 18>}, {pipeline_mode = #tpu.pipeline_mode<synchronous>, transform_indices = @transform_1, window_bounds = array<i64: 18, 2>}, {pipeline_mode = #tpu.pipeline_mode<synchronous>, transform_indices = @transform_2, window_bounds = array<i64: 1, 2>}, {transform_indices = @transform_3, window_bounds = array<i64: 512, 2>}]} {
    %c0 = arith.constant 0 : index
    %c0_0 = arith.constant 0 : index
    %0 = vector.load %arg1[%c0, %c0_0] : memref<512x18xbf16, #tpu.memory_space<vmem>>, vector<512x18xbf16>
    %c0_1 = arith.constant 0 : index
    %c0_2 = arith.constant 0 : index
    %1 = vector.load %arg2[%c0_1, %c0_2] : memref<18x2xbf16, #tpu.memory_space<vmem>>, vector<18x2xbf16>
    %cst = arith.constant dense<0.000000e+00> : vector<512x2xf32>
    %2 = tpu.matmul %0, %1, %cst {dimension_numbers = #tpu.dot_dimension_numbers<[1], [0], [0], [1], [0, 0, 1, 1], [], []>} : vector<512x18xbf16>, vector<18x2xbf16>, vector<512x2xf32> -> vector<512x2xf32>
    %c0_3 = arith.constant 0 : index
    %c0_4 = arith.constant 0 : index
    %3 = vector.load %arg3[%c0_3, %c0_4] : memref<1x2xf32, #tpu.memory_space<vmem>>, vector<1x2xf32>
    %4 = vector.broadcast %3 : vector<1x2xf32> to vector<512x2xf32>
    %5 = arith.addf %2, %4 : vector<512x2xf32>
    %cst_5 = arith.constant 0.000000e+00 : f32
    %6 = vector.broadcast %cst_5 : f32 to vector<512x2xf32>
    %7 = arith.maximumf %5, %6 : vector<512x2xf32>
    %c0_6 = arith.constant 0 : index
    %c0_7 = arith.constant 0 : index
    %8 = vector.load %arg4[%c0_6, %c0_7] : memref<512x2xf32, #tpu.memory_space<vmem>>, vector<512x2xf32>
    tpu.vector_store %arg4[%c0_6, %c0_7], %7 {strides = array<i32>} : memref<512x2xf32, #tpu.memory_space<vmem>>, vector<512x2xf32>,
    return
  }
  func.func @transform_0(%arg0: i32) -> (i32, i32) {
    %c0_i32 = arith.constant 0 : i32
    %c0_i32_0 = arith.constant 0 : i32
    return %arg0, %c0_i32 : i32, i32
  }
  func.func @transform_1(%arg0: i32) -> (i32, i32) {
    %c0_i32 = arith.constant 0 : i32
    %c0_i32_0 = arith.constant 0 : i32
    %c0_i32_1 = arith.constant 0 : i32
    return %c0_i32, %c0_i32_0 : i32, i32
  }
  func.func @transform_2(%arg0: i32) -> (i32, i32) {
    %c0_i32 = arith.constant 0 : i32
    %c0_i32_0 = arith.constant 0 : i32
    %c0_i32_1 = arith.constant 0 : i32
    return %c0_i32, %c0_i32_0 : i32, i32
  }
  func.func @transform_3(%arg0: i32) -> (i32, i32) {
    %c0_i32 = arith.constant 0 : i32
    %c0_i32_0 = arith.constant 0 : i32
    return %arg0, %c0_i32 : i32, i32
  }
}

</mosaic_0001>

<llo_original>
// kernel: tile.10
$region0: #{tile.10}
  #allocation0 [shape = 's32[1]{0}', space=sflag, size = 0x4, scoped, tag = 'scoped memory for tile.10']
  %s0 = inlined_call_operand.vmem [shape: f32[4], index: 0, kind: input, shape index: {}]
  %s1 = inlined_call_operand.vmem [shape: f32[4,4], index: 1, kind: output, shape index: {}]
  // Predicated region
  $region2: #{tile.10} parent=0 // pred_check
    _
  $region3: #{tile.10} parent=0 // pred_check_branch
    %3 = sbr.rel (0) target = $region5
  $region4: #{tile.10} parent=0 // pred_region
    _
  $region5: #{tile.10} parent=0 // pred_fallthru
    _
  %v4 = vld [vmem:[%s0] ss:$0 sm:$0xff]
  %5 = vst [vmem:[%s1] sm:$0xf] %v4

// kernel: tile.11
$region0: #{tile.11}
  %s0 = inlined_call_operand.vmem [shape: f32[4,4], index: 0, kind: input, shape index: {}]
  %s1 = inlined_call_operand.vmem [shape: f32[1,16], index: 1, kind: output, shape index: {}]
  $region1: #{tile.11} parent=0
    #allocation0 [shape = 'u8[4096]{0}', space=vmem, size = 0x1000, scoped, tag = 'scoped mem for output reshape']
    #allocation1 [shape = 'u8[4096]{0}', space=vmem, size = 0x1000, scoped, tag = 'scoped mem for input reshape']
    %s3 = sshllo.u32 0, 4
    %v4 = vld [vmem:[%s0] sm:%s3]
    %5 = vst [vmem:[#allocation1] sm:%s3] %v4
    %v6 = vld [vmem:[#allocation1] sm:$0x1]
    %vm7 = vcmask 31744
    %8 = vst.msk [vmem:[#allocation0] sm:$0x1] %vm7, %v6
    %s9 = scalar_lea.vmem [#allocation1], 3
    %v10 = vld [vmem:[%s9] sm:$0x1]
    %11 = vrot.lane.b32.xlu0 %v10, 12
    %v12 = vpop.permute.xlu0 %11
    %vm13 = vcmask 130144
    %14 = vst.msk [vmem:[#allocation0] sm:$0x1] %vm13, %v12
    %s15 = scalar_lea.vmem [#allocation1], 2
    %v16 = vld [vmem:[%s15] sm:$0x1]
    %17 = vrot.lane.b32.xlu0 %v16, 8
    %v18 = vpop.permute.xlu0 %17
    %vm19 = vcmask 97344
    %20 = vst.msk [vmem:[#allocation0] sm:$0x1] %vm19, %v18
    %s21 = scalar_lea.vmem [#allocation1], 1
    %v22 = vld [vmem:[%s21] sm:$0x1]
    %23 = vrot.lane.b32.xlu0 %v22, 4
    %v24 = vpop.permute.xlu0 %23
    %vm25 = vcmask 64544
    %26 = vst.msk [vmem:[#allocation0] sm:$0x1] %vm25, %v24
    %s28 = sshllo.u32 0, 1
    %v30 = vld [vmem:[#allocation0] sm:%s28]
    %s31 = sshllo.u32 0, 1
    %32 = vst [vmem:[%s1] sm:%s31] %v30

// kernel: decoder_forward.6
$region0: #{decoder_forward.6}
  #allocation0 [shape = 'u32[]', space=smem, size = 0x4, offset = 0x4, fixed_abs, tag = 'smem constant byte address 0x4 - core index']
  #allocation1 [shape = 'u32[144,128]{1,0:T(1,128)}', space=vmem, size = 0x12000, scoped, tag = 'internal scratch']
  %s0 = inlined_call_operand.vmem [shape: bf16[128,8], index: 0, kind: input, shape index: {}]
  %s1 = inlined_call_operand.vmem [shape: bf16[8,16], index: 1, kind: input, shape index: {}]
  %s2 = inlined_call_operand.vmem [shape: f32[1,16], index: 2, kind: input, shape index: {}]
  %s3 = inlined_call_operand.vmem [shape: f32[128,16], index: 3, kind: output, shape index: {}]
  %s4 = sld [smem:[#allocation0]]
  $region22: #{decoder_forward.6} parent=0
    _
  %s6 = ssub.s32 1, %s4
  %s7 = scalar_select 0, %s6, %s4
  // Predicated region
  $region2: #{decoder_forward.6} parent=0 // pred_check
    _
  $region3: #{decoder_forward.6} parent=0 // pred_check_branch
    %9 = sbr.rel (0) target = $region5
  $region4: #{decoder_forward.6} parent=0 // pred_region
    _
  $region5: #{decoder_forward.6} parent=0 // pred_fallthru
    _
  // Predicated region
  $region6: #{decoder_forward.6} parent=0 // pred_check
    _
  $region7: #{decoder_forward.6} parent=0 // pred_check_branch
    %11 = sbr.rel (0) target = $region9
  $region8: #{decoder_forward.6} parent=0 // pred_region
    _
  $region9: #{decoder_forward.6} parent=0 // pred_fallthru
    _
  // Predicated region
  $region10: #{decoder_forward.6} parent=0 // pred_check
    _
  $region11: #{decoder_forward.6} parent=0 // pred_check_branch
    %13 = sbr.rel (0) target = $region13
  $region12: #{decoder_forward.6} parent=0 // pred_region
    _
  $region13: #{decoder_forward.6} parent=0 // pred_fallthru
    _
  %v15 = vld [vmem:[%s0] sm:$0xf]
  %v16 = vld [vmem:[%s0 + $0x4] sm:$0xf]
  %v17 = vld [vmem:[%s0 + $0x8] sm:$0xf]
  %v18 = vld [vmem:[%s0 + $0xc] sm:$0xf]
  %v19 = vld [vmem:[%s0 + $0x10] sm:$0xf]
  %v20 = vld [vmem:[%s0 + $0x14] sm:$0xf]
  %v21 = vld [vmem:[%s0 + $0x18] sm:$0xf]
  %v22 = vld [vmem:[%s0 + $0x1c] sm:$0xf]
  %v23 = vld [vmem:[%s0 + $0x20] sm:$0xf]
  %v24 = vld [vmem:[%s0 + $0x24] sm:$0xf]
  %v25 = vld [vmem:[%s0 + $0x28] sm:$0xf]
  %v26 = vld [vmem:[%s0 + $0x2c] sm:$0xf]
  %v27 = vld [vmem:[%s0 + $0x30] sm:$0xf]
  %v28 = vld [vmem:[%s0 + $0x34] sm:$0xf]
  %v29 = vld [vmem:[%s0 + $0x38] sm:$0xf]
  %v30 = vld [vmem:[%s0 + $0x3c] sm:$0xf]
  %v31 = vld [vmem:[%s1] sm:$0xf]
  %v32 = vld [vmem:[%s2] sm:$0x1]
  %v34 = vlaneseq
  %v35 = vshrl.u32 %v34, 7
  %v36 = vsub.s32 0, %v35
  %v37 = vrot.slane %v32, %v36
  %v55 = vunpack.c.l.b16 %v15
  %v56 = vunpack.c.l.b16 %v16
  %v57 = vunpack.c.l.b16 %v17
  %v58 = vunpack.c.l.b16 %v18
  %v59 = vunpack.c.l.b16 %v19
  %v60 = vunpack.c.l.b16 %v20
  %v61 = vunpack.c.l.b16 %v21
  %v62 = vunpack.c.l.b16 %v22
  %v63 = vunpack.c.l.b16 %v23
  %v64 = vunpack.c.l.b16 %v24
  %v65 = vunpack.c.l.b16 %v25
  %v66 = vunpack.c.l.b16 %v26
  %v67 = vunpack.c.l.b16 %v27
  %v68 = vunpack.c.l.b16 %v28
  %v69 = vunpack.c.l.b16 %v29
  %v70 = vunpack.c.l.b16 %v30
  %v71 = vpack.c.b16 %v56, %v55
  %v72 = vpack.c.b16 %v58, %v57
  %v73 = vpack.c.b16 %v60, %v59
  %v74 = vpack.c.b16 %v62, %v61
  %v75 = vpack.c.b16 %v64, %v63
  %v76 = vpack.c.b16 %v66, %v65
  %v77 = vpack.c.b16 %v68, %v67
  %v78 = vpack.c.b16 %v70, %v69
  %vm79 = vcmask 64512
  %v81 = vsel %vm79, %v71, 0
  %v84 = vsel %vm79, %v72, 0
  %v87 = vsel %vm79, %v73, 0
  %v90 = vsel %vm79, %v74, 0
  %v93 = vsel %vm79, %v75, 0
  %v96 = vsel %vm79, %v76, 0
  %v99 = vsel %vm79, %v77, 0
  %v102 = vsel %vm79, %v78, 0
  %vm104 = vcmask 1043456
  %v106 = vsel %vm104, %v31, 0
  %108 = vmatprep.subr.bf16.mxu0 0
  %109 = vmatpush1.bf16.msra.mxu0 %v106
  %110 = vmatprep.subr.bf16.mxu0 0
  %111 = vmatpush1.bf16.msra.mxu0 0
  %112 = vmatprep.subr.bf16.mxu0 0
  %113 = vmatpush1.bf16.msra.mxu0 0
  %114 = vmatprep.subr.bf16.mxu0 0
  %115 = vmatpush1.bf16.msra.mxu0 0
  %116 = vmatprep.subr.bf16.mxu0 0
  %117 = vmatpush1.bf16.msra.mxu0 0
  %118 = vmatprep.subr.bf16.mxu0 0
  %119 = vmatpush1.bf16.msra.mxu0 0
  %120 = vmatprep.subr.bf16.mxu0 0
  %121 = vmatpush1.bf16.msra.mxu0 0
  %122 = vmatprep.subr.bf16.mxu0 0
  %123 = vmatpush1.bf16.msra.mxu0 0
  %124 = vmatprep.subr.bf16.mxu0 0
  %125 = vmatpush1.bf16.msra.mxu0 0
  %126 = vmatprep.subr.bf16.mxu0 0
  %127 = vmatpush1.bf16.msra.mxu0 0
  %128 = vmatprep.subr.bf16.mxu0 0
  %129 = vmatpush1.bf16.msra.mxu0 0
  %130 = vmatprep.subr.bf16.mxu0 0
  %131 = vmatpush1.bf16.msra.mxu0 0
  %132 = vmatprep.subr.bf16.mxu0 0
  %133 = vmatpush1.bf16.msra.mxu0 0
  %134 = vmatprep.subr.bf16.mxu0 0
  %135 = vmatpush1.bf16.msra.mxu0 0
  %136 = vmatprep.subr.bf16.mxu0 0
  %137 = vmatpush1.bf16.msra.mxu0 0
  %138 = vmatprep.subr.bf16.mxu0 0
  %139 = vmatpush1.bf16.msra.mxu0 0
  %140 = vmatprep.mubr.bf16.mxu0 0
  %141 = vmatmul.mubr.bf16.gmra.mrb[0].mxu0 %v81
  %v142 = vpop.f32.mrb[0].mxu0
  %v143 = vadd.f32 %v37, %v142
  %v144 = vpop.f32.mrb[0].mxu0
  %v145 = vpop.f32.mrb[0].mxu0
  %v146 = vadd.f32 %v37, %v145
  %v147 = vpop.f32.mrb[0].mxu0
  %148 = vmatprep.mubr.bf16.mxu0 0
  %149 = vmatmul.mubr.bf16.gmra.mrb[0].mxu0 %v84
  %v150 = vpop.f32.mrb[0].mxu0
  %v151 = vadd.f32 %v37, %v150
  %v152 = vpop.f32.mrb[0].mxu0
  %v153 = vpop.f32.mrb[0].mxu0
  %v154 = vadd.f32 %v37, %v153
  %v155 = vpop.f32.mrb[0].mxu0
  %156 = vmatprep.mubr.bf16.mxu0 0
  %157 = vmatmul.mubr.bf16.gmra.mrb[0].mxu0 %v87
  %v158 = vpop.f32.mrb[0].mxu0
  %v159 = vadd.f32 %v37, %v158
  %v160 = vpop.f32.mrb[0].mxu0
  %v161 = vpop.f32.mrb[0].mxu0
  %v162 = vadd.f32 %v37, %v161
  %v163 = vpop.f32.mrb[0].mxu0
  %164 = vmatprep.mubr.bf16.mxu0 0
  %165 = vmatmul.mubr.bf16.gmra.mrb[0].mxu0 %v90
  %v166 = vpop.f32.mrb[0].mxu0
  %v167 = vadd.f32 %v37, %v166
  %v168 = vpop.f32.mrb[0].mxu0
  %v169 = vpop.f32.mrb[0].mxu0
  %v170 = vadd.f32 %v37, %v169
  %v171 = vpop.f32.mrb[0].mxu0
  %172 = vmatprep.mubr.bf16.mxu0 0
  %173 = vmatmul.mubr.bf16.gmra.mrb[0].mxu0 %v93
  %v174 = vpop.f32.mrb[0].mxu0
  %v175 = vadd.f32 %v37, %v174
  %v176 = vpop.f32.mrb[0].mxu0
  %v177 = vpop.f32.mrb[0].mxu0
  %v178 = vadd.f32 %v37, %v177
  %v179 = vpop.f32.mrb[0].mxu0
  %180 = vmatprep.mubr.bf16.mxu0 0
  %181 = vmatmul.mubr.bf16.gmra.mrb[0].mxu0 %v96
  %v182 = vpop.f32.mrb[0].mxu0
  %v183 = vadd.f32 %v37, %v182
  %v184 = vpop.f32.mrb[0].mxu0
  %v185 = vpop.f32.mrb[0].mxu0
  %v186 = vadd.f32 %v37, %v185
  %v187 = vpop.f32.mrb[0].mxu0
  %188 = vmatprep.mubr.bf16.mxu0 0
  %189 = vmatmul.mubr.bf16.gmra.mrb[0].mxu0 %v99
  %v190 = vpop.f32.mrb[0].mxu0
  %v191 = vadd.f32 %v37, %v190
  %v192 = vpop.f32.mrb[0].mxu0
  %v193 = vpop.f32.mrb[0].mxu0
  %v194 = vadd.f32 %v37, %v193
  %v195 = vpop.f32.mrb[0].mxu0
  %196 = vmatprep.mubr.bf16.mxu0 0
  %197 = vmatmul.mubr.bf16.gmra.mrb[0].mxu0 %v102
  %v198 = vpop.f32.mrb[0].mxu0
  %v199 = vadd.f32 %v37, %v198
  %v200 = vpop.f32.mrb[0].mxu0
  %v201 = vpop.f32.mrb[0].mxu0
  %v202 = vadd.f32 %v37, %v201
  %v203 = vpop.f32.mrb[0].mxu0
  %204 = vdwg.mxu0
  %vm205 = vcmask 130048
  %206 = vst.msk [vmem:[%s3] sm:$0xff] %vm205, %v143
  %207 = vst.msk [vmem:[%s3 + $0x8] sm:$0xff] %vm205, %v146
  %208 = vst.msk [vmem:[%s3 + $0x10] sm:$0xff] %vm205, %v151
  %209 = vst.msk [vmem:[%s3 + $0x18] sm:$0xff] %vm205, %v154
  %210 = vst.msk [vmem:[%s3 + $0x20] sm:$0xff] %vm205, %v159
  %211 = vst.msk [vmem:[%s3 + $0x28] sm:$0xff] %vm205, %v162
  %212 = vst.msk [vmem:[%s3 + $0x30] sm:$0xff] %vm205, %v167
  %213 = vst.msk [vmem:[%s3 + $0x38] sm:$0xff] %vm205, %v170
  %214 = vst.msk [vmem:[%s3 + $0x40] sm:$0xff] %vm205, %v175
  %215 = vst.msk [vmem:[%s3 + $0x48] sm:$0xff] %vm205, %v178
  %216 = vst.msk [vmem:[%s3 + $0x50] sm:$0xff] %vm205, %v183
  %217 = vst.msk [vmem:[%s3 + $0x58] sm:$0xff] %vm205, %v186
  %218 = vst.msk [vmem:[%s3 + $0x60] sm:$0xff] %vm205, %v191
  %219 = vst.msk [vmem:[%s3 + $0x68] sm:$0xff] %vm205, %v194
  %220 = vst.msk [vmem:[%s3 + $0x70] sm:$0xff] %vm205, %v199
  %221 = vst.msk [vmem:[%s3 + $0x78] sm:$0xff] %vm205, %v202
  // Predicated region
  $region14: #{decoder_forward.6} parent=0 // pred_check
    _
  $region15: #{decoder_forward.6} parent=0 // pred_check_branch
    %223 = sbr.rel (0) target = $region17
  $region16: #{decoder_forward.6} parent=0 // pred_region
    _
  $region17: #{decoder_forward.6} parent=0 // pred_fallthru
    _
  // Predicated region
  $region18: #{decoder_forward.6} parent=0 // pred_check
    _
  $region19: #{decoder_forward.6} parent=0 // pred_check_branch
    %225 = sbr.rel (0) target = $region21
  $region20: #{decoder_forward.6} parent=0 // pred_region
    _
  $region21: #{decoder_forward.6} parent=0 // pred_fallthru
    _

// kernel: decoder_forward.7
$region0: #{decoder_forward.7}
  #allocation0 [shape = 'u32[]', space=smem, size = 0x4, offset = 0x4, fixed_abs, tag = 'smem constant byte address 0x4 - core index']
  #allocation1 [shape = 'u32[144,128]{1,0:T(1,128)}', space=vmem, size = 0x12000, scoped, tag = 'internal scratch']
  %s0 = inlined_call_operand.vmem [shape: bf16[392,72], index: 0, kind: input, shape index: {}]
  %s1 = inlined_call_operand.vmem [shape: bf16[72,4], index: 1, kind: input, shape index: {}]
  %s2 = inlined_call_operand.vmem [shape: f32[1,4], index: 2, kind: input, shape index: {}]
  %s3 = inlined_call_operand.vmem [shape: f32[392,4], index: 3, kind: output, shape index: {}]
  %s4 = sld [smem:[#allocation0]]
  $region22: #{decoder_forward.7} parent=0
    _
  %s6 = ssub.s32 1, %s4
  %s7 = scalar_select 0, %s6, %s4
  // Predicated region
  $region2: #{decoder_forward.7} parent=0 // pred_check
    _
  $region3: #{decoder_forward.7} parent=0 // pred_check_branch
    %9 = sbr.rel (0) target = $region5
  $region4: #{decoder_forward.7} parent=0 // pred_region
    _
  $region5: #{decoder_forward.7} parent=0 // pred_fallthru
    _
  // Predicated region
  $region6: #{decoder_forward.7} parent=0 // pred_check
    _
  $region7: #{decoder_forward.7} parent=0 // pred_check_branch
    %11 = sbr.rel (0) target = $region9
  $region8: #{decoder_forward.7} parent=0 // pred_region
    _
  $region9: #{decoder_forward.7} parent=0 // pred_fallthru
    _
  // Predicated region
  $region10: #{decoder_forward.7} parent=0 // pred_check
    _
  $region11: #{decoder_forward.7} parent=0 // pred_check_branch
    %13 = sbr.rel (0) target = $region13
  $region12: #{decoder_forward.7} parent=0 // pred_region
    _
  $region13: #{decoder_forward.7} parent=0 // pred_fallthru
    _
  %v15 = vld [vmem:[%s0] sm:$0xf]
  %v16 = vld [vmem:[%s0 + $0x4] sm:$0xf]
  %v17 = vld [vmem:[%s0 + $0x8] sm:$0xf]
  %v18 = vld [vmem:[%s0 + $0xc] sm:$0xf]
  %v19 = vld [vmem:[%s0 + $0x10] sm:$0xf]
  %v20 = vld [vmem:[%s0 + $0x14] sm:$0xf]
  %v21 = vld [vmem:[%s0 + $0x18] sm:$0xf]
  %v22 = vld [vmem:[%s0 + $0x1c] sm:$0xf]
  %v23 = vld [vmem:[%s0 + $0x20] sm:$0xf]
  %v24 = vld [vmem:[%s0 + $0x24] sm:$0xf]
  %v25 = vld [vmem:[%s0 + $0x28] sm:$0xf]
  %v26 = vld [vmem:[%s0 + $0x2c] sm:$0xf]
  %v27 = vld [vmem:[%s0 + $0x30] sm:$0xf]
  %v28 = vld [vmem:[%s0 + $0x34] sm:$0xf]
  %v29 = vld [vmem:[%s0 + $0x38] sm:$0xf]
  %v30 = vld [vmem:[%s0 + $0x3c] sm:$0xf]
  %v31 = vld [vmem:[%s0 + $0x40] sm:$0xf]
  %v32 = vld [vmem:[%s0 + $0x44] sm:$0xf]
  %v33 = vld [vmem:[%s0 + $0x48] sm:$0xf]
  %v34 = vld [vmem:[%s0 + $0x4c] sm:$0xf]
  %v35 = vld [vmem:[%s0 + $0x50] sm:$0xf]
  %v36 = vld [vmem:[%s0 + $0x54] sm:$0xf]
  %v37 = vld [vmem:[%s0 + $0x58] sm:$0xf]
  %v38 = vld [vmem:[%s0 + $0x5c] sm:$0xf]
  %v39 = vld [vmem:[%s0 + $0x60] sm:$0xf]
  %v40 = vld [vmem:[%s0 + $0x64] sm:$0xf]
  %v41 = vld [vmem:[%s0 + $0x68] sm:$0xf]
  %v42 = vld [vmem:[%s0 + $0x6c] sm:$0xf]
  %v43 = vld [vmem:[%s0 + $0x70] sm:$0xf]
  %v44 = vld [vmem:[%s0 + $0x74] sm:$0xf]
  %v45 = vld [vmem:[%s0 + $0x78] sm:$0xf]
  %v46 = vld [vmem:[%s0 + $0x7c] sm:$0xf]
  %v47 = vld [vmem:[%s0 + $0x80] sm:$0xf]
  %v48 = vld [vmem:[%s0 + $0x84] sm:$0xf]
  %v49 = vld [vmem:[%s0 + $0x88] sm:$0xf]
  %v50 = vld [vmem:[%s0 + $0x8c] sm:$0xf]
  %v51 = vld [vmem:[%s0 + $0x90] sm:$0xf]
  %v52 = vld [vmem:[%s0 + $0x94] sm:$0xf]
  %v53 = vld [vmem:[%s0 + $0x98] sm:$0xf]
  %v54 = vld [vmem:[%s0 + $0x9c] sm:$0xf]
  %v55 = vld [vmem:[%s0 + $0xa0] sm:$0xf]
  %v56 = vld [vmem:[%s0 + $0xa4] sm:$0xf]
  %v57 = vld [vmem:[%s0 + $0xa8] sm:$0xf]
  %v58 = vld [vmem:[%s0 + $0xac] sm:$0xf]
  %v59 = vld [vmem:[%s0 + $0xb0] sm:$0xf]
  %v60 = vld [vmem:[%s0 + $0xb4] sm:$0xf]
  %v61 = vld [vmem:[%s0 + $0xb8] sm:$0xf]
  %v62 = vld [vmem:[%s0 + $0xbc] sm:$0xf]
  %v63 = vld [vmem:[%s0 + $0xc0] sm:$0xf]
  %v64 = vld [vmem:[%s1] sm:$0xf]
  %v65 = vld [vmem:[%s1 + $0x4] sm:$0xf]
  %v66 = vld [vmem:[%s1 + $0x8] sm:$0xf]
  %v67 = vld [vmem:[%s1 + $0xc] sm:$0xf]
  %v68 = vld [vmem:[%s1 + $0x10] sm:$0xf]
  %v69 = vld [vmem:[%s1 + $0x14] sm:$0xf]
  %v70 = vld [vmem:[%s1 + $0x18] sm:$0xf]
  %v71 = vld [vmem:[%s1 + $0x1c] sm:$0xf]
  %v72 = vld [vmem:[%s1 + $0x20] sm:$0xf]
  %v73 = vld [vmem:[%s2] sm:$0x1]
  %v75 = vlaneseq
  %v76 = vshrl.u32 %v75, 7
  %v77 = vsub.s32 0, %v76
  %v78 = vrot.slane %v73, %v77
  %v129 = vunpack.c.l.b16 %v15
  %v130 = vunpack.c.l.b16 %v16
  %v131 = vunpack.c.l.b16 %v17
  %v132 = vunpack.c.l.b16 %v18
  %v133 = vunpack.c.l.b16 %v19
  %v134 = vunpack.c.l.b16 %v20
  %v135 = vunpack.c.l.b16 %v21
  %v136 = vunpack.c.l.b16 %v22
  %v137 = vunpack.c.l.b16 %v23
  %v138 = vunpack.c.l.b16 %v24
  %v139 = vunpack.c.l.b16 %v25
  %v140 = vunpack.c.l.b16 %v26
  %v141 = vunpack.c.l.b16 %v27
  %v142 = vunpack.c.l.b16 %v28
  %v143 = vunpack.c.l.b16 %v29
  %v144 = vunpack.c.l.b16 %v30
  %v145 = vunpack.c.l.b16 %v31
  %v146 = vunpack.c.l.b16 %v32
  %v147 = vunpack.c.l.b16 %v33
  %v148 = vunpack.c.l.b16 %v34
  %v149 = vunpack.c.l.b16 %v35
  %v150 = vunpack.c.l.b16 %v36
  %v151 = vunpack.c.l.b16 %v37
  %v152 = vunpack.c.l.b16 %v38
  %v153 = vunpack.c.l.b16 %v39
  %v154 = vunpack.c.l.b16 %v40
  %v155 = vunpack.c.l.b16 %v41
  %v156 = vunpack.c.l.b16 %v42
  %v157 = vunpack.c.l.b16 %v43
  %v158 = vunpack.c.l.b16 %v44
  %v159 = vunpack.c.l.b16 %v45
  %v160 = vunpack.c.l.b16 %v46
  %v161 = vunpack.c.l.b16 %v47
  %v162 = vunpack.c.l.b16 %v48
  %v163 = vunpack.c.l.b16 %v49
  %v164 = vunpack.c.l.b16 %v50
  %v165 = vunpack.c.l.b16 %v51
  %v166 = vunpack.c.l.b16 %v52
  %v167 = vunpack.c.l.b16 %v53
  %v168 = vunpack.c.l.b16 %v54
  %v169 = vunpack.c.l.b16 %v55
  %v170 = vunpack.c.l.b16 %v56
  %v171 = vunpack.c.l.b16 %v57
  %v172 = vunpack.c.l.b16 %v58
  %v173 = vunpack.c.l.b16 %v59
  %v174 = vunpack.c.l.b16 %v60
  %v175 = vunpack.c.l.b16 %v61
  %v176 = vunpack.c.l.b16 %v62
  %v177 = vunpack.c.l.b16 %v63
  %v178 = vpack.c.b16 %v130, %v129
  %v179 = vpack.c.b16 %v132, %v131
  %v180 = vpack.c.b16 %v134, %v133
  %v181 = vpack.c.b16 %v136, %v135
  %v182 = vpack.c.b16 %v138, %v137
  %v183 = vpack.c.b16 %v140, %v139
  %v184 = vpack.c.b16 %v142, %v141
  %v185 = vpack.c.b16 %v144, %v143
  %v186 = vpack.c.b16 %v146, %v145
  %v187 = vpack.c.b16 %v148, %v147
  %v188 = vpack.c.b16 %v150, %v149
  %v189 = vpack.c.b16 %v152, %v151
  %v190 = vpack.c.b16 %v154, %v153
  %v191 = vpack.c.b16 %v156, %v155
  %v192 = vpack.c.b16 %v158, %v157
  %v193 = vpack.c.b16 %v160, %v159
  %v194 = vpack.c.b16 %v162, %v161
  %v195 = vpack.c.b16 %v164, %v163
  %v196 = vpack.c.b16 %v166, %v165
  %v197 = vpack.c.b16 %v168, %v167
  %v198 = vpack.c.b16 %v170, %v169
  %v199 = vpack.c.b16 %v172, %v171
  %v200 = vpack.c.b16 %v174, %v173
  %v201 = vpack.c.b16 %v176, %v175
  %v202 = vpack.c.b16 %v177, %v177
  %v212 = vunpack.c.l.b16 %v64
  %v213 = vunpack.c.l.b16 %v65
  %v214 = vunpack.c.l.b16 %v66
  %v215 = vunpack.c.l.b16 %v67
  %v216 = vunpack.c.l.b16 %v68
  %v217 = vunpack.c.l.b16 %v69
  %v218 = vunpack.c.l.b16 %v70
  %v219 = vunpack.c.l.b16 %v71
  %v220 = vunpack.c.l.b16 %v72
  %v221 = vpack.c.b16 %v213, %v212
  %v222 = vpack.c.b16 %v215, %v214
  %v223 = vpack.c.b16 %v217, %v216
  %v224 = vpack.c.b16 %v219, %v218
  %v225 = vpack.c.b16 %v220, %v220
  %vm230 = vcmask 588800
  %v232 = vsel %vm230, %v178, 0
  %v235 = vsel %vm230, %v179, 0
  %v238 = vsel %vm230, %v180, 0
  %v241 = vsel %vm230, %v181, 0
  %v244 = vsel %vm230, %v182, 0
  %v247 = vsel %vm230, %v183, 0
  %v250 = vsel %vm230, %v184, 0
  %v253 = vsel %vm230, %v185, 0
  %v256 = vsel %vm230, %v186, 0
  %v259 = vsel %vm230, %v187, 0
  %v262 = vsel %vm230, %v188, 0
  %v265 = vsel %vm230, %v189, 0
  %v268 = vsel %vm230, %v190, 0
  %v271 = vsel %vm230, %v191, 0
  %v274 = vsel %vm230, %v192, 0
  %v277 = vsel %vm230, %v193, 0
  %v280 = vsel %vm230, %v194, 0
  %v283 = vsel %vm230, %v195, 0
  %v286 = vsel %vm230, %v196, 0
  %v289 = vsel %vm230, %v197, 0
  %v292 = vsel %vm230, %v198, 0
  %v295 = vsel %vm230, %v199, 0
  %v298 = vsel %vm230, %v200, 0
  %v301 = vsel %vm230, %v201, 0
  %v304 = vsel %vm230, %v202, 0
  %vm306 = vcmask 1043456
  %v308 = vsel %vm306, %v225, 0
  %310 = vmatprep.subr.bf16.mxu0 0
  %311 = vmatpush1.bf16.msra.mxu0 %v221
  %312 = vmatprep.subr.bf16.mxu0 0
  %313 = vmatpush1.bf16.msra.mxu0 %v222
  %314 = vmatprep.subr.bf16.mxu0 0
  %315 = vmatpush1.bf16.msra.mxu0 %v223
  %316 = vmatprep.subr.bf16.mxu0 0
  %317 = vmatpush1.bf16.msra.mxu0 %v224
  %318 = vmatprep.subr.bf16.mxu0 0
  %319 = vmatpush1.bf16.msra.mxu0 %v308
  %320 = vmatprep.subr.bf16.mxu0 0
  %321 = vmatpush1.bf16.msra.mxu0 0
  %322 = vmatprep.subr.bf16.mxu0 0
  %323 = vmatpush1.bf16.msra.mxu0 0
  %324 = vmatprep.subr.bf16.mxu0 0
  %325 = vmatpush1.bf16.msra.mxu0 0
  %326 = vmatprep.subr.bf16.mxu0 0
  %327 = vmatpush1.bf16.msra.mxu0 0
  %328 = vmatprep.subr.bf16.mxu0 0
  %329 = vmatpush1.bf16.msra.mxu0 0
  %330 = vmatprep.subr.bf16.mxu0 0
  %331 = vmatpush1.bf16.msra.mxu0 0
  %332 = vmatprep.subr.bf16.mxu0 0
  %333 = vmatpush1.bf16.msra.mxu0 0
  %334 = vmatprep.subr.bf16.mxu0 0
  %335 = vmatpush1.bf16.msra.mxu0 0
  %336 = vmatprep.subr.bf16.mxu0 0
  %337 = vmatpush1.bf16.msra.mxu0 0
  %338 = vmatprep.subr.bf16.mxu0 0
  %339 = vmatpush1.bf16.msra.mxu0 0
  %340 = vmatprep.subr.bf16.mxu0 0
  %341 = vmatpush1.bf16.msra.mxu0 0
  %342 = vmatprep.mubr.bf16.mxu0 0
  %343 = vmatmul.mubr.bf16.gmra.mrb[0].mxu0 %v232
  %v344 = vpop.f32.mrb[0].mxu0
  %v345 = vadd.f32 %v78, %v344
  %v346 = vpop.f32.mrb[0].mxu0
  %v347 = vpop.f32.mrb[0].mxu0
  %v348 = vadd.f32 %v78, %v347
  %v349 = vpop.f32.mrb[0].mxu0
  %350 = vmatprep.mubr.bf16.mxu0 0
  %351 = vmatmul.mubr.bf16.gmra.mrb[0].mxu0 %v235
  %v352 = vpop.f32.mrb[0].mxu0
  %v353 = vadd.f32 %v78, %v352
  %v354 = vpop.f32.mrb[0].mxu0
  %v355 = vpop.f32.mrb[0].mxu0
  %v356 = vadd.f32 %v78, %v355
  %v357 = vpop.f32.mrb[0].mxu0
  %358 = vmatprep.mubr.bf16.mxu0 0
  %359 = vmatmul.mubr.bf16.gmra.mrb[0].mxu0 %v238
  %v360 = vpop.f32.mrb[0].mxu0
  %v361 = vadd.f32 %v78, %v360
  %v362 = vpop.f32.mrb[0].mxu0
  %v363 = vpop.f32.mrb[0].mxu0
  %v364 = vadd.f32 %v78, %v363
  %v365 = vpop.f32.mrb[0].mxu0
  %366 = vmatprep.mubr.bf16.mxu0 0
  %367 = vmatmul.mubr.bf16.gmra.mrb[0].mxu0 %v241
  %v368 = vpop.f32.mrb[0].mxu0
  %v369 = vadd.f32 %v78, %v368
  %v370 = vpop.f32.mrb[0].mxu0
  %v371 = vpop.f32.mrb[0].mxu0
  %v372 = vadd.f32 %v78, %v371
  %v373 = vpop.f32.mrb[0].mxu0
  %374 = vmatprep.mubr.bf16.mxu0 0
  %375 = vmatmul.mubr.bf16.gmra.mrb[0].mxu0 %v244
  %v376 = vpop.f32.mrb[0].mxu0
  %v377 = vadd.f32 %v78, %v376
  %v378 = vpop.f32.mrb[0].mxu0
  %v379 = vpop.f32.mrb[0].mxu0
  %v380 = vadd.f32 %v78, %v379
  %v381 = vpop.f32.mrb[0].mxu0
  %382 = vmatprep.mubr.bf16.mxu0 0
  %383 = vmatmul.mubr.bf16.gmra.mrb[0].mxu0 %v247
  %v384 = vpop.f32.mrb[0].mxu0
  %v385 = vadd.f32 %v78, %v384
  %v386 = vpop.f32.mrb[0].mxu0
  %v387 = vpop.f32.mrb[0].mxu0
  %v388 = vadd.f32 %v78, %v387
  %v389 = vpop.f32.mrb[0].mxu0
  %390 = vmatprep.mubr.bf16.mxu0 0
  %391 = vmatmul.mubr.bf16.gmra.mrb[0].mxu0 %v250
  %v392 = vpop.f32.mrb[0].mxu0
  %v393 = vadd.f32 %v78, %v392
  %v394 = vpop.f32.mrb[0].mxu0
  %v395 = vpop.f32.mrb[0].mxu0
  %v396 = vadd.f32 %v78, %v395
  %v397 = vpop.f32.mrb[0].mxu0
  %398 = vmatprep.mubr.bf16.mxu0 0
  %399 = vmatmul.mubr.bf16.gmra.mrb[0].mxu0 %v253
  %v400 = vpop.f32.mrb[0].mxu0
  %v401 = vadd.f32 %v78, %v400
  %v402 = vpop.f32.mrb[0].mxu0
  %v403 = vpop.f32.mrb[0].mxu0
  %v404 = vadd.f32 %v78, %v403
  %v405 = vpop.f32.mrb[0].mxu0
  %406 = vmatprep.mubr.bf16.mxu0 0
  %407 = vmatmul.mubr.bf16.gmra.mrb[0].mxu0 %v256
  %v408 = vpop.f32.mrb[0].mxu0
  %v409 = vadd.f32 %v78, %v408
  %v410 = vpop.f32.mrb[0].mxu0
  %v411 = vpop.f32.mrb[0].mxu0
  %v412 = vadd.f32 %v78, %v411
  %v413 = vpop.f32.mrb[0].mxu0
  %414 = vmatprep.mubr.bf16.mxu0 0
  %415 = vmatmul.mubr.bf16.gmra.mrb[0].mxu0 %v259
  %v416 = vpop.f32.mrb[0].mxu0
  %v417 = vadd.f32 %v78, %v416
  %v418 = vpop.f32.mrb[0].mxu0
  %v419 = vpop.f32.mrb[0].mxu0
  %v420 = vadd.f32 %v78, %v419
  %v421 = vpop.f32.mrb[0].mxu0
  %422 = vmatprep.mubr.bf16.mxu0 0
  %423 = vmatmul.mubr.bf16.gmra.mrb[0].mxu0 %v262
  %v424 = vpop.f32.mrb[0].mxu0
  %v425 = vadd.f32 %v78, %v424
  %v426 = vpop.f32.mrb[0].mxu0
  %v427 = vpop.f32.mrb[0].mxu0
  %v428 = vadd.f32 %v78, %v427
  %v429 = vpop.f32.mrb[0].mxu0
  %430 = vmatprep.mubr.bf16.mxu0 0
  %431 = vmatmul.mubr.bf16.gmra.mrb[0].mxu0 %v265
  %v432 = vpop.f32.mrb[0].mxu0
  %v433 = vadd.f32 %v78, %v432
  %v434 = vpop.f32.mrb[0].mxu0
  %v435 = vpop.f32.mrb[0].mxu0
  %v436 = vadd.f32 %v78, %v435
  %v437 = vpop.f32.mrb[0].mxu0
  %438 = vmatprep.mubr.bf16.mxu0 0
  %439 = vmatmul.mubr.bf16.gmra.mrb[0].mxu0 %v268
  %v440 = vpop.f32.mrb[0].mxu0
  %v441 = vadd.f32 %v78, %v440
  %v442 = vpop.f32.mrb[0].mxu0
  %v443 = vpop.f32.mrb[0].mxu0
  %v444 = vadd.f32 %v78, %v443
  %v445 = vpop.f32.mrb[0].mxu0
  %446 = vmatprep.mubr.bf16.mxu0 0
  %447 = vmatmul.mubr.bf16.gmra.mrb[0].mxu0 %v271
  %v448 = vpop.f32.mrb[0].mxu0
  %v449 = vadd.f32 %v78, %v448
  %v450 = vpop.f32.mrb[0].mxu0
  %v451 = vpop.f32.mrb[0].mxu0
  %v452 = vadd.f32 %v78, %v451
  %v453 = vpop.f32.mrb[0].mxu0
  %454 = vmatprep.mubr.bf16.mxu0 0
  %455 = vmatmul.mubr.bf16.gmra.mrb[0].mxu0 %v274
  %v456 = vpop.f32.mrb[0].mxu0
  %v457 = vadd.f32 %v78, %v456
  %v458 = vpop.f32.mrb[0].mxu0
  %v459 = vpop.f32.mrb[0].mxu0
  %v460 = vadd.f32 %v78, %v459
  %v461 = vpop.f32.mrb[0].mxu0
  %462 = vmatprep.mubr.bf16.mxu0 0
  %463 = vmatmul.mubr.bf16.gmra.mrb[0].mxu0 %v277
  %v464 = vpop.f32.mrb[0].mxu0
  %v465 = vadd.f32 %v78, %v464
  %v466 = vpop.f32.mrb[0].mxu0
  %v467 = vpop.f32.mrb[0].mxu0
  %v468 = vadd.f32 %v78, %v467
  %v469 = vpop.f32.mrb[0].mxu0
  %470 = vmatprep.mubr.bf16.mxu0 0
  %471 = vmatmul.mubr.bf16.gmra.mrb[0].mxu0 %v280
  %v472 = vpop.f32.mrb[0].mxu0
  %v473 = vadd.f32 %v78, %v472
  %v474 = vpop.f32.mrb[0].mxu0
  %v475 = vpop.f32.mrb[0].mxu0
  %v476 = vadd.f32 %v78, %v475
  %v477 = vpop.f32.mrb[0].mxu0
  %478 = vmatprep.mubr.bf16.mxu0 0
  %479 = vmatmul.mubr.bf16.gmra.mrb[0].mxu0 %v283
  %v480 = vpop.f32.mrb[0].mxu0
  %v481 = vadd.f32 %v78, %v480
  %v482 = vpop.f32.mrb[0].mxu0
  %v483 = vpop.f32.mrb[0].mxu0
  %v484 = vadd.f32 %v78, %v483
  %v485 = vpop.f32.mrb[0].mxu0
  %486 = vmatprep.mubr.bf16.mxu0 0
  %487 = vmatmul.mubr.bf16.gmra.mrb[0].mxu0 %v286
  %v488 = vpop.f32.mrb[0].mxu0
  %v489 = vadd.f32 %v78, %v488
  %v490 = vpop.f32.mrb[0].mxu0
  %v491 = vpop.f32.mrb[0].mxu0
  %v492 = vadd.f32 %v78, %v491
  %v493 = vpop.f32.mrb[0].mxu0
  %494 = vmatprep.mubr.bf16.mxu0 0
  %495 = vmatmul.mubr.bf16.gmra.mrb[0].mxu0 %v289
  %v496 = vpop.f32.mrb[0].mxu0
  %v497 = vadd.f32 %v78, %v496
  %v498 = vpop.f32.mrb[0].mxu0
  %v499 = vpop.f32.mrb[0].mxu0
  %v500 = vadd.f32 %v78, %v499
  %v501 = vpop.f32.mrb[0].mxu0
  %502 = vmatprep.mubr.bf16.mxu0 0
  %503 = vmatmul.mubr.bf16.gmra.mrb[0].mxu0 %v292
  %v504 = vpop.f32.mrb[0].mxu0
  %v505 = vadd.f32 %v78, %v504
  %v506 = vpop.f32.mrb[0].mxu0
  %v507 = vpop.f32.mrb[0].mxu0
  %v508 = vadd.f32 %v78, %v507
  %v509 = vpop.f32.mrb[0].mxu0
  %510 = vmatprep.mubr.bf16.mxu0 0
  %511 = vmatmul.mubr.bf16.gmra.mrb[0].mxu0 %v295
  %v512 = vpop.f32.mrb[0].mxu0
  %v513 = vadd.f32 %v78, %v512
  %v514 = vpop.f32.mrb[0].mxu0
  %v515 = vpop.f32.mrb[0].mxu0
  %v516 = vadd.f32 %v78, %v515
  %v517 = vpop.f32.mrb[0].mxu0
  %518 = vmatprep.mubr.bf16.mxu0 0
  %519 = vmatmul.mubr.bf16.gmra.mrb[0].mxu0 %v298
  %v520 = vpop.f32.mrb[0].mxu0
  %v521 = vadd.f32 %v78, %v520
  %v522 = vpop.f32.mrb[0].mxu0
  %v523 = vpop.f32.mrb[0].mxu0
  %v524 = vadd.f32 %v78, %v523
  %v525 = vpop.f32.mrb[0].mxu0
  %526 = vmatprep.mubr.bf16.mxu0 0
  %527 = vmatmul.mubr.bf16.gmra.mrb[0].mxu0 %v301
  %v528 = vpop.f32.mrb[0].mxu0
  %v529 = vadd.f32 %v78, %v528
  %v530 = vpop.f32.mrb[0].mxu0
  %v531 = vpop.f32.mrb[0].mxu0
  %v532 = vadd.f32 %v78, %v531
  %v533 = vpop.f32.mrb[0].mxu0
  %534 = vmatprep.mubr.bf16.mxu0 0
  %535 = vmatmul.mubr.bf16.gmra.mrb[0].mxu0 %v304
  %v536 = vpop.f32.mrb[0].mxu0
  %v537 = vadd.f32 %v78, %v536
  %v538 = vpop.f32.mrb[0].mxu0
  %v539 = vpop.f32.mrb[0].mxu0
  %v540 = vpop.f32.mrb[0].mxu0
  %541 = vdwg.mxu0
  %v542 = vmax.f32 %v345, 0.0
  %v543 = vmax.f32 %v348, 0.0
  %v544 = vmax.f32 %v353, 0.0
  %v545 = vmax.f32 %v356, 0.0
  %v546 = vmax.f32 %v361, 0.0
  %v547 = vmax.f32 %v364, 0.0
  %v548 = vmax.f32 %v369, 0.0
  %v549 = vmax.f32 %v372, 0.0
  %v550 = vmax.f32 %v377, 0.0
  %v551 = vmax.f32 %v380, 0.0
  %v552 = vmax.f32 %v385, 0.0
  %v553 = vmax.f32 %v388, 0.0
  %v554 = vmax.f32 %v393, 0.0
  %v555 = vmax.f32 %v396, 0.0
  %v556 = vmax.f32 %v401, 0.0
  %v557 = vmax.f32 %v404, 0.0
  %v558 = vmax.f32 %v409, 0.0
  %v559 = vmax.f32 %v412, 0.0
  %v560 = vmax.f32 %v417, 0.0
  %v561 = vmax.f32 %v420, 0.0
  %v562 = vmax.f32 %v425, 0.0
  %v563 = vmax.f32 %v428, 0.0
  %v564 = vmax.f32 %v433, 0.0
  %v565 = vmax.f32 %v436, 0.0
  %v566 = vmax.f32 %v441, 0.0
  %v567 = vmax.f32 %v444, 0.0
  %v568 = vmax.f32 %v449, 0.0
  %v569 = vmax.f32 %v452, 0.0
  %v570 = vmax.f32 %v457, 0.0
  %v571 = vmax.f32 %v460, 0.0
  %v572 = vmax.f32 %v465, 0.0
  %v573 = vmax.f32 %v468, 0.0
  %v574 = vmax.f32 %v473, 0.0
  %v575 = vmax.f32 %v476, 0.0
  %v576 = vmax.f32 %v481, 0.0
  %v577 = vmax.f32 %v484, 0.0
  %v578 = vmax.f32 %v489, 0.0
  %v579 = vmax.f32 %v492, 0.0
  %v580 = vmax.f32 %v497, 0.0
  %v581 = vmax.f32 %v500, 0.0
  %v582 = vmax.f32 %v505, 0.0
  %v583 = vmax.f32 %v508, 0.0
  %v584 = vmax.f32 %v513, 0.0
  %v585 = vmax.f32 %v516, 0.0
  %v586 = vmax.f32 %v521, 0.0
  %v587 = vmax.f32 %v524, 0.0
  %v588 = vmax.f32 %v529, 0.0
  %v589 = vmax.f32 %v532, 0.0
  %v590 = vmax.f32 %v537, 0.0
  %vm591 = vcmask 31744
  %592 = vst.msk [vmem:[%s3] sm:$0xff] %vm591, %v542
  %593 = vst.msk [vmem:[%s3 + $0x8] sm:$0xff] %vm591, %v543
  %594 = vst.msk [vmem:[%s3 + $0x10] sm:$0xff] %vm591, %v544
  %595 = vst.msk [vmem:[%s3 + $0x18] sm:$0xff] %vm591, %v545
  %596 = vst.msk [vmem:[%s3 + $0x20] sm:$0xff] %vm591, %v546
  %597 = vst.msk [vmem:[%s3 + $0x28] sm:$0xff] %vm591, %v547
  %598 = vst.msk [vmem:[%s3 + $0x30] sm:$0xff] %vm591, %v548
  %599 = vst.msk [vmem:[%s3 + $0x38] sm:$0xff] %vm591, %v549
  %600 = vst.msk [vmem:[%s3 + $0x40] sm:$0xff] %vm591, %v550
  %601 = vst.msk [vmem:[%s3 + $0x48] sm:$0xff] %vm591, %v551
  %602 = vst.msk [vmem:[%s3 + $0x50] sm:$0xff] %vm591, %v552
  %603 = vst.msk [vmem:[%s3 + $0x58] sm:$0xff] %vm591, %v553
  %604 = vst.msk [vmem:[%s3 + $0x60] sm:$0xff] %vm591, %v554
  %605 = vst.msk [vmem:[%s3 + $0x68] sm:$0xff] %vm591, %v555
  %606 = vst.msk [vmem:[%s3 + $0x70] sm:$0xff] %vm591, %v556
  %607 = vst.msk [vmem:[%s3 + $0x78] sm:$0xff] %vm591, %v557
  %608 = vst.msk [vmem:[%s3 + $0x80] sm:$0xff] %vm591, %v558
  %609 = vst.msk [vmem:[%s3 + $0x88] sm:$0xff] %vm591, %v559
  %610 = vst.msk [vmem:[%s3 + $0x90] sm:$0xff] %vm591, %v560
  %611 = vst.msk [vmem:[%s3 + $0x98] sm:$0xff] %vm591, %v561
  %612 = vst.msk [vmem:[%s3 + $0xa0] sm:$0xff] %vm591, %v562
  %613 = vst.msk [vmem:[%s3 + $0xa8] sm:$0xff] %vm591, %v563
  %614 = vst.msk [vmem:[%s3 + $0xb0] sm:$0xff] %vm591, %v564
  %615 = vst.msk [vmem:[%s3 + $0xb8] sm:$0xff] %vm591, %v565
  %616 = vst.msk [vmem:[%s3 + $0xc0] sm:$0xff] %vm591, %v566
  %617 = vst.msk [vmem:[%s3 + $0xc8] sm:$0xff] %vm591, %v567
  %618 = vst.msk [vmem:[%s3 + $0xd0] sm:$0xff] %vm591, %v568
  %619 = vst.msk [vmem:[%s3 + $0xd8] sm:$0xff] %vm591, %v569
  %620 = vst.msk [vmem:[%s3 + $0xe0] sm:$0xff] %vm591, %v570
  %621 = vst.msk [vmem:[%s3 + $0xe8] sm:$0xff] %vm591, %v571
  %622 = vst.msk [vmem:[%s3 + $0xf0] sm:$0xff] %vm591, %v572
  %623 = vst.msk [vmem:[%s3 + $0xf8] sm:$0xff] %vm591, %v573
  %624 = vst.msk [vmem:[%s3 + $0x100] sm:$0xff] %vm591, %v574
  %625 = vst.msk [vmem:[%s3 + $0x108] sm:$0xff] %vm591, %v575
  %626 = vst.msk [vmem:[%s3 + $0x110] sm:$0xff] %vm591, %v576
  %627 = vst.msk [vmem:[%s3 + $0x118] sm:$0xff] %vm591, %v577
  %628 = vst.msk [vmem:[%s3 + $0x120] sm:$0xff] %vm591, %v578
  %629 = vst.msk [vmem:[%s3 + $0x128] sm:$0xff] %vm591, %v579
  %630 = vst.msk [vmem:[%s3 + $0x130] sm:$0xff] %vm591, %v580
  %631 = vst.msk [vmem:[%s3 + $0x138] sm:$0xff] %vm591, %v581
  %632 = vst.msk [vmem:[%s3 + $0x140] sm:$0xff] %vm591, %v582
  %633 = vst.msk [vmem:[%s3 + $0x148] sm:$0xff] %vm591, %v583
  %634 = vst.msk [vmem:[%s3 + $0x150] sm:$0xff] %vm591, %v584
  %635 = vst.msk [vmem:[%s3 + $0x158] sm:$0xff] %vm591, %v585
  %636 = vst.msk [vmem:[%s3 + $0x160] sm:$0xff] %vm591, %v586
  %637 = vst.msk [vmem:[%s3 + $0x168] sm:$0xff] %vm591, %v587
  %638 = vst.msk [vmem:[%s3 + $0x170] sm:$0xff] %vm591, %v588
  %639 = vst.msk [vmem:[%s3 + $0x178] sm:$0xff] %vm591, %v589
  %640 = vst.msk [vmem:[%s3 + $0x180] sm:$0xff] %vm591, %v590
  // Predicated region
  $region14: #{decoder_forward.7} parent=0 // pred_check
    _
  $region15: #{decoder_forward.7} parent=0 // pred_check_branch
    %642 = sbr.rel (0) target = $region17
  $region16: #{decoder_forward.7} parent=0 // pred_region
    _
  $region17: #{decoder_forward.7} parent=0 // pred_fallthru
    _
  // Predicated region
  $region18: #{decoder_forward.7} parent=0 // pred_check
    _
  $region19: #{decoder_forward.7} parent=0 // pred_check_branch
    %644 = sbr.rel (0) target = $region21
  $region20: #{decoder_forward.7} parent=0 // pred_region
    _
  $region21: #{decoder_forward.7} parent=0 // pred_fallthru
    _

// kernel: tile.14
$region0: #{tile.14}
  #allocation0 [shape = 's32[1]{0}', space=sflag, size = 0x4, scoped, tag = 'scoped memory for tile.14']
  %s0 = inlined_call_operand.vmem [shape: f32[2], index: 0, kind: input, shape index: {}]
  %s1 = inlined_call_operand.vmem [shape: f32[4,2], index: 1, kind: output, shape index: {}]
  // Predicated region
  $region2: #{tile.14} parent=0 // pred_check
    _
  $region3: #{tile.14} parent=0 // pred_check_branch
    %3 = sbr.rel (0) target = $region5
  $region4: #{tile.14} parent=0 // pred_region
    _
  $region5: #{tile.14} parent=0 // pred_fallthru
    _
  %v4 = vld [vmem:[%s0] ss:$0 sm:$0xff]
  %5 = vst [vmem:[%s1] sm:$0xf] %v4

// kernel: tile.15
$region0: #{tile.15}
  %s0 = inlined_call_operand.vmem [shape: f32[4,2], index: 0, kind: input, shape index: {}]
  %s1 = inlined_call_operand.vmem [shape: f32[1,8], index: 1, kind: output, shape index: {}]
  $region1: #{tile.15} parent=0
    #allocation0 [shape = 'u8[4096]{0}', space=vmem, size = 0x1000, scoped, tag = 'scoped mem for output reshape']
    #allocation1 [shape = 'u8[4096]{0}', space=vmem, size = 0x1000, scoped, tag = 'scoped mem for input reshape']
    %s3 = sshllo.u32 0, 4
    %v4 = vld [vmem:[%s0] sm:%s3]
    %5 = vst [vmem:[#allocation1] sm:%s3] %v4
    %v6 = vld [vmem:[#allocation1] sm:$0x1]
    %vm7 = vcmask 15360
    %8 = vst.msk [vmem:[#allocation0] sm:$0x1] %vm7, %v6
    %s9 = scalar_lea.vmem [#allocation1], 3
    %v10 = vld [vmem:[%s9] sm:$0x1]
    %11 = vrot.lane.b32.xlu0 %v10, 6
    %v12 = vpop.permute.xlu0 %11
    %vm13 = vcmask 64560
    %14 = vst.msk [vmem:[#allocation0] sm:$0x1] %vm13, %v12
    %s15 = scalar_lea.vmem [#allocation1], 2
    %v16 = vld [vmem:[%s15] sm:$0x1]
    %17 = vrot.lane.b32.xlu0 %v16, 4
    %v18 = vpop.permute.xlu0 %17
    %vm19 = vcmask 48160
    %20 = vst.msk [vmem:[#allocation0] sm:$0x1] %vm19, %v18
    %s21 = scalar_lea.vmem [#allocation1], 1
    %v22 = vld [vmem:[%s21] sm:$0x1]
    %23 = vrot.lane.b32.xlu0 %v22, 2
    %v24 = vpop.permute.xlu0 %23
    %vm25 = vcmask 31760
    %26 = vst.msk [vmem:[#allocation0] sm:$0x1] %vm25, %v24
    %s28 = sshllo.u32 0, 1
    %v30 = vld [vmem:[#allocation0] sm:%s28]
    %s31 = sshllo.u32 0, 1
    %32 = vst [vmem:[%s1] sm:%s31] %v30

// kernel: decoder_forward.8
$region0: #{decoder_forward.8}
  #allocation0 [shape = 'u32[]', space=smem, size = 0x4, offset = 0x4, fixed_abs, tag = 'smem constant byte address 0x4 - core index']
  #allocation1 [shape = 'u32[144,128]{1,0:T(1,128)}', space=vmem, size = 0x12000, scoped, tag = 'internal scratch']
  %s0 = inlined_call_operand.vmem [shape: bf16[288,36], index: 0, kind: input, shape index: {}]
  %s1 = inlined_call_operand.vmem [shape: bf16[36,4], index: 1, kind: input, shape index: {}]
  %s2 = inlined_call_operand.vmem [shape: f32[1,4], index: 2, kind: input, shape index: {}]
  %s3 = inlined_call_operand.vmem [shape: f32[288,4], index: 3, kind: output, shape index: {}]
  %s4 = sld [smem:[#allocation0]]
  $region22: #{decoder_forward.8} parent=0
    _
  %s6 = ssub.s32 1, %s4
  %s7 = scalar_select 0, %s6, %s4
  // Predicated region
  $region2: #{decoder_forward.8} parent=0 // pred_check
    _
  $region3: #{decoder_forward.8} parent=0 // pred_check_branch
    %9 = sbr.rel (0) target = $region5
  $region4: #{decoder_forward.8} parent=0 // pred_region
    _
  $region5: #{decoder_forward.8} parent=0 // pred_fallthru
    _
  // Predicated region
  $region6: #{decoder_forward.8} parent=0 // pred_check
    _
  $region7: #{decoder_forward.8} parent=0 // pred_check_branch
    %11 = sbr.rel (0) target = $region9
  $region8: #{decoder_forward.8} parent=0 // pred_region
    _
  $region9: #{decoder_forward.8} parent=0 // pred_fallthru
    _
  // Predicated region
  $region10: #{decoder_forward.8} parent=0 // pred_check
    _
  $region11: #{decoder_forward.8} parent=0 // pred_check_branch
    %13 = sbr.rel (0) target = $region13
  $region12: #{decoder_forward.8} parent=0 // pred_region
    _
  $region13: #{decoder_forward.8} parent=0 // pred_fallthru
    _
  %v15 = vld [vmem:[%s0] sm:$0xf]
  %v16 = vld [vmem:[%s0 + $0x4] sm:$0xf]
  %v17 = vld [vmem:[%s0 + $0x8] sm:$0xf]
  %v18 = vld [vmem:[%s0 + $0xc] sm:$0xf]
  %v19 = vld [vmem:[%s0 + $0x10] sm:$0xf]
  %v20 = vld [vmem:[%s0 + $0x14] sm:$0xf]
  %v21 = vld [vmem:[%s0 + $0x18] sm:$0xf]
  %v22 = vld [vmem:[%s0 + $0x1c] sm:$0xf]
  %v23 = vld [vmem:[%s0 + $0x20] sm:$0xf]
  %v24 = vld [vmem:[%s0 + $0x24] sm:$0xf]
  %v25 = vld [vmem:[%s0 + $0x28] sm:$0xf]
  %v26 = vld [vmem:[%s0 + $0x2c] sm:$0xf]
  %v27 = vld [vmem:[%s0 + $0x30] sm:$0xf]
  %v28 = vld [vmem:[%s0 + $0x34] sm:$0xf]
  %v29 = vld [vmem:[%s0 + $0x38] sm:$0xf]
  %v30 = vld [vmem:[%s0 + $0x3c] sm:$0xf]
  %v31 = vld [vmem:[%s0 + $0x40] sm:$0xf]
  %v32 = vld [vmem:[%s0 + $0x44] sm:$0xf]
  %v33 = vld [vmem:[%s0 + $0x48] sm:$0xf]
  %v34 = vld [vmem:[%s0 + $0x4c] sm:$0xf]
  %v35 = vld [vmem:[%s0 + $0x50] sm:$0xf]
  %v36 = vld [vmem:[%s0 + $0x54] sm:$0xf]
  %v37 = vld [vmem:[%s0 + $0x58] sm:$0xf]
  %v38 = vld [vmem:[%s0 + $0x5c] sm:$0xf]
  %v39 = vld [vmem:[%s0 + $0x60] sm:$0xf]
  %v40 = vld [vmem:[%s0 + $0x64] sm:$0xf]
  %v41 = vld [vmem:[%s0 + $0x68] sm:$0xf]
  %v42 = vld [vmem:[%s0 + $0x6c] sm:$0xf]
  %v43 = vld [vmem:[%s0 + $0x70] sm:$0xf]
  %v44 = vld [vmem:[%s0 + $0x74] sm:$0xf]
  %v45 = vld [vmem:[%s0 + $0x78] sm:$0xf]
  %v46 = vld [vmem:[%s0 + $0x7c] sm:$0xf]
  %v47 = vld [vmem:[%s0 + $0x80] sm:$0xf]
  %v48 = vld [vmem:[%s0 + $0x84] sm:$0xf]
  %v49 = vld [vmem:[%s0 + $0x88] sm:$0xf]
  %v50 = vld [vmem:[%s0 + $0x8c] sm:$0xf]
  %v51 = vld [vmem:[%s1] sm:$0xf]
  %v52 = vld [vmem:[%s1 + $0x4] sm:$0xf]
  %v53 = vld [vmem:[%s1 + $0x8] sm:$0xf]
  %v54 = vld [vmem:[%s1 + $0xc] sm:$0xf]
  %v55 = vld [vmem:[%s1 + $0x10] sm:$0x3]
  %v56 = vld [vmem:[%s2] sm:$0x1]
  %v58 = vlaneseq
  %v59 = vshrl.u32 %v58, 7
  %v60 = vsub.s32 0, %v59
  %v61 = vrot.slane %v56, %v60
  %v99 = vunpack.c.l.b16 %v15
  %v100 = vunpack.c.l.b16 %v16
  %v101 = vunpack.c.l.b16 %v17
  %v102 = vunpack.c.l.b16 %v18
  %v103 = vunpack.c.l.b16 %v19
  %v104 = vunpack.c.l.b16 %v20
  %v105 = vunpack.c.l.b16 %v21
  %v106 = vunpack.c.l.b16 %v22
  %v107 = vunpack.c.l.b16 %v23
  %v108 = vunpack.c.l.b16 %v24
  %v109 = vunpack.c.l.b16 %v25
  %v110 = vunpack.c.l.b16 %v26
  %v111 = vunpack.c.l.b16 %v27
  %v112 = vunpack.c.l.b16 %v28
  %v113 = vunpack.c.l.b16 %v29
  %v114 = vunpack.c.l.b16 %v30
  %v115 = vunpack.c.l.b16 %v31
  %v116 = vunpack.c.l.b16 %v32
  %v117 = vunpack.c.l.b16 %v33
  %v118 = vunpack.c.l.b16 %v34
  %v119 = vunpack.c.l.b16 %v35
  %v120 = vunpack.c.l.b16 %v36
  %v121 = vunpack.c.l.b16 %v37
  %v122 = vunpack.c.l.b16 %v38
  %v123 = vunpack.c.l.b16 %v39
  %v124 = vunpack.c.l.b16 %v40
  %v125 = vunpack.c.l.b16 %v41
  %v126 = vunpack.c.l.b16 %v42
  %v127 = vunpack.c.l.b16 %v43
  %v128 = vunpack.c.l.b16 %v44
  %v129 = vunpack.c.l.b16 %v45
  %v130 = vunpack.c.l.b16 %v46
  %v131 = vunpack.c.l.b16 %v47
  %v132 = vunpack.c.l.b16 %v48
  %v133 = vunpack.c.l.b16 %v49
  %v134 = vunpack.c.l.b16 %v50
  %v135 = vpack.c.b16 %v100, %v99
  %v136 = vpack.c.b16 %v102, %v101
  %v137 = vpack.c.b16 %v104, %v103
  %v138 = vpack.c.b16 %v106, %v105
  %v139 = vpack.c.b16 %v108, %v107
  %v140 = vpack.c.b16 %v110, %v109
  %v141 = vpack.c.b16 %v112, %v111
  %v142 = vpack.c.b16 %v114, %v113
  %v143 = vpack.c.b16 %v116, %v115
  %v144 = vpack.c.b16 %v118, %v117
  %v145 = vpack.c.b16 %v120, %v119
  %v146 = vpack.c.b16 %v122, %v121
  %v147 = vpack.c.b16 %v124, %v123
  %v148 = vpack.c.b16 %v126, %v125
  %v149 = vpack.c.b16 %v128, %v127
  %v150 = vpack.c.b16 %v130, %v129
  %v151 = vpack.c.b16 %v132, %v131
  %v152 = vpack.c.b16 %v134, %v133
  %v158 = vunpack.c.l.b16 %v51
  %v159 = vunpack.c.l.b16 %v52
  %v160 = vunpack.c.l.b16 %v53
  %v161 = vunpack.c.l.b16 %v54
  %v162 = vunpack.c.l.b16 %v55
  %v163 = vpack.c.b16 %v159, %v158
  %v164 = vpack.c.b16 %v161, %v160
  %v165 = vpack.c.b16 %v162, %v162
  %vm168 = vcmask 293888
  %v170 = vsel %vm168, %v135, 0
  %v173 = vsel %vm168, %v136, 0
  %v176 = vsel %vm168, %v137, 0
  %v179 = vsel %vm168, %v138, 0
  %v182 = vsel %vm168, %v139, 0
  %v185 = vsel %vm168, %v140, 0
  %v188 = vsel %vm168, %v141, 0
  %v191 = vsel %vm168, %v142, 0
  %v194 = vsel %vm168, %v143, 0
  %v197 = vsel %vm168, %v144, 0
  %v200 = vsel %vm168, %v145, 0
  %v203 = vsel %vm168, %v146, 0
  %v206 = vsel %vm168, %v147, 0
  %v209 = vsel %vm168, %v148, 0
  %v212 = vsel %vm168, %v149, 0
  %v215 = vsel %vm168, %v150, 0
  %v218 = vsel %vm168, %v151, 0
  %v221 = vsel %vm168, %v152, 0
  %vm223 = vcmask 1041408
  %v225 = vsel %vm223, %v165, 0
  %227 = vmatprep.subr.bf16.mxu0 0
  %228 = vmatpush1.bf16.msra.mxu0 %v163
  %229 = vmatprep.subr.bf16.mxu0 0
  %230 = vmatpush1.bf16.msra.mxu0 %v164
  %231 = vmatprep.subr.bf16.mxu0 0
  %232 = vmatpush1.bf16.msra.mxu0 %v225
  %233 = vmatprep.subr.bf16.mxu0 0
  %234 = vmatpush1.bf16.msra.mxu0 0
  %235 = vmatprep.subr.bf16.mxu0 0
  %236 = vmatpush1.bf16.msra.mxu0 0
  %237 = vmatprep.subr.bf16.mxu0 0
  %238 = vmatpush1.bf16.msra.mxu0 0
  %239 = vmatprep.subr.bf16.mxu0 0
  %240 = vmatpush1.bf16.msra.mxu0 0
  %241 = vmatprep.subr.bf16.mxu0 0
  %242 = vmatpush1.bf16.msra.mxu0 0
  %243 = vmatprep.subr.bf16.mxu0 0
  %244 = vmatpush1.bf16.msra.mxu0 0
  %245 = vmatprep.subr.bf16.mxu0 0
  %246 = vmatpush1.bf16.msra.mxu0 0
  %247 = vmatprep.subr.bf16.mxu0 0
  %248 = vmatpush1.bf16.msra.mxu0 0
  %249 = vmatprep.subr.bf16.mxu0 0
  %250 = vmatpush1.bf16.msra.mxu0 0
  %251 = vmatprep.subr.bf16.mxu0 0
  %252 = vmatpush1.bf16.msra.mxu0 0
  %253 = vmatprep.subr.bf16.mxu0 0
  %254 = vmatpush1.bf16.msra.mxu0 0
  %255 = vmatprep.subr.bf16.mxu0 0
  %256 = vmatpush1.bf16.msra.mxu0 0
  %257 = vmatprep.subr.bf16.mxu0 0
  %258 = vmatpush1.bf16.msra.mxu0 0
  %259 = vmatprep.mubr.bf16.mxu0 0
  %260 = vmatmul.mubr.bf16.gmra.mrb[0].mxu0 %v170
  %v261 = vpop.f32.mrb[0].mxu0
  %v262 = vadd.f32 %v61, %v261
  %v263 = vpop.f32.mrb[0].mxu0
  %v264 = vpop.f32.mrb[0].mxu0
  %v265 = vadd.f32 %v61, %v264
  %v266 = vpop.f32.mrb[0].mxu0
  %267 = vmatprep.mubr.bf16.mxu0 0
  %268 = vmatmul.mubr.bf16.gmra.mrb[0].mxu0 %v173
  %v269 = vpop.f32.mrb[0].mxu0
  %v270 = vadd.f32 %v61, %v269
  %v271 = vpop.f32.mrb[0].mxu0
  %v272 = vpop.f32.mrb[0].mxu0
  %v273 = vadd.f32 %v61, %v272
  %v274 = vpop.f32.mrb[0].mxu0
  %275 = vmatprep.mubr.bf16.mxu0 0
  %276 = vmatmul.mubr.bf16.gmra.mrb[0].mxu0 %v176
  %v277 = vpop.f32.mrb[0].mxu0
  %v278 = vadd.f32 %v61, %v277
  %v279 = vpop.f32.mrb[0].mxu0
  %v280 = vpop.f32.mrb[0].mxu0
  %v281 = vadd.f32 %v61, %v280
  %v282 = vpop.f32.mrb[0].mxu0
  %283 = vmatprep.mubr.bf16.mxu0 0
  %284 = vmatmul.mubr.bf16.gmra.mrb[0].mxu0 %v179
  %v285 = vpop.f32.mrb[0].mxu0
  %v286 = vadd.f32 %v61, %v285
  %v287 = vpop.f32.mrb[0].mxu0
  %v288 = vpop.f32.mrb[0].mxu0
  %v289 = vadd.f32 %v61, %v288
  %v290 = vpop.f32.mrb[0].mxu0
  %291 = vmatprep.mubr.bf16.mxu0 0
  %292 = vmatmul.mubr.bf16.gmra.mrb[0].mxu0 %v182
  %v293 = vpop.f32.mrb[0].mxu0
  %v294 = vadd.f32 %v61, %v293
  %v295 = vpop.f32.mrb[0].mxu0
  %v296 = vpop.f32.mrb[0].mxu0
  %v297 = vadd.f32 %v61, %v296
  %v298 = vpop.f32.mrb[0].mxu0
  %299 = vmatprep.mubr.bf16.mxu0 0
  %300 = vmatmul.mubr.bf16.gmra.mrb[0].mxu0 %v185
  %v301 = vpop.f32.mrb[0].mxu0
  %v302 = vadd.f32 %v61, %v301
  %v303 = vpop.f32.mrb[0].mxu0
  %v304 = vpop.f32.mrb[0].mxu0
  %v305 = vadd.f32 %v61, %v304
  %v306 = vpop.f32.mrb[0].mxu0
  %307 = vmatprep.mubr.bf16.mxu0 0
  %308 = vmatmul.mubr.bf16.gmra.mrb[0].mxu0 %v188
  %v309 = vpop.f32.mrb[0].mxu0
  %v310 = vadd.f32 %v61, %v309
  %v311 = vpop.f32.mrb[0].mxu0
  %v312 = vpop.f32.mrb[0].mxu0
  %v313 = vadd.f32 %v61, %v312
  %v314 = vpop.f32.mrb[0].mxu0
  %315 = vmatprep.mubr.bf16.mxu0 0
  %316 = vmatmul.mubr.bf16.gmra.mrb[0].mxu0 %v191
  %v317 = vpop.f32.mrb[0].mxu0
  %v318 = vadd.f32 %v61, %v317
  %v319 = vpop.f32.mrb[0].mxu0
  %v320 = vpop.f32.mrb[0].mxu0
  %v321 = vadd.f32 %v61, %v320
  %v322 = vpop.f32.mrb[0].mxu0
  %323 = vmatprep.mubr.bf16.mxu0 0
  %324 = vmatmul.mubr.bf16.gmra.mrb[0].mxu0 %v194
  %v325 = vpop.f32.mrb[0].mxu0
  %v326 = vadd.f32 %v61, %v325
  %v327 = vpop.f32.mrb[0].mxu0
  %v328 = vpop.f32.mrb[0].mxu0
  %v329 = vadd.f32 %v61, %v328
  %v330 = vpop.f32.mrb[0].mxu0
  %331 = vmatprep.mubr.bf16.mxu0 0
  %332 = vmatmul.mubr.bf16.gmra.mrb[0].mxu0 %v197
  %v333 = vpop.f32.mrb[0].mxu0
  %v334 = vadd.f32 %v61, %v333
  %v335 = vpop.f32.mrb[0].mxu0
  %v336 = vpop.f32.mrb[0].mxu0
  %v337 = vadd.f32 %v61, %v336
  %v338 = vpop.f32.mrb[0].mxu0
  %339 = vmatprep.mubr.bf16.mxu0 0
  %340 = vmatmul.mubr.bf16.gmra.mrb[0].mxu0 %v200
  %v341 = vpop.f32.mrb[0].mxu0
  %v342 = vadd.f32 %v61, %v341
  %v343 = vpop.f32.mrb[0].mxu0
  %v344 = vpop.f32.mrb[0].mxu0
  %v345 = vadd.f32 %v61, %v344
  %v346 = vpop.f32.mrb[0].mxu0
  %347 = vmatprep.mubr.bf16.mxu0 0
  %348 = vmatmul.mubr.bf16.gmra.mrb[0].mxu0 %v203
  %v349 = vpop.f32.mrb[0].mxu0
  %v350 = vadd.f32 %v61, %v349
  %v351 = vpop.f32.mrb[0].mxu0
  %v352 = vpop.f32.mrb[0].mxu0
  %v353 = vadd.f32 %v61, %v352
  %v354 = vpop.f32.mrb[0].mxu0
  %355 = vmatprep.mubr.bf16.mxu0 0
  %356 = vmatmul.mubr.bf16.gmra.mrb[0].mxu0 %v206
  %v357 = vpop.f32.mrb[0].mxu0
  %v358 = vadd.f32 %v61, %v357
  %v359 = vpop.f32.mrb[0].mxu0
  %v360 = vpop.f32.mrb[0].mxu0
  %v361 = vadd.f32 %v61, %v360
  %v362 = vpop.f32.mrb[0].mxu0
  %363 = vmatprep.mubr.bf16.mxu0 0
  %364 = vmatmul.mubr.bf16.gmra.mrb[0].mxu0 %v209
  %v365 = vpop.f32.mrb[0].mxu0
  %v366 = vadd.f32 %v61, %v365
  %v367 = vpop.f32.mrb[0].mxu0
  %v368 = vpop.f32.mrb[0].mxu0
  %v369 = vadd.f32 %v61, %v368
  %v370 = vpop.f32.mrb[0].mxu0
  %371 = vmatprep.mubr.bf16.mxu0 0
  %372 = vmatmul.mubr.bf16.gmra.mrb[0].mxu0 %v212
  %v373 = vpop.f32.mrb[0].mxu0
  %v374 = vadd.f32 %v61, %v373
  %v375 = vpop.f32.mrb[0].mxu0
  %v376 = vpop.f32.mrb[0].mxu0
  %v377 = vadd.f32 %v61, %v376
  %v378 = vpop.f32.mrb[0].mxu0
  %379 = vmatprep.mubr.bf16.mxu0 0
  %380 = vmatmul.mubr.bf16.gmra.mrb[0].mxu0 %v215
  %v381 = vpop.f32.mrb[0].mxu0
  %v382 = vadd.f32 %v61, %v381
  %v383 = vpop.f32.mrb[0].mxu0
  %v384 = vpop.f32.mrb[0].mxu0
  %v385 = vadd.f32 %v61, %v384
  %v386 = vpop.f32.mrb[0].mxu0
  %387 = vmatprep.mubr.bf16.mxu0 0
  %388 = vmatmul.mubr.bf16.gmra.mrb[0].mxu0 %v218
  %v389 = vpop.f32.mrb[0].mxu0
  %v390 = vadd.f32 %v61, %v389
  %v391 = vpop.f32.mrb[0].mxu0
  %v392 = vpop.f32.mrb[0].mxu0
  %v393 = vadd.f32 %v61, %v392
  %v394 = vpop.f32.mrb[0].mxu0
  %395 = vmatprep.mubr.bf16.mxu0 0
  %396 = vmatmul.mubr.bf16.gmra.mrb[0].mxu0 %v221
  %v397 = vpop.f32.mrb[0].mxu0
  %v398 = vadd.f32 %v61, %v397
  %v399 = vpop.f32.mrb[0].mxu0
  %v400 = vpop.f32.mrb[0].mxu0
  %v401 = vadd.f32 %v61, %v400
  %v402 = vpop.f32.mrb[0].mxu0
  %403 = vdwg.mxu0
  %v404 = vmax.f32 %v262, 0.0
  %v405 = vmax.f32 %v265, 0.0
  %v406 = vmax.f32 %v270, 0.0
  %v407 = vmax.f32 %v273, 0.0
  %v408 = vmax.f32 %v278, 0.0
  %v409 = vmax.f32 %v281, 0.0
  %v410 = vmax.f32 %v286, 0.0
  %v411 = vmax.f32 %v289, 0.0
  %v412 = vmax.f32 %v294, 0.0
  %v413 = vmax.f32 %v297, 0.0
  %v414 = vmax.f32 %v302, 0.0
  %v415 = vmax.f32 %v305, 0.0
  %v416 = vmax.f32 %v310, 0.0
  %v417 = vmax.f32 %v313, 0.0
  %v418 = vmax.f32 %v318, 0.0
  %v419 = vmax.f32 %v321, 0.0
  %v420 = vmax.f32 %v326, 0.0
  %v421 = vmax.f32 %v329, 0.0
  %v422 = vmax.f32 %v334, 0.0
  %v423 = vmax.f32 %v337, 0.0
  %v424 = vmax.f32 %v342, 0.0
  %v425 = vmax.f32 %v345, 0.0
  %v426 = vmax.f32 %v350, 0.0
  %v427 = vmax.f32 %v353, 0.0
  %v428 = vmax.f32 %v358, 0.0
  %v429 = vmax.f32 %v361, 0.0
  %v430 = vmax.f32 %v366, 0.0
  %v431 = vmax.f32 %v369, 0.0
  %v432 = vmax.f32 %v374, 0.0
  %v433 = vmax.f32 %v377, 0.0
  %v434 = vmax.f32 %v382, 0.0
  %v435 = vmax.f32 %v385, 0.0
  %v436 = vmax.f32 %v390, 0.0
  %v437 = vmax.f32 %v393, 0.0
  %v438 = vmax.f32 %v398, 0.0
  %v439 = vmax.f32 %v401, 0.0
  %vm440 = vcmask 31744
  %441 = vst.msk [vmem:[%s3] sm:$0xff] %vm440, %v404
  %442 = vst.msk [vmem:[%s3 + $0x8] sm:$0xff] %vm440, %v405
  %443 = vst.msk [vmem:[%s3 + $0x10] sm:$0xff] %vm440, %v406
  %444 = vst.msk [vmem:[%s3 + $0x18] sm:$0xff] %vm440, %v407
  %445 = vst.msk [vmem:[%s3 + $0x20] sm:$0xff] %vm440, %v408
  %446 = vst.msk [vmem:[%s3 + $0x28] sm:$0xff] %vm440, %v409
  %447 = vst.msk [vmem:[%s3 + $0x30] sm:$0xff] %vm440, %v410
  %448 = vst.msk [vmem:[%s3 + $0x38] sm:$0xff] %vm440, %v411
  %449 = vst.msk [vmem:[%s3 + $0x40] sm:$0xff] %vm440, %v412
  %450 = vst.msk [vmem:[%s3 + $0x48] sm:$0xff] %vm440, %v413
  %451 = vst.msk [vmem:[%s3 + $0x50] sm:$0xff] %vm440, %v414
  %452 = vst.msk [vmem:[%s3 + $0x58] sm:$0xff] %vm440, %v415
  %453 = vst.msk [vmem:[%s3 + $0x60] sm:$0xff] %vm440, %v416
  %454 = vst.msk [vmem:[%s3 + $0x68] sm:$0xff] %vm440, %v417
  %455 = vst.msk [vmem:[%s3 + $0x70] sm:$0xff] %vm440, %v418
  %456 = vst.msk [vmem:[%s3 + $0x78] sm:$0xff] %vm440, %v419
  %457 = vst.msk [vmem:[%s3 + $0x80] sm:$0xff] %vm440, %v420
  %458 = vst.msk [vmem:[%s3 + $0x88] sm:$0xff] %vm440, %v421
  %459 = vst.msk [vmem:[%s3 + $0x90] sm:$0xff] %vm440, %v422
  %460 = vst.msk [vmem:[%s3 + $0x98] sm:$0xff] %vm440, %v423
  %461 = vst.msk [vmem:[%s3 + $0xa0] sm:$0xff] %vm440, %v424
  %462 = vst.msk [vmem:[%s3 + $0xa8] sm:$0xff] %vm440, %v425
  %463 = vst.msk [vmem:[%s3 + $0xb0] sm:$0xff] %vm440, %v426
  %464 = vst.msk [vmem:[%s3 + $0xb8] sm:$0xff] %vm440, %v427
  %465 = vst.msk [vmem:[%s3 + $0xc0] sm:$0xff] %vm440, %v428
  %466 = vst.msk [vmem:[%s3 + $0xc8] sm:$0xff] %vm440, %v429
  %467 = vst.msk [vmem:[%s3 + $0xd0] sm:$0xff] %vm440, %v430
  %468 = vst.msk [vmem:[%s3 + $0xd8] sm:$0xff] %vm440, %v431
  %469 = vst.msk [vmem:[%s3 + $0xe0] sm:$0xff] %vm440, %v432
  %470 = vst.msk [vmem:[%s3 + $0xe8] sm:$0xff] %vm440, %v433
  %471 = vst.msk [vmem:[%s3 + $0xf0] sm:$0xff] %vm440, %v434
  %472 = vst.msk [vmem:[%s3 + $0xf8] sm:$0xff] %vm440, %v435
  %473 = vst.msk [vmem:[%s3 + $0x100] sm:$0xff] %vm440, %v436
  %474 = vst.msk [vmem:[%s3 + $0x108] sm:$0xff] %vm440, %v437
  %475 = vst.msk [vmem:[%s3 + $0x110] sm:$0xff] %vm440, %v438
  %476 = vst.msk [vmem:[%s3 + $0x118] sm:$0xff] %vm440, %v439
  // Predicated region
  $region14: #{decoder_forward.8} parent=0 // pred_check
    _
  $region15: #{decoder_forward.8} parent=0 // pred_check_branch
    %478 = sbr.rel (0) target = $region17
  $region16: #{decoder_forward.8} parent=0 // pred_region
    _
  $region17: #{decoder_forward.8} parent=0 // pred_fallthru
    _
  // Predicated region
  $region18: #{decoder_forward.8} parent=0 // pred_check
    _
  $region19: #{decoder_forward.8} parent=0 // pred_check_branch
    %480 = sbr.rel (0) target = $region21
  $region20: #{decoder_forward.8} parent=0 // pred_region
    _
  $region21: #{decoder_forward.8} parent=0 // pred_fallthru
    _

// kernel: decoder_forward.9
$region0: #{decoder_forward.9}
  #allocation0 [shape = 'u32[]', space=smem, size = 0x4, offset = 0x4, fixed_abs, tag = 'smem constant byte address 0x4 - core index']
  #allocation1 [shape = 'u32[144,128]{1,0:T(1,128)}', space=vmem, size = 0x12000, scoped, tag = 'internal scratch']
  %s0 = inlined_call_operand.vmem [shape: bf16[288,4], index: 0, kind: input, shape index: {}]
  %s1 = inlined_call_operand.vmem [shape: bf16[4,8], index: 1, kind: input, shape index: {}]
  %s2 = inlined_call_operand.vmem [shape: f32[1,8], index: 2, kind: input, shape index: {}]
  %s3 = inlined_call_operand.vmem [shape: f32[288,8], index: 3, kind: output, shape index: {}]
  %s4 = sld [smem:[#allocation0]]
  $region22: #{decoder_forward.9} parent=0
    _
  %s6 = ssub.s32 1, %s4
  %s7 = scalar_select 0, %s6, %s4
  // Predicated region
  $region2: #{decoder_forward.9} parent=0 // pred_check
    _
  $region3: #{decoder_forward.9} parent=0 // pred_check_branch
    %9 = sbr.rel (0) target = $region5
  $region4: #{decoder_forward.9} parent=0 // pred_region
    _
  $region5: #{decoder_forward.9} parent=0 // pred_fallthru
    _
  // Predicated region
  $region6: #{decoder_forward.9} parent=0 // pred_check
    _
  $region7: #{decoder_forward.9} parent=0 // pred_check_branch
    %11 = sbr.rel (0) target = $region9
  $region8: #{decoder_forward.9} parent=0 // pred_region
    _
  $region9: #{decoder_forward.9} parent=0 // pred_fallthru
    _
  // Predicated region
  $region10: #{decoder_forward.9} parent=0 // pred_check
    _
  $region11: #{decoder_forward.9} parent=0 // pred_check_branch
    %13 = sbr.rel (0) target = $region13
  $region12: #{decoder_forward.9} parent=0 // pred_region
    _
  $region13: #{decoder_forward.9} parent=0 // pred_fallthru
    _
  %v15 = vld [vmem:[%s0] sm:$0xf]
  %v16 = vld [vmem:[%s0 + $0x4] sm:$0xf]
  %v17 = vld [vmem:[%s0 + $0x8] sm:$0xf]
  %v18 = vld [vmem:[%s0 + $0xc] sm:$0xf]
  %v19 = vld [vmem:[%s0 + $0x10] sm:$0xf]
  %v20 = vld [vmem:[%s0 + $0x14] sm:$0xf]
  %v21 = vld [vmem:[%s0 + $0x18] sm:$0xf]
  %v22 = vld [vmem:[%s0 + $0x1c] sm:$0xf]
  %v23 = vld [vmem:[%s0 + $0x20] sm:$0xf]
  %v24 = vld [vmem:[%s0 + $0x24] sm:$0xf]
  %v25 = vld [vmem:[%s0 + $0x28] sm:$0xf]
  %v26 = vld [vmem:[%s0 + $0x2c] sm:$0xf]
  %v27 = vld [vmem:[%s0 + $0x30] sm:$0xf]
  %v28 = vld [vmem:[%s0 + $0x34] sm:$0xf]
  %v29 = vld [vmem:[%s0 + $0x38] sm:$0xf]
  %v30 = vld [vmem:[%s0 + $0x3c] sm:$0xf]
  %v31 = vld [vmem:[%s0 + $0x40] sm:$0xf]
  %v32 = vld [vmem:[%s0 + $0x44] sm:$0xf]
  %v33 = vld [vmem:[%s0 + $0x48] sm:$0xf]
  %v34 = vld [vmem:[%s0 + $0x4c] sm:$0xf]
  %v35 = vld [vmem:[%s0 + $0x50] sm:$0xf]
  %v36 = vld [vmem:[%s0 + $0x54] sm:$0xf]
  %v37 = vld [vmem:[%s0 + $0x58] sm:$0xf]
  %v38 = vld [vmem:[%s0 + $0x5c] sm:$0xf]
  %v39 = vld [vmem:[%s0 + $0x60] sm:$0xf]
  %v40 = vld [vmem:[%s0 + $0x64] sm:$0xf]
  %v41 = vld [vmem:[%s0 + $0x68] sm:$0xf]
  %v42 = vld [vmem:[%s0 + $0x6c] sm:$0xf]
  %v43 = vld [vmem:[%s0 + $0x70] sm:$0xf]
  %v44 = vld [vmem:[%s0 + $0x74] sm:$0xf]
  %v45 = vld [vmem:[%s0 + $0x78] sm:$0xf]
  %v46 = vld [vmem:[%s0 + $0x7c] sm:$0xf]
  %v47 = vld [vmem:[%s0 + $0x80] sm:$0xf]
  %v48 = vld [vmem:[%s0 + $0x84] sm:$0xf]
  %v49 = vld [vmem:[%s0 + $0x88] sm:$0xf]
  %v50 = vld [vmem:[%s0 + $0x8c] sm:$0xf]
  %v51 = vld [vmem:[%s1] sm:$0x3]
  %v52 = vld [vmem:[%s2] sm:$0x1]
  %v54 = vlaneseq
  %v55 = vshrl.u32 %v54, 7
  %v56 = vsub.s32 0, %v55
  %v57 = vrot.slane %v52, %v56
  %v95 = vunpack.c.l.b16 %v15
  %v96 = vunpack.c.l.b16 %v16
  %v97 = vunpack.c.l.b16 %v17
  %v98 = vunpack.c.l.b16 %v18
  %v99 = vunpack.c.l.b16 %v19
  %v100 = vunpack.c.l.b16 %v20
  %v101 = vunpack.c.l.b16 %v21
  %v102 = vunpack.c.l.b16 %v22
  %v103 = vunpack.c.l.b16 %v23
  %v104 = vunpack.c.l.b16 %v24
  %v105 = vunpack.c.l.b16 %v25
  %v106 = vunpack.c.l.b16 %v26
  %v107 = vunpack.c.l.b16 %v27
  %v108 = vunpack.c.l.b16 %v28
  %v109 = vunpack.c.l.b16 %v29
  %v110 = vunpack.c.l.b16 %v30
  %v111 = vunpack.c.l.b16 %v31
  %v112 = vunpack.c.l.b16 %v32
  %v113 = vunpack.c.l.b16 %v33
  %v114 = vunpack.c.l.b16 %v34
  %v115 = vunpack.c.l.b16 %v35
  %v116 = vunpack.c.l.b16 %v36
  %v117 = vunpack.c.l.b16 %v37
  %v118 = vunpack.c.l.b16 %v38
  %v119 = vunpack.c.l.b16 %v39
  %v120 = vunpack.c.l.b16 %v40
  %v121 = vunpack.c.l.b16 %v41
  %v122 = vunpack.c.l.b16 %v42
  %v123 = vunpack.c.l.b16 %v43
  %v124 = vunpack.c.l.b16 %v44
  %v125 = vunpack.c.l.b16 %v45
  %v126 = vunpack.c.l.b16 %v46
  %v127 = vunpack.c.l.b16 %v47
  %v128 = vunpack.c.l.b16 %v48
  %v129 = vunpack.c.l.b16 %v49
  %v130 = vunpack.c.l.b16 %v50
  %v131 = vpack.c.b16 %v96, %v95
  %v132 = vpack.c.b16 %v98, %v97
  %v133 = vpack.c.b16 %v100, %v99
  %v134 = vpack.c.b16 %v102, %v101
  %v135 = vpack.c.b16 %v104, %v103
  %v136 = vpack.c.b16 %v106, %v105
  %v137 = vpack.c.b16 %v108, %v107
  %v138 = vpack.c.b16 %v110, %v109
  %v139 = vpack.c.b16 %v112, %v111
  %v140 = vpack.c.b16 %v114, %v113
  %v141 = vpack.c.b16 %v116, %v115
  %v142 = vpack.c.b16 %v118, %v117
  %v143 = vpack.c.b16 %v120, %v119
  %v144 = vpack.c.b16 %v122, %v121
  %v145 = vpack.c.b16 %v124, %v123
  %v146 = vpack.c.b16 %v126, %v125
  %v147 = vpack.c.b16 %v128, %v127
  %v148 = vpack.c.b16 %v130, %v129
  %vm149 = vcmask 31744
  %v151 = vsel %vm149, %v131, 0
  %v154 = vsel %vm149, %v132, 0
  %v157 = vsel %vm149, %v133, 0
  %v160 = vsel %vm149, %v134, 0
  %v163 = vsel %vm149, %v135, 0
  %v166 = vsel %vm149, %v136, 0
  %v169 = vsel %vm149, %v137, 0
  %v172 = vsel %vm149, %v138, 0
  %v175 = vsel %vm149, %v139, 0
  %v178 = vsel %vm149, %v140, 0
  %v181 = vsel %vm149, %v141, 0
  %v184 = vsel %vm149, %v142, 0
  %v187 = vsel %vm149, %v143, 0
  %v190 = vsel %vm149, %v144, 0
  %v193 = vsel %vm149, %v145, 0
  %v196 = vsel %vm149, %v146, 0
  %v199 = vsel %vm149, %v147, 0
  %v202 = vsel %vm149, %v148, 0
  %vm204 = vcmask 1041408
  %v206 = vsel %vm204, %v51, 0
  %208 = vmatprep.subr.bf16.mxu0 0
  %209 = vmatpush1.bf16.msra.mxu0 %v206
  %210 = vmatprep.subr.bf16.mxu0 0
  %211 = vmatpush1.bf16.msra.mxu0 0
  %212 = vmatprep.subr.bf16.mxu0 0
  %213 = vmatpush1.bf16.msra.mxu0 0
  %214 = vmatprep.subr.bf16.mxu0 0
  %215 = vmatpush1.bf16.msra.mxu0 0
  %216 = vmatprep.subr.bf16.mxu0 0
  %217 = vmatpush1.bf16.msra.mxu0 0
  %218 = vmatprep.subr.bf16.mxu0 0
  %219 = vmatpush1.bf16.msra.mxu0 0
  %220 = vmatprep.subr.bf16.mxu0 0
  %221 = vmatpush1.bf16.msra.mxu0 0
  %222 = vmatprep.subr.bf16.mxu0 0
  %223 = vmatpush1.bf16.msra.mxu0 0
  %224 = vmatprep.subr.bf16.mxu0 0
  %225 = vmatpush1.bf16.msra.mxu0 0
  %226 = vmatprep.subr.bf16.mxu0 0
  %227 = vmatpush1.bf16.msra.mxu0 0
  %228 = vmatprep.subr.bf16.mxu0 0
  %229 = vmatpush1.bf16.msra.mxu0 0
  %230 = vmatprep.subr.bf16.mxu0 0
  %231 = vmatpush1.bf16.msra.mxu0 0
  %232 = vmatprep.subr.bf16.mxu0 0
  %233 = vmatpush1.bf16.msra.mxu0 0
  %234 = vmatprep.subr.bf16.mxu0 0
  %235 = vmatpush1.bf16.msra.mxu0 0
  %236 = vmatprep.subr.bf16.mxu0 0
  %237 = vmatpush1.bf16.msra.mxu0 0
  %238 = vmatprep.subr.bf16.mxu0 0
  %239 = vmatpush1.bf16.msra.mxu0 0
  %240 = vmatprep.mubr.bf16.mxu0 0
  %241 = vmatmul.mubr.bf16.gmra.mrb[0].mxu0 %v151
  %v242 = vpop.f32.mrb[0].mxu0
  %v243 = vadd.f32 %v57, %v242
  %v244 = vpop.f32.mrb[0].mxu0
  %v245 = vpop.f32.mrb[0].mxu0
  %v246 = vadd.f32 %v57, %v245
  %v247 = vpop.f32.mrb[0].mxu0
  %248 = vmatprep.mubr.bf16.mxu0 0
  %249 = vmatmul.mubr.bf16.gmra.mrb[0].mxu0 %v154
  %v250 = vpop.f32.mrb[0].mxu0
  %v251 = vadd.f32 %v57, %v250
  %v252 = vpop.f32.mrb[0].mxu0
  %v253 = vpop.f32.mrb[0].mxu0
  %v254 = vadd.f32 %v57, %v253
  %v255 = vpop.f32.mrb[0].mxu0
  %256 = vmatprep.mubr.bf16.mxu0 0
  %257 = vmatmul.mubr.bf16.gmra.mrb[0].mxu0 %v157
  %v258 = vpop.f32.mrb[0].mxu0
  %v259 = vadd.f32 %v57, %v258
  %v260 = vpop.f32.mrb[0].mxu0
  %v261 = vpop.f32.mrb[0].mxu0
  %v262 = vadd.f32 %v57, %v261
  %v263 = vpop.f32.mrb[0].mxu0
  %264 = vmatprep.mubr.bf16.mxu0 0
  %265 = vmatmul.mubr.bf16.gmra.mrb[0].mxu0 %v160
  %v266 = vpop.f32.mrb[0].mxu0
  %v267 = vadd.f32 %v57, %v266
  %v268 = vpop.f32.mrb[0].mxu0
  %v269 = vpop.f32.mrb[0].mxu0
  %v270 = vadd.f32 %v57, %v269
  %v271 = vpop.f32.mrb[0].mxu0
  %272 = vmatprep.mubr.bf16.mxu0 0
  %273 = vmatmul.mubr.bf16.gmra.mrb[0].mxu0 %v163
  %v274 = vpop.f32.mrb[0].mxu0
  %v275 = vadd.f32 %v57, %v274
  %v276 = vpop.f32.mrb[0].mxu0
  %v277 = vpop.f32.mrb[0].mxu0
  %v278 = vadd.f32 %v57, %v277
  %v279 = vpop.f32.mrb[0].mxu0
  %280 = vmatprep.mubr.bf16.mxu0 0
  %281 = vmatmul.mubr.bf16.gmra.mrb[0].mxu0 %v166
  %v282 = vpop.f32.mrb[0].mxu0
  %v283 = vadd.f32 %v57, %v282
  %v284 = vpop.f32.mrb[0].mxu0
  %v285 = vpop.f32.mrb[0].mxu0
  %v286 = vadd.f32 %v57, %v285
  %v287 = vpop.f32.mrb[0].mxu0
  %288 = vmatprep.mubr.bf16.mxu0 0
  %289 = vmatmul.mubr.bf16.gmra.mrb[0].mxu0 %v169
  %v290 = vpop.f32.mrb[0].mxu0
  %v291 = vadd.f32 %v57, %v290
  %v292 = vpop.f32.mrb[0].mxu0
  %v293 = vpop.f32.mrb[0].mxu0
  %v294 = vadd.f32 %v57, %v293
  %v295 = vpop.f32.mrb[0].mxu0
  %296 = vmatprep.mubr.bf16.mxu0 0
  %297 = vmatmul.mubr.bf16.gmra.mrb[0].mxu0 %v172
  %v298 = vpop.f32.mrb[0].mxu0
  %v299 = vadd.f32 %v57, %v298
  %v300 = vpop.f32.mrb[0].mxu0
  %v301 = vpop.f32.mrb[0].mxu0
  %v302 = vadd.f32 %v57, %v301
  %v303 = vpop.f32.mrb[0].mxu0
  %304 = vmatprep.mubr.bf16.mxu0 0
  %305 = vmatmul.mubr.bf16.gmra.mrb[0].mxu0 %v175
  %v306 = vpop.f32.mrb[0].mxu0
  %v307 = vadd.f32 %v57, %v306
  %v308 = vpop.f32.mrb[0].mxu0
  %v309 = vpop.f32.mrb[0].mxu0
  %v310 = vadd.f32 %v57, %v309
  %v311 = vpop.f32.mrb[0].mxu0
  %312 = vmatprep.mubr.bf16.mxu0 0
  %313 = vmatmul.mubr.bf16.gmra.mrb[0].mxu0 %v178
  %v314 = vpop.f32.mrb[0].mxu0
  %v315 = vadd.f32 %v57, %v314
  %v316 = vpop.f32.mrb[0].mxu0
  %v317 = vpop.f32.mrb[0].mxu0
  %v318 = vadd.f32 %v57, %v317
  %v319 = vpop.f32.mrb[0].mxu0
  %320 = vmatprep.mubr.bf16.mxu0 0
  %321 = vmatmul.mubr.bf16.gmra.mrb[0].mxu0 %v181
  %v322 = vpop.f32.mrb[0].mxu0
  %v323 = vadd.f32 %v57, %v322
  %v324 = vpop.f32.mrb[0].mxu0
  %v325 = vpop.f32.mrb[0].mxu0
  %v326 = vadd.f32 %v57, %v325
  %v327 = vpop.f32.mrb[0].mxu0
  %328 = vmatprep.mubr.bf16.mxu0 0
  %329 = vmatmul.mubr.bf16.gmra.mrb[0].mxu0 %v184
  %v330 = vpop.f32.mrb[0].mxu0
  %v331 = vadd.f32 %v57, %v330
  %v332 = vpop.f32.mrb[0].mxu0
  %v333 = vpop.f32.mrb[0].mxu0
  %v334 = vadd.f32 %v57, %v333
  %v335 = vpop.f32.mrb[0].mxu0
  %336 = vmatprep.mubr.bf16.mxu0 0
  %337 = vmatmul.mubr.bf16.gmra.mrb[0].mxu0 %v187
  %v338 = vpop.f32.mrb[0].mxu0
  %v339 = vadd.f32 %v57, %v338
  %v340 = vpop.f32.mrb[0].mxu0
  %v341 = vpop.f32.mrb[0].mxu0
  %v342 = vadd.f32 %v57, %v341
  %v343 = vpop.f32.mrb[0].mxu0
  %344 = vmatprep.mubr.bf16.mxu0 0
  %345 = vmatmul.mubr.bf16.gmra.mrb[0].mxu0 %v190
  %v346 = vpop.f32.mrb[0].mxu0
  %v347 = vadd.f32 %v57, %v346
  %v348 = vpop.f32.mrb[0].mxu0
  %v349 = vpop.f32.mrb[0].mxu0
  %v350 = vadd.f32 %v57, %v349
  %v351 = vpop.f32.mrb[0].mxu0
  %352 = vmatprep.mubr.bf16.mxu0 0
  %353 = vmatmul.mubr.bf16.gmra.mrb[0].mxu0 %v193
  %v354 = vpop.f32.mrb[0].mxu0
  %v355 = vadd.f32 %v57, %v354
  %v356 = vpop.f32.mrb[0].mxu0
  %v357 = vpop.f32.mrb[0].mxu0
  %v358 = vadd.f32 %v57, %v357
  %v359 = vpop.f32.mrb[0].mxu0
  %360 = vmatprep.mubr.bf16.mxu0 0
  %361 = vmatmul.mubr.bf16.gmra.mrb[0].mxu0 %v196
  %v362 = vpop.f32.mrb[0].mxu0
  %v363 = vadd.f32 %v57, %v362
  %v364 = vpop.f32.mrb[0].mxu0
  %v365 = vpop.f32.mrb[0].mxu0
  %v366 = vadd.f32 %v57, %v365
  %v367 = vpop.f32.mrb[0].mxu0
  %368 = vmatprep.mubr.bf16.mxu0 0
  %369 = vmatmul.mubr.bf16.gmra.mrb[0].mxu0 %v199
  %v370 = vpop.f32.mrb[0].mxu0
  %v371 = vadd.f32 %v57, %v370
  %v372 = vpop.f32.mrb[0].mxu0
  %v373 = vpop.f32.mrb[0].mxu0
  %v374 = vadd.f32 %v57, %v373
  %v375 = vpop.f32.mrb[0].mxu0
  %376 = vmatprep.mubr.bf16.mxu0 0
  %377 = vmatmul.mubr.bf16.gmra.mrb[0].mxu0 %v202
  %v378 = vpop.f32.mrb[0].mxu0
  %v379 = vadd.f32 %v57, %v378
  %v380 = vpop.f32.mrb[0].mxu0
  %v381 = vpop.f32.mrb[0].mxu0
  %v382 = vadd.f32 %v57, %v381
  %v383 = vpop.f32.mrb[0].mxu0
  %384 = vdwg.mxu0
  %vm385 = vcmask 64512
  %386 = vst.msk [vmem:[%s3] sm:$0xff] %vm385, %v243
  %387 = vst.msk [vmem:[%s3 + $0x8] sm:$0xff] %vm385, %v246
  %388 = vst.msk [vmem:[%s3 + $0x10] sm:$0xff] %vm385, %v251
  %389 = vst.msk [vmem:[%s3 + $0x18] sm:$0xff] %vm385, %v254
  %390 = vst.msk [vmem:[%s3 + $0x20] sm:$0xff] %vm385, %v259
  %391 = vst.msk [vmem:[%s3 + $0x28] sm:$0xff] %vm385, %v262
  %392 = vst.msk [vmem:[%s3 + $0x30] sm:$0xff] %vm385, %v267
  %393 = vst.msk [vmem:[%s3 + $0x38] sm:$0xff] %vm385, %v270
  %394 = vst.msk [vmem:[%s3 + $0x40] sm:$0xff] %vm385, %v275
  %395 = vst.msk [vmem:[%s3 + $0x48] sm:$0xff] %vm385, %v278
  %396 = vst.msk [vmem:[%s3 + $0x50] sm:$0xff] %vm385, %v283
  %397 = vst.msk [vmem:[%s3 + $0x58] sm:$0xff] %vm385, %v286
  %398 = vst.msk [vmem:[%s3 + $0x60] sm:$0xff] %vm385, %v291
  %399 = vst.msk [vmem:[%s3 + $0x68] sm:$0xff] %vm385, %v294
  %400 = vst.msk [vmem:[%s3 + $0x70] sm:$0xff] %vm385, %v299
  %401 = vst.msk [vmem:[%s3 + $0x78] sm:$0xff] %vm385, %v302
  %402 = vst.msk [vmem:[%s3 + $0x80] sm:$0xff] %vm385, %v307
  %403 = vst.msk [vmem:[%s3 + $0x88] sm:$0xff] %vm385, %v310
  %404 = vst.msk [vmem:[%s3 + $0x90] sm:$0xff] %vm385, %v315
  %405 = vst.msk [vmem:[%s3 + $0x98] sm:$0xff] %vm385, %v318
  %406 = vst.msk [vmem:[%s3 + $0xa0] sm:$0xff] %vm385, %v323
  %407 = vst.msk [vmem:[%s3 + $0xa8] sm:$0xff] %vm385, %v326
  %408 = vst.msk [vmem:[%s3 + $0xb0] sm:$0xff] %vm385, %v331
  %409 = vst.msk [vmem:[%s3 + $0xb8] sm:$0xff] %vm385, %v334
  %410 = vst.msk [vmem:[%s3 + $0xc0] sm:$0xff] %vm385, %v339
  %411 = vst.msk [vmem:[%s3 + $0xc8] sm:$0xff] %vm385, %v342
  %412 = vst.msk [vmem:[%s3 + $0xd0] sm:$0xff] %vm385, %v347
  %413 = vst.msk [vmem:[%s3 + $0xd8] sm:$0xff] %vm385, %v350
  %414 = vst.msk [vmem:[%s3 + $0xe0] sm:$0xff] %vm385, %v355
  %415 = vst.msk [vmem:[%s3 + $0xe8] sm:$0xff] %vm385, %v358
  %416 = vst.msk [vmem:[%s3 + $0xf0] sm:$0xff] %vm385, %v363
  %417 = vst.msk [vmem:[%s3 + $0xf8] sm:$0xff] %vm385, %v366
  %418 = vst.msk [vmem:[%s3 + $0x100] sm:$0xff] %vm385, %v371
  %419 = vst.msk [vmem:[%s3 + $0x108] sm:$0xff] %vm385, %v374
  %420 = vst.msk [vmem:[%s3 + $0x110] sm:$0xff] %vm385, %v379
  %421 = vst.msk [vmem:[%s3 + $0x118] sm:$0xff] %vm385, %v382
  // Predicated region
  $region14: #{decoder_forward.9} parent=0 // pred_check
    _
  $region15: #{decoder_forward.9} parent=0 // pred_check_branch
    %423 = sbr.rel (0) target = $region17
  $region16: #{decoder_forward.9} parent=0 // pred_region
    _
  $region17: #{decoder_forward.9} parent=0 // pred_fallthru
    _
  // Predicated region
  $region18: #{decoder_forward.9} parent=0 // pred_check
    _
  $region19: #{decoder_forward.9} parent=0 // pred_check_branch
    %425 = sbr.rel (0) target = $region21
  $region20: #{decoder_forward.9} parent=0 // pred_region
    _
  $region21: #{decoder_forward.9} parent=0 // pred_fallthru
    _

// kernel: decoder_forward.10
$region0: #{decoder_forward.10}
  #allocation0 [shape = 'u32[]', space=smem, size = 0x4, offset = 0x4, fixed_abs, tag = 'smem constant byte address 0x4 - core index']
  #allocation1 [shape = 'u32[144,128]{1,0:T(1,128)}', space=vmem, size = 0x12000, scoped, tag = 'internal scratch']
  %s0 = inlined_call_operand.vmem [shape: bf16[1024,36], index: 0, kind: input, shape index: {}]
  %s1 = inlined_call_operand.vmem [shape: bf16[36,2], index: 1, kind: input, shape index: {}]
  %s2 = inlined_call_operand.vmem [shape: f32[1,2], index: 2, kind: input, shape index: {}]
  %s3 = inlined_call_operand.vmem [shape: f32[1024,2], index: 3, kind: output, shape index: {}]
  %s4 = sld [smem:[#allocation0]]
  $region45: #{decoder_forward.10} parent=0
    _
  %s6 = ssub.s32 1, %s4
  %s7 = scalar_select 0, %s6, %s4
  loop: start=0, step=1, limit=4
  $region2: #{decoder_forward.10} parent=0 // loop_pre_header
    _
  $region3: #{decoder_forward.10} parent=0 // loop_header
    %s9 = sphi 0, %s13
    %p10 = scmp.ge.s32.totalorder %s9, 4
    %s19 = sphi 0, %s21
    %s22 = sphi 0, %s19
    %s23 = sphi 0, %s22
    %s39 = sphi 0, %s23
    %s43 = sphi 0, %s43
    %s45 = sphi 0, %s43
    %s46 = sphi 0, %s45
    %s60 = sphi 0, %s46
    %s64 = sphi 0, %s64
    %s66 = sphi 0, %s64
    %s67 = sphi 0, %s66
    %s81 = sphi 0, %s67
    %s87 = sphi 0, %s89
    %s90 = sphi 0, %s87
    %s91 = sphi 0, %s90
    %s107 = sphi 0, %s91
  $region4: #{decoder_forward.10} parent=0 // loop_header_branch
    %12 = sbr.rel (%p10) target = $region8
  $region5: #{decoder_forward.10} parent=0 // loop_body
    %s14 = ssub.s32 %s9, 1
    %s15 = ssub.s32 %s9, 2
    %s16 = sadd.s32 %s9, 1
    %s17 = ssub.s32 %s9, %s16
    %p18 = scmp.eq.s32.totalorder %s17, 0
    %s20 = sadd.s32 %s19, 1
    %s21 = scalar_select %p18, %s19, %s20
    %p24 = pneg %p18
    %p25 = scmp.eq.s32.totalorder %s9, 1
    %p26 = por %p24, %p25
    %p27 = scmp.ne.s32.totalorder %s19, %s22
    %p28 = scmp.eq.s32.totalorder %s9, 0
    %p29 = por %p27, %p28
    %p30 = scmp.ne.s32.totalorder %s19, %s22
    %p31 = scmp.eq.s32.totalorder %s14, 1
    %p32 = por %p30, %p31
    %p33 = scmp.ne.s32.totalorder %s22, %s23
    %p34 = scmp.eq.s32.totalorder %s14, 0
    %p35 = por %p33, %p34
    %p36 = scmp.ne.s32.totalorder %s22, %s23
    %p37 = scmp.eq.s32.totalorder %s15, 1
    %p38 = por %p36, %p37
    %p40 = scmp.ne.s32.totalorder %s23, %s39
    %p41 = scmp.eq.s32.totalorder %s15, 0
    %p42 = por %p40, %p41
    %s44 = sadd.s32 %s43, 1
    %p47 = scmp.eq.s32.totalorder %s9, 1
    %p48 = scmp.ne.s32.totalorder %s43, %s45
    %p49 = scmp.eq.s32.totalorder %s9, 0
    %p50 = por %p48, %p49
    %p51 = scmp.ne.s32.totalorder %s43, %s45
    %p52 = scmp.eq.s32.totalorder %s14, 1
    %p53 = por %p51, %p52
    %p54 = scmp.ne.s32.totalorder %s45, %s46
    %p55 = scmp.eq.s32.totalorder %s14, 0
    %p56 = por %p54, %p55
    %p57 = scmp.ne.s32.totalorder %s45, %s46
    %p58 = scmp.eq.s32.totalorder %s15, 1
    %p59 = por %p57, %p58
    %p61 = scmp.ne.s32.totalorder %s46, %s60
    %p62 = scmp.eq.s32.totalorder %s15, 0
    %p63 = por %p61, %p62
    %s65 = sadd.s32 %s64, 1
    %p68 = scmp.eq.s32.totalorder %s9, 1
    %p69 = scmp.ne.s32.totalorder %s64, %s66
    %p70 = scmp.eq.s32.totalorder %s9, 0
    %p71 = por %p69, %p70
    %p72 = scmp.ne.s32.totalorder %s64, %s66
    %p73 = scmp.eq.s32.totalorder %s14, 1
    %p74 = por %p72, %p73
    %p75 = scmp.ne.s32.totalorder %s66, %s67
    %p76 = scmp.eq.s32.totalorder %s14, 0
    %p77 = por %p75, %p76
    %p78 = scmp.ne.s32.totalorder %s66, %s67
    %p79 = scmp.eq.s32.totalorder %s15, 1
    %p80 = por %p78, %p79
    %p82 = scmp.ne.s32.totalorder %s67, %s81
    %p83 = scmp.eq.s32.totalorder %s15, 0
    %p84 = por %p82, %p83
    %s85 = ssub.s32 %s9, %s16
    %p86 = scmp.eq.s32.totalorder %s85, 0
    %s88 = sadd.s32 %s87, 1
    %s89 = scalar_select %p86, %s87, %s88
    %p92 = pneg %p86
    %p93 = scmp.eq.s32.totalorder %s9, 1
    %p94 = por %p92, %p93
    %p95 = scmp.ne.s32.totalorder %s87, %s90
    %p96 = scmp.eq.s32.totalorder %s9, 0
    %p97 = por %p95, %p96
    %p98 = scmp.ne.s32.totalorder %s87, %s90
    %p99 = scmp.eq.s32.totalorder %s14, 1
    %p100 = por %p98, %p99
    %p101 = scmp.ne.s32.totalorder %s90, %s91
    %p102 = scmp.eq.s32.totalorder %s14, 0
    %p103 = por %p101, %p102
    %p104 = scmp.ne.s32.totalorder %s90, %s91
    %p105 = scmp.eq.s32.totalorder %s15, 1
    %p106 = por %p104, %p105
    %p108 = scmp.ne.s32.totalorder %s91, %s107
    %p109 = scmp.eq.s32.totalorder %s15, 0
    %p110 = por %p108, %p109
    %p111 = scmp.le.s32.totalorder 1, %s9
    %p112 = scmp.lt.s32.totalorder %s9, 3
    %p113 = pnand %p111, %p112
    %p114 = pneg %p113
    // Predicated region
    $region9: #{decoder_forward.10} parent=5 // pred_check
      _
    $region10: #{decoder_forward.10} parent=5 // pred_check_branch
      %116 = sbr.rel (%p113) target = $region12
    $region11: #{decoder_forward.10} parent=5 // pred_region
      %s117 = ssub.s32 %s9, 1
      // Predicated region
      $region13: #{decoder_forward.10} parent=11 // pred_check
        %p118 = pneg %p56
      $region14: #{decoder_forward.10} parent=11 // pred_check_branch
        %120 = sbr.rel (%p118) target = $region16
      $region15: #{decoder_forward.10} parent=11 // pred_region
        _
      $region16: #{decoder_forward.10} parent=11 // pred_fallthru
        _
      // Predicated region
      $region17: #{decoder_forward.10} parent=11 // pred_check
        %p121 = pneg %p77
      $region18: #{decoder_forward.10} parent=11 // pred_check_branch
        %123 = sbr.rel (%p121) target = $region20
      $region19: #{decoder_forward.10} parent=11 // pred_region
        _
      $region20: #{decoder_forward.10} parent=11 // pred_fallthru
        _
    $region12: #{decoder_forward.10} parent=5 // pred_fallthru
      _
    %p124 = scmp.lt.s32.totalorder %s9, 2
    // Predicated region
    $region21: #{decoder_forward.10} parent=5 // pred_check
      %p125 = pneg %p124
    $region22: #{decoder_forward.10} parent=5 // pred_check_branch
      %127 = sbr.rel (%p125) target = $region24
    $region23: #{decoder_forward.10} parent=5 // pred_region
      // Predicated region
      $region25: #{decoder_forward.10} parent=23 // pred_check
        %p128 = pneg %p29
      $region26: #{decoder_forward.10} parent=23 // pred_check_branch
        %130 = sbr.rel (%p128) target = $region28
      $region27: #{decoder_forward.10} parent=23 // pred_region
        %s131 = smul.u32 64, %s9
        %p132 = scmp.lt.s32.totalorder %s131, 127
        %s133 = scalar_select %p132, %s131, 127
        %s134 = smul.addr %s133, 4
        %s135 = scalar_lea.vmem %s0, %s134
        %s136 = smul.u32 64, %s9
      $region28: #{decoder_forward.10} parent=23 // pred_fallthru
        _
    $region24: #{decoder_forward.10} parent=5 // pred_fallthru
      _
    %p137 = scmp.le.s32.totalorder 1, %s9
    %p138 = scmp.lt.s32.totalorder %s9, 3
    %p139 = pnand %p137, %p138
    %p140 = pneg %p139
    // Predicated region
    $region29: #{decoder_forward.10} parent=5 // pred_check
      _
    $region30: #{decoder_forward.10} parent=5 // pred_check_branch
      %142 = sbr.rel (%p139) target = $region32
    $region31: #{decoder_forward.10} parent=5 // pred_region
      %s143 = ssub.s32 %s9, 1
      %s144 = smul.u32 64, %s14
      %p145 = scmp.lt.s32.totalorder %s144, 127
      %s146 = scalar_select %p145, %s144, 127
      %s147 = smul.addr %s146, 4
      %s148 = scalar_lea.vmem %s0, %s147
      %p149 = pneg %p35
      %p150 = pneg %p32
      %p151 = pneg %p56
      %p152 = pneg %p53
      %p153 = pneg %p77
      %p154 = pneg %p74
      %p155 = pneg %p103
      %p156 = pneg %p100
      %s157 = smul.u32 64, %s14
      %p158 = scmp.lt.s32.totalorder %s157, 127
      %s159 = scalar_select %p158, %s157, 127
      %s160 = smul.addr %s159, 8
      %s161 = scalar_lea.vmem %s3, %s160
      %s162 = smul.u32 64, %s14
      %p163 = scmp.lt.s32.totalorder %s162, 127
      %s164 = scalar_select %p163, %s162, 127
      %s165 = smul.addr %s164, 4
      %s166 = scalar_lea.vmem %s0, %s165
      %s167 = smul.u32 64, %s14
      %s168 = smul.u32 64, %s14
      %p169 = scmp.lt.s32.totalorder %s168, 127
      %s170 = scalar_select %p169, %s168, 127
      %s171 = smul.addr %s170, 8
      %s172 = scalar_lea.vmem %s3, %s171
      %s173 = smul.u32 64, %s14
      %v175 = vld [vmem:[%s166] sm:$0xf]
      %v176 = vld [vmem:[%s166 + $0x4] sm:$0xf]
      %v177 = vld [vmem:[%s166 + $0x8] sm:$0xf]
      %v178 = vld [vmem:[%s166 + $0xc] sm:$0xf]
      %v179 = vld [vmem:[%s166 + $0x10] sm:$0xf]
      %v180 = vld [vmem:[%s166 + $0x14] sm:$0xf]
      %v181 = vld [vmem:[%s166 + $0x18] sm:$0xf]
      %v182 = vld [vmem:[%s166 + $0x1c] sm:$0xf]
      %v183 = vld [vmem:[%s166 + $0x20] sm:$0xf]
      %v184 = vld [vmem:[%s166 + $0x24] sm:$0xf]
      %v185 = vld [vmem:[%s166 + $0x28] sm:$0xf]
      %v186 = vld [vmem:[%s166 + $0x2c] sm:$0xf]
      %v187 = vld [vmem:[%s166 + $0x30] sm:$0xf]
      %v188 = vld [vmem:[%s166 + $0x34] sm:$0xf]
      %v189 = vld [vmem:[%s166 + $0x38] sm:$0xf]
      %v190 = vld [vmem:[%s166 + $0x3c] sm:$0xf]
      %v191 = vld [vmem:[%s166 + $0x40] sm:$0xf]
      %v192 = vld [vmem:[%s166 + $0x44] sm:$0xf]
      %v193 = vld [vmem:[%s166 + $0x48] sm:$0xf]
      %v194 = vld [vmem:[%s166 + $0x4c] sm:$0xf]
      %v195 = vld [vmem:[%s166 + $0x50] sm:$0xf]
      %v196 = vld [vmem:[%s166 + $0x54] sm:$0xf]
      %v197 = vld [vmem:[%s166 + $0x58] sm:$0xf]
      %v198 = vld [vmem:[%s166 + $0x5c] sm:$0xf]
      %v199 = vld [vmem:[%s166 + $0x60] sm:$0xf]
      %v200 = vld [vmem:[%s166 + $0x64] sm:$0xf]
      %v201 = vld [vmem:[%s166 + $0x68] sm:$0xf]
      %v202 = vld [vmem:[%s166 + $0x6c] sm:$0xf]
      %v203 = vld [vmem:[%s166 + $0x70] sm:$0xf]
      %v204 = vld [vmem:[%s166 + $0x74] sm:$0xf]
      %v205 = vld [vmem:[%s166 + $0x78] sm:$0xf]
      %v206 = vld [vmem:[%s166 + $0x7c] sm:$0xf]
      %v207 = vld [vmem:[%s166 + $0x80] sm:$0xf]
      %v208 = vld [vmem:[%s166 + $0x84] sm:$0xf]
      %v209 = vld [vmem:[%s166 + $0x88] sm:$0xf]
      %v210 = vld [vmem:[%s166 + $0x8c] sm:$0xf]
      %v211 = vld [vmem:[%s166 + $0x90] sm:$0xf]
      %v212 = vld [vmem:[%s166 + $0x94] sm:$0xf]
      %v213 = vld [vmem:[%s166 + $0x98] sm:$0xf]
      %v214 = vld [vmem:[%s166 + $0x9c] sm:$0xf]
      %v215 = vld [vmem:[%s166 + $0xa0] sm:$0xf]
      %v216 = vld [vmem:[%s166 + $0xa4] sm:$0xf]
      %v217 = vld [vmem:[%s166 + $0xa8] sm:$0xf]
      %v218 = vld [vmem:[%s166 + $0xac] sm:$0xf]
      %v219 = vld [vmem:[%s166 + $0xb0] sm:$0xf]
      %v220 = vld [vmem:[%s166 + $0xb4] sm:$0xf]
      %v221 = vld [vmem:[%s166 + $0xb8] sm:$0xf]
      %v222 = vld [vmem:[%s166 + $0xbc] sm:$0xf]
      %v223 = vld [vmem:[%s166 + $0xc0] sm:$0xf]
      %v224 = vld [vmem:[%s166 + $0xc4] sm:$0xf]
      %v225 = vld [vmem:[%s166 + $0xc8] sm:$0xf]
      %v226 = vld [vmem:[%s166 + $0xcc] sm:$0xf]
      %v227 = vld [vmem:[%s166 + $0xd0] sm:$0xf]
      %v228 = vld [vmem:[%s166 + $0xd4] sm:$0xf]
      %v229 = vld [vmem:[%s166 + $0xd8] sm:$0xf]
      %v230 = vld [vmem:[%s166 + $0xdc] sm:$0xf]
      %v231 = vld [vmem:[%s166 + $0xe0] sm:$0xf]
      %v232 = vld [vmem:[%s166 + $0xe4] sm:$0xf]
      %v233 = vld [vmem:[%s166 + $0xe8] sm:$0xf]
      %v234 = vld [vmem:[%s166 + $0xec] sm:$0xf]
      %v235 = vld [vmem:[%s166 + $0xf0] sm:$0xf]
      %v236 = vld [vmem:[%s166 + $0xf4] sm:$0xf]
      %v237 = vld [vmem:[%s166 + $0xf8] sm:$0xf]
      %v238 = vld [vmem:[%s166 + $0xfc] sm:$0xf]
      %v239 = vld [vmem:[%s1] sm:$0xf]
      %v240 = vld [vmem:[%s1 + $0x4] sm:$0xf]
      %v241 = vld [vmem:[%s1 + $0x8] sm:$0xf]
      %v242 = vld [vmem:[%s1 + $0xc] sm:$0xf]
      %v243 = vld [vmem:[%s1 + $0x10] sm:$0x3]
      %v244 = vld [vmem:[%s2] sm:$0x1]
      %v246 = vlaneseq
      %v247 = vshrl.u32 %v246, 7
      %v248 = vsub.s32 0, %v247
      %v249 = vrot.slane %v244, %v248
      %v315 = vunpack.c.l.b16 %v175
      %v316 = vunpack.c.l.b16 %v176
      %v317 = vunpack.c.l.b16 %v177
      %v318 = vunpack.c.l.b16 %v178
      %v319 = vunpack.c.l.b16 %v179
      %v320 = vunpack.c.l.b16 %v180
      %v321 = vunpack.c.l.b16 %v181
      %v322 = vunpack.c.l.b16 %v182
      %v323 = vunpack.c.l.b16 %v183
      %v324 = vunpack.c.l.b16 %v184
      %v325 = vunpack.c.l.b16 %v185
      %v326 = vunpack.c.l.b16 %v186
      %v327 = vunpack.c.l.b16 %v187
      %v328 = vunpack.c.l.b16 %v188
      %v329 = vunpack.c.l.b16 %v189
      %v330 = vunpack.c.l.b16 %v190
      %v331 = vunpack.c.l.b16 %v191
      %v332 = vunpack.c.l.b16 %v192
      %v333 = vunpack.c.l.b16 %v193
      %v334 = vunpack.c.l.b16 %v194
      %v335 = vunpack.c.l.b16 %v195
      %v336 = vunpack.c.l.b16 %v196
      %v337 = vunpack.c.l.b16 %v197
      %v338 = vunpack.c.l.b16 %v198
      %v339 = vunpack.c.l.b16 %v199
      %v340 = vunpack.c.l.b16 %v200
      %v341 = vunpack.c.l.b16 %v201
      %v342 = vunpack.c.l.b16 %v202
      %v343 = vunpack.c.l.b16 %v203
      %v344 = vunpack.c.l.b16 %v204
      %v345 = vunpack.c.l.b16 %v205
      %v346 = vunpack.c.l.b16 %v206
      %v347 = vunpack.c.l.b16 %v207
      %v348 = vunpack.c.l.b16 %v208
      %v349 = vunpack.c.l.b16 %v209
      %v350 = vunpack.c.l.b16 %v210
      %v351 = vunpack.c.l.b16 %v211
      %v352 = vunpack.c.l.b16 %v212
      %v353 = vunpack.c.l.b16 %v213
      %v354 = vunpack.c.l.b16 %v214
      %v355 = vunpack.c.l.b16 %v215
      %v356 = vunpack.c.l.b16 %v216
      %v357 = vunpack.c.l.b16 %v217
      %v358 = vunpack.c.l.b16 %v218
      %v359 = vunpack.c.l.b16 %v219
      %v360 = vunpack.c.l.b16 %v220
      %v361 = vunpack.c.l.b16 %v221
      %v362 = vunpack.c.l.b16 %v222
      %v363 = vunpack.c.l.b16 %v223
      %v364 = vunpack.c.l.b16 %v224
      %v365 = vunpack.c.l.b16 %v225
      %v366 = vunpack.c.l.b16 %v226
      %v367 = vunpack.c.l.b16 %v227
      %v368 = vunpack.c.l.b16 %v228
      %v369 = vunpack.c.l.b16 %v229
      %v370 = vunpack.c.l.b16 %v230
      %v371 = vunpack.c.l.b16 %v231
      %v372 = vunpack.c.l.b16 %v232
      %v373 = vunpack.c.l.b16 %v233
      %v374 = vunpack.c.l.b16 %v234
      %v375 = vunpack.c.l.b16 %v235
      %v376 = vunpack.c.l.b16 %v236
      %v377 = vunpack.c.l.b16 %v237
      %v378 = vunpack.c.l.b16 %v238
      %v379 = vpack.c.b16 %v316, %v315
      %v380 = vpack.c.b16 %v318, %v317
      %v381 = vpack.c.b16 %v320, %v319
      %v382 = vpack.c.b16 %v322, %v321
      %v383 = vpack.c.b16 %v324, %v323
      %v384 = vpack.c.b16 %v326, %v325
      %v385 = vpack.c.b16 %v328, %v327
      %v386 = vpack.c.b16 %v330, %v329
      %v387 = vpack.c.b16 %v332, %v331
      %v388 = vpack.c.b16 %v334, %v333
      %v389 = vpack.c.b16 %v336, %v335
      %v390 = vpack.c.b16 %v338, %v337
      %v391 = vpack.c.b16 %v340, %v339
      %v392 = vpack.c.b16 %v342, %v341
      %v393 = vpack.c.b16 %v344, %v343
      %v394 = vpack.c.b16 %v346, %v345
      %v395 = vpack.c.b16 %v348, %v347
      %v396 = vpack.c.b16 %v350, %v349
      %v397 = vpack.c.b16 %v352, %v351
      %v398 = vpack.c.b16 %v354, %v353
      %v399 = vpack.c.b16 %v356, %v355
      %v400 = vpack.c.b16 %v358, %v357
      %v401 = vpack.c.b16 %v360, %v359
      %v402 = vpack.c.b16 %v362, %v361
      %v403 = vpack.c.b16 %v364, %v363
      %v404 = vpack.c.b16 %v366, %v365
      %v405 = vpack.c.b16 %v368, %v367
      %v406 = vpack.c.b16 %v370, %v369
      %v407 = vpack.c.b16 %v372, %v371
      %v408 = vpack.c.b16 %v374, %v373
      %v409 = vpack.c.b16 %v376, %v375
      %v410 = vpack.c.b16 %v378, %v377
      %v416 = vunpack.c.l.b16 %v239
      %v417 = vunpack.c.l.b16 %v240
      %v418 = vunpack.c.l.b16 %v241
      %v419 = vunpack.c.l.b16 %v242
      %v420 = vunpack.c.l.b16 %v243
      %v421 = vpack.c.b16 %v417, %v416
      %v422 = vpack.c.b16 %v419, %v418
      %v423 = vpack.c.b16 %v420, %v420
      %vm426 = vcmask 293888
      %v428 = vsel %vm426, %v379, 0
      %v431 = vsel %vm426, %v380, 0
      %v434 = vsel %vm426, %v381, 0
      %v437 = vsel %vm426, %v382, 0
      %v440 = vsel %vm426, %v383, 0
      %v443 = vsel %vm426, %v384, 0
      %v446 = vsel %vm426, %v385, 0
      %v449 = vsel %vm426, %v386, 0
      %v452 = vsel %vm426, %v387, 0
      %v455 = vsel %vm426, %v388, 0
      %v458 = vsel %vm426, %v389, 0
      %v461 = vsel %vm426, %v390, 0
      %v464 = vsel %vm426, %v391, 0
      %v467 = vsel %vm426, %v392, 0
      %v470 = vsel %vm426, %v393, 0
      %v473 = vsel %vm426, %v394, 0
      %v476 = vsel %vm426, %v395, 0
      %v479 = vsel %vm426, %v396, 0
      %v482 = vsel %vm426, %v397, 0
      %v485 = vsel %vm426, %v398, 0
      %v488 = vsel %vm426, %v399, 0
      %v491 = vsel %vm426, %v400, 0
      %v494 = vsel %vm426, %v401, 0
      %v497 = vsel %vm426, %v402, 0
      %v500 = vsel %vm426, %v403, 0
      %v503 = vsel %vm426, %v404, 0
      %v506 = vsel %vm426, %v405, 0
      %v509 = vsel %vm426, %v406, 0
      %v512 = vsel %vm426, %v407, 0
      %v515 = vsel %vm426, %v408, 0
      %v518 = vsel %vm426, %v409, 0
      %v521 = vsel %vm426, %v410, 0
      %vm523 = vcmask 1041408
      %v525 = vsel %vm523, %v423, 0
      %527 = vmatprep.subr.bf16.mxu0 0
      %528 = vmatpush1.bf16.msra.mxu0 %v421
      %529 = vmatprep.subr.bf16.mxu0 0
      %530 = vmatpush1.bf16.msra.mxu0 %v422
      %531 = vmatprep.subr.bf16.mxu0 0
      %532 = vmatpush1.bf16.msra.mxu0 %v525
      %533 = vmatprep.subr.bf16.mxu0 0
      %534 = vmatpush1.bf16.msra.mxu0 0
      %535 = vmatprep.subr.bf16.mxu0 0
      %536 = vmatpush1.bf16.msra.mxu0 0
      %537 = vmatprep.subr.bf16.mxu0 0
      %538 = vmatpush1.bf16.msra.mxu0 0
      %539 = vmatprep.subr.bf16.mxu0 0
      %540 = vmatpush1.bf16.msra.mxu0 0
      %541 = vmatprep.subr.bf16.mxu0 0
      %542 = vmatpush1.bf16.msra.mxu0 0
      %543 = vmatprep.subr.bf16.mxu0 0
      %544 = vmatpush1.bf16.msra.mxu0 0
      %545 = vmatprep.subr.bf16.mxu0 0
      %546 = vmatpush1.bf16.msra.mxu0 0
      %547 = vmatprep.subr.bf16.mxu0 0
      %548 = vmatpush1.bf16.msra.mxu0 0
      %549 = vmatprep.subr.bf16.mxu0 0
      %550 = vmatpush1.bf16.msra.mxu0 0
      %551 = vmatprep.subr.bf16.mxu0 0
      %552 = vmatpush1.bf16.msra.mxu0 0
      %553 = vmatprep.subr.bf16.mxu0 0
      %554 = vmatpush1.bf16.msra.mxu0 0
      %555 = vmatprep.subr.bf16.mxu0 0
      %556 = vmatpush1.bf16.msra.mxu0 0
      %557 = vmatprep.subr.bf16.mxu0 0
      %558 = vmatpush1.bf16.msra.mxu0 0
      %559 = vmatprep.mubr.bf16.mxu0 0
      %560 = vmatmul.mubr.bf16.gmra.mrb[0].mxu0 %v428
      %v561 = vpop.f32.mrb[0].mxu0
      %v562 = vadd.f32 %v249, %v561
      %v563 = vpop.f32.mrb[0].mxu0
      %v564 = vpop.f32.mrb[0].mxu0
      %v565 = vadd.f32 %v249, %v564
      %v566 = vpop.f32.mrb[0].mxu0
      %567 = vmatprep.mubr.bf16.mxu0 0
      %568 = vmatmul.mubr.bf16.gmra.mrb[0].mxu0 %v431
      %v569 = vpop.f32.mrb[0].mxu0
      %v570 = vadd.f32 %v249, %v569
      %v571 = vpop.f32.mrb[0].mxu0
      %v572 = vpop.f32.mrb[0].mxu0
      %v573 = vadd.f32 %v249, %v572
      %v574 = vpop.f32.mrb[0].mxu0
      %575 = vmatprep.mubr.bf16.mxu0 0
      %576 = vmatmul.mubr.bf16.gmra.mrb[0].mxu0 %v434
      %v577 = vpop.f32.mrb[0].mxu0
      %v578 = vadd.f32 %v249, %v577
      %v579 = vpop.f32.mrb[0].mxu0
      %v580 = vpop.f32.mrb[0].mxu0
      %v581 = vadd.f32 %v249, %v580
      %v582 = vpop.f32.mrb[0].mxu0
      %583 = vmatprep.mubr.bf16.mxu0 0
      %584 = vmatmul.mubr.bf16.gmra.mrb[0].mxu0 %v437
      %v585 = vpop.f32.mrb[0].mxu0
      %v586 = vadd.f32 %v249, %v585
      %v587 = vpop.f32.mrb[0].mxu0
      %v588 = vpop.f32.mrb[0].mxu0
      %v589 = vadd.f32 %v249, %v588
      %v590 = vpop.f32.mrb[0].mxu0
      %591 = vmatprep.mubr.bf16.mxu0 0
      %592 = vmatmul.mubr.bf16.gmra.mrb[0].mxu0 %v440
      %v593 = vpop.f32.mrb[0].mxu0
      %v594 = vadd.f32 %v249, %v593
      %v595 = vpop.f32.mrb[0].mxu0
      %v596 = vpop.f32.mrb[0].mxu0
      %v597 = vadd.f32 %v249, %v596
      %v598 = vpop.f32.mrb[0].mxu0
      %599 = vmatprep.mubr.bf16.mxu0 0
      %600 = vmatmul.mubr.bf16.gmra.mrb[0].mxu0 %v443
      %v601 = vpop.f32.mrb[0].mxu0
      %v602 = vadd.f32 %v249, %v601
      %v603 = vpop.f32.mrb[0].mxu0
      %v604 = vpop.f32.mrb[0].mxu0
      %v605 = vadd.f32 %v249, %v604
      %v606 = vpop.f32.mrb[0].mxu0
      %607 = vmatprep.mubr.bf16.mxu0 0
      %608 = vmatmul.mubr.bf16.gmra.mrb[0].mxu0 %v446
      %v609 = vpop.f32.mrb[0].mxu0
      %v610 = vadd.f32 %v249, %v609
      %v611 = vpop.f32.mrb[0].mxu0
      %v612 = vpop.f32.mrb[0].mxu0
      %v613 = vadd.f32 %v249, %v612
      %v614 = vpop.f32.mrb[0].mxu0
      %615 = vmatprep.mubr.bf16.mxu0 0
      %616 = vmatmul.mubr.bf16.gmra.mrb[0].mxu0 %v449
      %v617 = vpop.f32.mrb[0].mxu0
      %v618 = vadd.f32 %v249, %v617
      %v619 = vpop.f32.mrb[0].mxu0
      %v620 = vpop.f32.mrb[0].mxu0
      %v621 = vadd.f32 %v249, %v620
      %v622 = vpop.f32.mrb[0].mxu0
      %623 = vmatprep.mubr.bf16.mxu0 0
      %624 = vmatmul.mubr.bf16.gmra.mrb[0].mxu0 %v452
      %v625 = vpop.f32.mrb[0].mxu0
      %v626 = vadd.f32 %v249, %v625
      %v627 = vpop.f32.mrb[0].mxu0
      %v628 = vpop.f32.mrb[0].mxu0
      %v629 = vadd.f32 %v249, %v628
      %v630 = vpop.f32.mrb[0].mxu0
      %631 = vmatprep.mubr.bf16.mxu0 0
      %632 = vmatmul.mubr.bf16.gmra.mrb[0].mxu0 %v455
      %v633 = vpop.f32.mrb[0].mxu0
      %v634 = vadd.f32 %v249, %v633
      %v635 = vpop.f32.mrb[0].mxu0
      %v636 = vpop.f32.mrb[0].mxu0
      %v637 = vadd.f32 %v249, %v636
      %v638 = vpop.f32.mrb[0].mxu0
      %639 = vmatprep.mubr.bf16.mxu0 0
      %640 = vmatmul.mubr.bf16.gmra.mrb[0].mxu0 %v458
      %v641 = vpop.f32.mrb[0].mxu0
      %v642 = vadd.f32 %v249, %v641
      %v643 = vpop.f32.mrb[0].mxu0
      %v644 = vpop.f32.mrb[0].mxu0
      %v645 = vadd.f32 %v249, %v644
      %v646 = vpop.f32.mrb[0].mxu0
      %647 = vmatprep.mubr.bf16.mxu0 0
      %648 = vmatmul.mubr.bf16.gmra.mrb[0].mxu0 %v461
      %v649 = vpop.f32.mrb[0].mxu0
      %v650 = vadd.f32 %v249, %v649
      %v651 = vpop.f32.mrb[0].mxu0
      %v652 = vpop.f32.mrb[0].mxu0
      %v653 = vadd.f32 %v249, %v652
      %v654 = vpop.f32.mrb[0].mxu0
      %655 = vmatprep.mubr.bf16.mxu0 0
      %656 = vmatmul.mubr.bf16.gmra.mrb[0].mxu0 %v464
      %v657 = vpop.f32.mrb[0].mxu0
      %v658 = vadd.f32 %v249, %v657
      %v659 = vpop.f32.mrb[0].mxu0
      %v660 = vpop.f32.mrb[0].mxu0
      %v661 = vadd.f32 %v249, %v660
      %v662 = vpop.f32.mrb[0].mxu0
      %663 = vmatprep.mubr.bf16.mxu0 0
      %664 = vmatmul.mubr.bf16.gmra.mrb[0].mxu0 %v467
      %v665 = vpop.f32.mrb[0].mxu0
      %v666 = vadd.f32 %v249, %v665
      %v667 = vpop.f32.mrb[0].mxu0
      %v668 = vpop.f32.mrb[0].mxu0
      %v669 = vadd.f32 %v249, %v668
      %v670 = vpop.f32.mrb[0].mxu0
      %671 = vmatprep.mubr.bf16.mxu0 0
      %672 = vmatmul.mubr.bf16.gmra.mrb[0].mxu0 %v470
      %v673 = vpop.f32.mrb[0].mxu0
      %v674 = vadd.f32 %v249, %v673
      %v675 = vpop.f32.mrb[0].mxu0
      %v676 = vpop.f32.mrb[0].mxu0
      %v677 = vadd.f32 %v249, %v676
      %v678 = vpop.f32.mrb[0].mxu0
      %679 = vmatprep.mubr.bf16.mxu0 0
      %680 = vmatmul.mubr.bf16.gmra.mrb[0].mxu0 %v473
      %v681 = vpop.f32.mrb[0].mxu0
      %v682 = vadd.f32 %v249, %v681
      %v683 = vpop.f32.mrb[0].mxu0
      %v684 = vpop.f32.mrb[0].mxu0
      %v685 = vadd.f32 %v249, %v684
      %v686 = vpop.f32.mrb[0].mxu0
      %687 = vmatprep.mubr.bf16.mxu0 0
      %688 = vmatmul.mubr.bf16.gmra.mrb[0].mxu0 %v476
      %v689 = vpop.f32.mrb[0].mxu0
      %v690 = vadd.f32 %v249, %v689
      %v691 = vpop.f32.mrb[0].mxu0
      %v692 = vpop.f32.mrb[0].mxu0
      %v693 = vadd.f32 %v249, %v692
      %v694 = vpop.f32.mrb[0].mxu0
      %695 = vmatprep.mubr.bf16.mxu0 0
      %696 = vmatmul.mubr.bf16.gmra.mrb[0].mxu0 %v479
      %v697 = vpop.f32.mrb[0].mxu0
      %v698 = vadd.f32 %v249, %v697
      %v699 = vpop.f32.mrb[0].mxu0
      %v700 = vpop.f32.mrb[0].mxu0
      %v701 = vadd.f32 %v249, %v700
      %v702 = vpop.f32.mrb[0].mxu0
      %703 = vmatprep.mubr.bf16.mxu0 0
      %704 = vmatmul.mubr.bf16.gmra.mrb[0].mxu0 %v482
      %v705 = vpop.f32.mrb[0].mxu0
      %v706 = vadd.f32 %v249, %v705
      %v707 = vpop.f32.mrb[0].mxu0
      %v708 = vpop.f32.mrb[0].mxu0
      %v709 = vadd.f32 %v249, %v708
      %v710 = vpop.f32.mrb[0].mxu0
      %711 = vmatprep.mubr.bf16.mxu0 0
      %712 = vmatmul.mubr.bf16.gmra.mrb[0].mxu0 %v485
      %v713 = vpop.f32.mrb[0].mxu0
      %v714 = vadd.f32 %v249, %v713
      %v715 = vpop.f32.mrb[0].mxu0
      %v716 = vpop.f32.mrb[0].mxu0
      %v717 = vadd.f32 %v249, %v716
      %v718 = vpop.f32.mrb[0].mxu0
      %719 = vmatprep.mubr.bf16.mxu0 0
      %720 = vmatmul.mubr.bf16.gmra.mrb[0].mxu0 %v488
      %v721 = vpop.f32.mrb[0].mxu0
      %v722 = vadd.f32 %v249, %v721
      %v723 = vpop.f32.mrb[0].mxu0
      %v724 = vpop.f32.mrb[0].mxu0
      %v725 = vadd.f32 %v249, %v724
      %v726 = vpop.f32.mrb[0].mxu0
      %727 = vmatprep.mubr.bf16.mxu0 0
      %728 = vmatmul.mubr.bf16.gmra.mrb[0].mxu0 %v491
      %v729 = vpop.f32.mrb[0].mxu0
      %v730 = vadd.f32 %v249, %v729
      %v731 = vpop.f32.mrb[0].mxu0
      %v732 = vpop.f32.mrb[0].mxu0
      %v733 = vadd.f32 %v249, %v732
      %v734 = vpop.f32.mrb[0].mxu0
      %735 = vmatprep.mubr.bf16.mxu0 0
      %736 = vmatmul.mubr.bf16.gmra.mrb[0].mxu0 %v494
      %v737 = vpop.f32.mrb[0].mxu0
      %v738 = vadd.f32 %v249, %v737
      %v739 = vpop.f32.mrb[0].mxu0
      %v740 = vpop.f32.mrb[0].mxu0
      %v741 = vadd.f32 %v249, %v740
      %v742 = vpop.f32.mrb[0].mxu0
      %743 = vmatprep.mubr.bf16.mxu0 0
      %744 = vmatmul.mubr.bf16.gmra.mrb[0].mxu0 %v497
      %v745 = vpop.f32.mrb[0].mxu0
      %v746 = vadd.f32 %v249, %v745
      %v747 = vpop.f32.mrb[0].mxu0
      %v748 = vpop.f32.mrb[0].mxu0
      %v749 = vadd.f32 %v249, %v748
      %v750 = vpop.f32.mrb[0].mxu0
      %751 = vmatprep.mubr.bf16.mxu0 0
      %752 = vmatmul.mubr.bf16.gmra.mrb[0].mxu0 %v500
      %v753 = vpop.f32.mrb[0].mxu0
      %v754 = vadd.f32 %v249, %v753
      %v755 = vpop.f32.mrb[0].mxu0
      %v756 = vpop.f32.mrb[0].mxu0
      %v757 = vadd.f32 %v249, %v756
      %v758 = vpop.f32.mrb[0].mxu0
      %759 = vmatprep.mubr.bf16.mxu0 0
      %760 = vmatmul.mubr.bf16.gmra.mrb[0].mxu0 %v503
      %v761 = vpop.f32.mrb[0].mxu0
      %v762 = vadd.f32 %v249, %v761
      %v763 = vpop.f32.mrb[0].mxu0
      %v764 = vpop.f32.mrb[0].mxu0
      %v765 = vadd.f32 %v249, %v764
      %v766 = vpop.f32.mrb[0].mxu0
      %767 = vmatprep.mubr.bf16.mxu0 0
      %768 = vmatmul.mubr.bf16.gmra.mrb[0].mxu0 %v506
      %v769 = vpop.f32.mrb[0].mxu0
      %v770 = vadd.f32 %v249, %v769
      %v771 = vpop.f32.mrb[0].mxu0
      %v772 = vpop.f32.mrb[0].mxu0
      %v773 = vadd.f32 %v249, %v772
      %v774 = vpop.f32.mrb[0].mxu0
      %775 = vmatprep.mubr.bf16.mxu0 0
      %776 = vmatmul.mubr.bf16.gmra.mrb[0].mxu0 %v509
      %v777 = vpop.f32.mrb[0].mxu0
      %v778 = vadd.f32 %v249, %v777
      %v779 = vpop.f32.mrb[0].mxu0
      %v780 = vpop.f32.mrb[0].mxu0
      %v781 = vadd.f32 %v249, %v780
      %v782 = vpop.f32.mrb[0].mxu0
      %783 = vmatprep.mubr.bf16.mxu0 0
      %784 = vmatmul.mubr.bf16.gmra.mrb[0].mxu0 %v512
      %v785 = vpop.f32.mrb[0].mxu0
      %v786 = vadd.f32 %v249, %v785
      %v787 = vpop.f32.mrb[0].mxu0
      %v788 = vpop.f32.mrb[0].mxu0
      %v789 = vadd.f32 %v249, %v788
      %v790 = vpop.f32.mrb[0].mxu0
      %791 = vmatprep.mubr.bf16.mxu0 0
      %792 = vmatmul.mubr.bf16.gmra.mrb[0].mxu0 %v515
      %v793 = vpop.f32.mrb[0].mxu0
      %v794 = vadd.f32 %v249, %v793
      %v795 = vpop.f32.mrb[0].mxu0
      %v796 = vpop.f32.mrb[0].mxu0
      %v797 = vadd.f32 %v249, %v796
      %v798 = vpop.f32.mrb[0].mxu0
      %799 = vmatprep.mubr.bf16.mxu0 0
      %800 = vmatmul.mubr.bf16.gmra.mrb[0].mxu0 %v518
      %v801 = vpop.f32.mrb[0].mxu0
      %v802 = vadd.f32 %v249, %v801
      %v803 = vpop.f32.mrb[0].mxu0
      %v804 = vpop.f32.mrb[0].mxu0
      %v805 = vadd.f32 %v249, %v804
      %v806 = vpop.f32.mrb[0].mxu0
      %807 = vmatprep.mubr.bf16.mxu0 0
      %808 = vmatmul.mubr.bf16.gmra.mrb[0].mxu0 %v521
      %v809 = vpop.f32.mrb[0].mxu0
      %v810 = vadd.f32 %v249, %v809
      %v811 = vpop.f32.mrb[0].mxu0
      %v812 = vpop.f32.mrb[0].mxu0
      %v813 = vadd.f32 %v249, %v812
      %v814 = vpop.f32.mrb[0].mxu0
      %815 = vdwg.mxu0
      %v816 = vmax.f32 %v562, 0.0
      %v817 = vmax.f32 %v565, 0.0
      %v818 = vmax.f32 %v570, 0.0
      %v819 = vmax.f32 %v573, 0.0
      %v820 = vmax.f32 %v578, 0.0
      %v821 = vmax.f32 %v581, 0.0
      %v822 = vmax.f32 %v586, 0.0
      %v823 = vmax.f32 %v589, 0.0
      %v824 = vmax.f32 %v594, 0.0
      %v825 = vmax.f32 %v597, 0.0
      %v826 = vmax.f32 %v602, 0.0
      %v827 = vmax.f32 %v605, 0.0
      %v828 = vmax.f32 %v610, 0.0
      %v829 = vmax.f32 %v613, 0.0
      %v830 = vmax.f32 %v618, 0.0
      %v831 = vmax.f32 %v621, 0.0
      %v832 = vmax.f32 %v626, 0.0
      %v833 = vmax.f32 %v629, 0.0
      %v834 = vmax.f32 %v634, 0.0
      %v835 = vmax.f32 %v637, 0.0
      %v836 = vmax.f32 %v642, 0.0
      %v837 = vmax.f32 %v645, 0.0
      %v838 = vmax.f32 %v650, 0.0
      %v839 = vmax.f32 %v653, 0.0
      %v840 = vmax.f32 %v658, 0.0
      %v841 = vmax.f32 %v661, 0.0
      %v842 = vmax.f32 %v666, 0.0
      %v843 = vmax.f32 %v669, 0.0
      %v844 = vmax.f32 %v674, 0.0
      %v845 = vmax.f32 %v677, 0.0
      %v846 = vmax.f32 %v682, 0.0
      %v847 = vmax.f32 %v685, 0.0
      %v848 = vmax.f32 %v690, 0.0
      %v849 = vmax.f32 %v693, 0.0
      %v850 = vmax.f32 %v698, 0.0
      %v851 = vmax.f32 %v701, 0.0
      %v852 = vmax.f32 %v706, 0.0
      %v853 = vmax.f32 %v709, 0.0
      %v854 = vmax.f32 %v714, 0.0
      %v855 = vmax.f32 %v717, 0.0
      %v856 = vmax.f32 %v722, 0.0
      %v857 = vmax.f32 %v725, 0.0
      %v858 = vmax.f32 %v730, 0.0
      %v859 = vmax.f32 %v733, 0.0
      %v860 = vmax.f32 %v738, 0.0
      %v861 = vmax.f32 %v741, 0.0
      %v862 = vmax.f32 %v746, 0.0
      %v863 = vmax.f32 %v749, 0.0
      %v864 = vmax.f32 %v754, 0.0
      %v865 = vmax.f32 %v757, 0.0
      %v866 = vmax.f32 %v762, 0.0
      %v867 = vmax.f32 %v765, 0.0
      %v868 = vmax.f32 %v770, 0.0
      %v869 = vmax.f32 %v773, 0.0
      %v870 = vmax.f32 %v778, 0.0
      %v871 = vmax.f32 %v781, 0.0
      %v872 = vmax.f32 %v786, 0.0
      %v873 = vmax.f32 %v789, 0.0
      %v874 = vmax.f32 %v794, 0.0
      %v875 = vmax.f32 %v797, 0.0
      %v876 = vmax.f32 %v802, 0.0
      %v877 = vmax.f32 %v805, 0.0
      %v878 = vmax.f32 %v810, 0.0
      %v879 = vmax.f32 %v813, 0.0
      %vm880 = vcmask 15360
      %881 = vst.msk [vmem:[%s172] sm:$0xff] %vm880, %v816
      %882 = vst.msk [vmem:[%s172 + $0x8] sm:$0xff] %vm880, %v817
      %883 = vst.msk [vmem:[%s172 + $0x10] sm:$0xff] %vm880, %v818
      %884 = vst.msk [vmem:[%s172 + $0x18] sm:$0xff] %vm880, %v819
      %885 = vst.msk [vmem:[%s172 + $0x20] sm:$0xff] %vm880, %v820
      %886 = vst.msk [vmem:[%s172 + $0x28] sm:$0xff] %vm880, %v821
      %887 = vst.msk [vmem:[%s172 + $0x30] sm:$0xff] %vm880, %v822
      %888 = vst.msk [vmem:[%s172 + $0x38] sm:$0xff] %vm880, %v823
      %889 = vst.msk [vmem:[%s172 + $0x40] sm:$0xff] %vm880, %v824
      %890 = vst.msk [vmem:[%s172 + $0x48] sm:$0xff] %vm880, %v825
      %891 = vst.msk [vmem:[%s172 + $0x50] sm:$0xff] %vm880, %v826
      %892 = vst.msk [vmem:[%s172 + $0x58] sm:$0xff] %vm880, %v827
      %893 = vst.msk [vmem:[%s172 + $0x60] sm:$0xff] %vm880, %v828
      %894 = vst.msk [vmem:[%s172 + $0x68] sm:$0xff] %vm880, %v829
      %895 = vst.msk [vmem:[%s172 + $0x70] sm:$0xff] %vm880, %v830
      %896 = vst.msk [vmem:[%s172 + $0x78] sm:$0xff] %vm880, %v831
      %897 = vst.msk [vmem:[%s172 + $0x80] sm:$0xff] %vm880, %v832
      %898 = vst.msk [vmem:[%s172 + $0x88] sm:$0xff] %vm880, %v833
      %899 = vst.msk [vmem:[%s172 + $0x90] sm:$0xff] %vm880, %v834
      %900 = vst.msk [vmem:[%s172 + $0x98] sm:$0xff] %vm880, %v835
      %901 = vst.msk [vmem:[%s172 + $0xa0] sm:$0xff] %vm880, %v836
      %902 = vst.msk [vmem:[%s172 + $0xa8] sm:$0xff] %vm880, %v837
      %903 = vst.msk [vmem:[%s172 + $0xb0] sm:$0xff] %vm880, %v838
      %904 = vst.msk [vmem:[%s172 + $0xb8] sm:$0xff] %vm880, %v839
      %905 = vst.msk [vmem:[%s172 + $0xc0] sm:$0xff] %vm880, %v840
      %906 = vst.msk [vmem:[%s172 + $0xc8] sm:$0xff] %vm880, %v841
      %907 = vst.msk [vmem:[%s172 + $0xd0] sm:$0xff] %vm880, %v842
      %908 = vst.msk [vmem:[%s172 + $0xd8] sm:$0xff] %vm880, %v843
      %909 = vst.msk [vmem:[%s172 + $0xe0] sm:$0xff] %vm880, %v844
      %910 = vst.msk [vmem:[%s172 + $0xe8] sm:$0xff] %vm880, %v845
      %911 = vst.msk [vmem:[%s172 + $0xf0] sm:$0xff] %vm880, %v846
      %912 = vst.msk [vmem:[%s172 + $0xf8] sm:$0xff] %vm880, %v847
      %913 = vst.msk [vmem:[%s172 + $0x100] sm:$0xff] %vm880, %v848
      %914 = vst.msk [vmem:[%s172 + $0x108] sm:$0xff] %vm880, %v849
      %915 = vst.msk [vmem:[%s172 + $0x110] sm:$0xff] %vm880, %v850
      %916 = vst.msk [vmem:[%s172 + $0x118] sm:$0xff] %vm880, %v851
      %917 = vst.msk [vmem:[%s172 + $0x120] sm:$0xff] %vm880, %v852
      %918 = vst.msk [vmem:[%s172 + $0x128] sm:$0xff] %vm880, %v853
      %919 = vst.msk [vmem:[%s172 + $0x130] sm:$0xff] %vm880, %v854
      %920 = vst.msk [vmem:[%s172 + $0x138] sm:$0xff] %vm880, %v855
      %921 = vst.msk [vmem:[%s172 + $0x140] sm:$0xff] %vm880, %v856
      %922 = vst.msk [vmem:[%s172 + $0x148] sm:$0xff] %vm880, %v857
      %923 = vst.msk [vmem:[%s172 + $0x150] sm:$0xff] %vm880, %v858
      %924 = vst.msk [vmem:[%s172 + $0x158] sm:$0xff] %vm880, %v859
      %925 = vst.msk [vmem:[%s172 + $0x160] sm:$0xff] %vm880, %v860
      %926 = vst.msk [vmem:[%s172 + $0x168] sm:$0xff] %vm880, %v861
      %927 = vst.msk [vmem:[%s172 + $0x170] sm:$0xff] %vm880, %v862
      %928 = vst.msk [vmem:[%s172 + $0x178] sm:$0xff] %vm880, %v863
      %929 = vst.msk [vmem:[%s172 + $0x180] sm:$0xff] %vm880, %v864
      %930 = vst.msk [vmem:[%s172 + $0x188] sm:$0xff] %vm880, %v865
      %931 = vst.msk [vmem:[%s172 + $0x190] sm:$0xff] %vm880, %v866
      %932 = vst.msk [vmem:[%s172 + $0x198] sm:$0xff] %vm880, %v867
      %933 = vst.msk [vmem:[%s172 + $0x1a0] sm:$0xff] %vm880, %v868
      %934 = vst.msk [vmem:[%s172 + $0x1a8] sm:$0xff] %vm880, %v869
      %935 = vst.msk [vmem:[%s172 + $0x1b0] sm:$0xff] %vm880, %v870
      %936 = vst.msk [vmem:[%s172 + $0x1b8] sm:$0xff] %vm880, %v871
      %937 = vst.msk [vmem:[%s172 + $0x1c0] sm:$0xff] %vm880, %v872
      %938 = vst.msk [vmem:[%s172 + $0x1c8] sm:$0xff] %vm880, %v873
      %939 = vst.msk [vmem:[%s172 + $0x1d0] sm:$0xff] %vm880, %v874
      %940 = vst.msk [vmem:[%s172 + $0x1d8] sm:$0xff] %vm880, %v875
      %941 = vst.msk [vmem:[%s172 + $0x1e0] sm:$0xff] %vm880, %v876
      %942 = vst.msk [vmem:[%s172 + $0x1e8] sm:$0xff] %vm880, %v877
      %943 = vst.msk [vmem:[%s172 + $0x1f0] sm:$0xff] %vm880, %v878
      %944 = vst.msk [vmem:[%s172 + $0x1f8] sm:$0xff] %vm880, %v879
      %s945 = smul.u32 64, %s14
      %p946 = scmp.lt.s32.totalorder %s945, 127
      %s947 = scalar_select %p946, %s945, 127
      %s948 = smul.addr %s947, 8
      %s949 = scalar_lea.vmem %s3, %s948
      // Predicated region
      $region33: #{decoder_forward.10} parent=31 // pred_check
        %p950 = pneg %p100
      $region34: #{decoder_forward.10} parent=31 // pred_check_branch
        %952 = sbr.rel (%p950) target = $region36
      $region35: #{decoder_forward.10} parent=31 // pred_region
        %s953 = smul.u32 64, %s14
      $region36: #{decoder_forward.10} parent=31 // pred_fallthru
        _
    $region32: #{decoder_forward.10} parent=5 // pred_fallthru
      _
    %p954 = scmp.le.s32.totalorder 2, %s9
    // Predicated region
    $region37: #{decoder_forward.10} parent=5 // pred_check
      %p955 = pneg %p954
    $region38: #{decoder_forward.10} parent=5 // pred_check_branch
      %957 = sbr.rel (%p955) target = $region40
    $region39: #{decoder_forward.10} parent=5 // pred_region
      %s958 = ssub.s32 %s9, 2
      // Predicated region
      $region41: #{decoder_forward.10} parent=39 // pred_check
        %p959 = pneg %p106
      $region42: #{decoder_forward.10} parent=39 // pred_check_branch
        %961 = sbr.rel (%p959) target = $region44
      $region43: #{decoder_forward.10} parent=39 // pred_region
        %s962 = smul.u32 64, %s15
        %p963 = scmp.lt.s32.totalorder %s962, 127
        %s964 = scalar_select %p963, %s962, 127
        %s965 = smul.addr %s964, 8
        %s966 = scalar_lea.vmem %s3, %s965
      $region44: #{decoder_forward.10} parent=39 // pred_fallthru
        _
    $region40: #{decoder_forward.10} parent=5 // pred_fallthru
      _
  $region6: #{decoder_forward.10} parent=0 // loop_footer
    %s13 = sadd.s32 1, %s9
  $region7: #{decoder_forward.10} parent=0 // loop_footer_branch
    %8 = sbr.rel target = $region3
  $region8: #{decoder_forward.10} parent=0 // loop_exit
    _

// kernel: decoder_forward.11
$region0: #{decoder_forward.11}
  #allocation0 [shape = 'u32[]', space=smem, size = 0x4, offset = 0x4, fixed_abs, tag = 'smem constant byte address 0x4 - core index']
  #allocation1 [shape = 'u32[144,128]{1,0:T(1,128)}', space=vmem, size = 0x12000, scoped, tag = 'internal scratch']
  %s0 = inlined_call_operand.vmem [shape: bf16[1024,18], index: 0, kind: input, shape index: {}]
  %s1 = inlined_call_operand.vmem [shape: bf16[18,2], index: 1, kind: input, shape index: {}]
  %s2 = inlined_call_operand.vmem [shape: f32[1,2], index: 2, kind: input, shape index: {}]
  %s3 = inlined_call_operand.vmem [shape: f32[1024,2], index: 3, kind: output, shape index: {}]
  %s4 = sld [smem:[#allocation0]]
  $region45: #{decoder_forward.11} parent=0
    _
  %s6 = ssub.s32 1, %s4
  %s7 = scalar_select 0, %s6, %s4
  loop: start=0, step=1, limit=4
  $region2: #{decoder_forward.11} parent=0 // loop_pre_header
    _
  $region3: #{decoder_forward.11} parent=0 // loop_header
    %s9 = sphi 0, %s13
    %p10 = scmp.ge.s32.totalorder %s9, 4
    %s19 = sphi 0, %s21
    %s22 = sphi 0, %s19
    %s23 = sphi 0, %s22
    %s39 = sphi 0, %s23
    %s43 = sphi 0, %s43
    %s45 = sphi 0, %s43
    %s46 = sphi 0, %s45
    %s60 = sphi 0, %s46
    %s64 = sphi 0, %s64
    %s66 = sphi 0, %s64
    %s67 = sphi 0, %s66
    %s81 = sphi 0, %s67
    %s87 = sphi 0, %s89
    %s90 = sphi 0, %s87
    %s91 = sphi 0, %s90
    %s107 = sphi 0, %s91
  $region4: #{decoder_forward.11} parent=0 // loop_header_branch
    %12 = sbr.rel (%p10) target = $region8
  $region5: #{decoder_forward.11} parent=0 // loop_body
    %s14 = ssub.s32 %s9, 1
    %s15 = ssub.s32 %s9, 2
    %s16 = sadd.s32 %s9, 1
    %s17 = ssub.s32 %s9, %s16
    %p18 = scmp.eq.s32.totalorder %s17, 0
    %s20 = sadd.s32 %s19, 1
    %s21 = scalar_select %p18, %s19, %s20
    %p24 = pneg %p18
    %p25 = scmp.eq.s32.totalorder %s9, 1
    %p26 = por %p24, %p25
    %p27 = scmp.ne.s32.totalorder %s19, %s22
    %p28 = scmp.eq.s32.totalorder %s9, 0
    %p29 = por %p27, %p28
    %p30 = scmp.ne.s32.totalorder %s19, %s22
    %p31 = scmp.eq.s32.totalorder %s14, 1
    %p32 = por %p30, %p31
    %p33 = scmp.ne.s32.totalorder %s22, %s23
    %p34 = scmp.eq.s32.totalorder %s14, 0
    %p35 = por %p33, %p34
    %p36 = scmp.ne.s32.totalorder %s22, %s23
    %p37 = scmp.eq.s32.totalorder %s15, 1
    %p38 = por %p36, %p37
    %p40 = scmp.ne.s32.totalorder %s23, %s39
    %p41 = scmp.eq.s32.totalorder %s15, 0
    %p42 = por %p40, %p41
    %s44 = sadd.s32 %s43, 1
    %p47 = scmp.eq.s32.totalorder %s9, 1
    %p48 = scmp.ne.s32.totalorder %s43, %s45
    %p49 = scmp.eq.s32.totalorder %s9, 0
    %p50 = por %p48, %p49
    %p51 = scmp.ne.s32.totalorder %s43, %s45
    %p52 = scmp.eq.s32.totalorder %s14, 1
    %p53 = por %p51, %p52
    %p54 = scmp.ne.s32.totalorder %s45, %s46
    %p55 = scmp.eq.s32.totalorder %s14, 0
    %p56 = por %p54, %p55
    %p57 = scmp.ne.s32.totalorder %s45, %s46
    %p58 = scmp.eq.s32.totalorder %s15, 1
    %p59 = por %p57, %p58
    %p61 = scmp.ne.s32.totalorder %s46, %s60
    %p62 = scmp.eq.s32.totalorder %s15, 0
    %p63 = por %p61, %p62
    %s65 = sadd.s32 %s64, 1
    %p68 = scmp.eq.s32.totalorder %s9, 1
    %p69 = scmp.ne.s32.totalorder %s64, %s66
    %p70 = scmp.eq.s32.totalorder %s9, 0
    %p71 = por %p69, %p70
    %p72 = scmp.ne.s32.totalorder %s64, %s66
    %p73 = scmp.eq.s32.totalorder %s14, 1
    %p74 = por %p72, %p73
    %p75 = scmp.ne.s32.totalorder %s66, %s67
    %p76 = scmp.eq.s32.totalorder %s14, 0
    %p77 = por %p75, %p76
    %p78 = scmp.ne.s32.totalorder %s66, %s67
    %p79 = scmp.eq.s32.totalorder %s15, 1
    %p80 = por %p78, %p79
    %p82 = scmp.ne.s32.totalorder %s67, %s81
    %p83 = scmp.eq.s32.totalorder %s15, 0
    %p84 = por %p82, %p83
    %s85 = ssub.s32 %s9, %s16
    %p86 = scmp.eq.s32.totalorder %s85, 0
    %s88 = sadd.s32 %s87, 1
    %s89 = scalar_select %p86, %s87, %s88
    %p92 = pneg %p86
    %p93 = scmp.eq.s32.totalorder %s9, 1
    %p94 = por %p92, %p93
    %p95 = scmp.ne.s32.totalorder %s87, %s90
    %p96 = scmp.eq.s32.totalorder %s9, 0
    %p97 = por %p95, %p96
    %p98 = scmp.ne.s32.totalorder %s87, %s90
    %p99 = scmp.eq.s32.totalorder %s14, 1
    %p100 = por %p98, %p99
    %p101 = scmp.ne.s32.totalorder %s90, %s91
    %p102 = scmp.eq.s32.totalorder %s14, 0
    %p103 = por %p101, %p102
    %p104 = scmp.ne.s32.totalorder %s90, %s91
    %p105 = scmp.eq.s32.totalorder %s15, 1
    %p106 = por %p104, %p105
    %p108 = scmp.ne.s32.totalorder %s91, %s107
    %p109 = scmp.eq.s32.totalorder %s15, 0
    %p110 = por %p108, %p109
    %p111 = scmp.le.s32.totalorder 1, %s9
    %p112 = scmp.lt.s32.totalorder %s9, 3
    %p113 = pnand %p111, %p112
    %p114 = pneg %p113
    // Predicated region
    $region9: #{decoder_forward.11} parent=5 // pred_check
      _
    $region10: #{decoder_forward.11} parent=5 // pred_check_branch
      %116 = sbr.rel (%p113) target = $region12
    $region11: #{decoder_forward.11} parent=5 // pred_region
      %s117 = ssub.s32 %s9, 1
      // Predicated region
      $region13: #{decoder_forward.11} parent=11 // pred_check
        %p118 = pneg %p56
      $region14: #{decoder_forward.11} parent=11 // pred_check_branch
        %120 = sbr.rel (%p118) target = $region16
      $region15: #{decoder_forward.11} parent=11 // pred_region
        _
      $region16: #{decoder_forward.11} parent=11 // pred_fallthru
        _
      // Predicated region
      $region17: #{decoder_forward.11} parent=11 // pred_check
        %p121 = pneg %p77
      $region18: #{decoder_forward.11} parent=11 // pred_check_branch
        %123 = sbr.rel (%p121) target = $region20
      $region19: #{decoder_forward.11} parent=11 // pred_region
        _
      $region20: #{decoder_forward.11} parent=11 // pred_fallthru
        _
    $region12: #{decoder_forward.11} parent=5 // pred_fallthru
      _
    %p124 = scmp.lt.s32.totalorder %s9, 2
    // Predicated region
    $region21: #{decoder_forward.11} parent=5 // pred_check
      %p125 = pneg %p124
    $region22: #{decoder_forward.11} parent=5 // pred_check_branch
      %127 = sbr.rel (%p125) target = $region24
    $region23: #{decoder_forward.11} parent=5 // pred_region
      // Predicated region
      $region25: #{decoder_forward.11} parent=23 // pred_check
        %p128 = pneg %p29
      $region26: #{decoder_forward.11} parent=23 // pred_check_branch
        %130 = sbr.rel (%p128) target = $region28
      $region27: #{decoder_forward.11} parent=23 // pred_region
        %s131 = smul.u32 64, %s9
        %p132 = scmp.lt.s32.totalorder %s131, 127
        %s133 = scalar_select %p132, %s131, 127
        %s134 = smul.addr %s133, 4
        %s135 = scalar_lea.vmem %s0, %s134
        %s136 = smul.u32 64, %s9
      $region28: #{decoder_forward.11} parent=23 // pred_fallthru
        _
    $region24: #{decoder_forward.11} parent=5 // pred_fallthru
      _
    %p137 = scmp.le.s32.totalorder 1, %s9
    %p138 = scmp.lt.s32.totalorder %s9, 3
    %p139 = pnand %p137, %p138
    %p140 = pneg %p139
    // Predicated region
    $region29: #{decoder_forward.11} parent=5 // pred_check
      _
    $region30: #{decoder_forward.11} parent=5 // pred_check_branch
      %142 = sbr.rel (%p139) target = $region32
    $region31: #{decoder_forward.11} parent=5 // pred_region
      %s143 = ssub.s32 %s9, 1
      %s144 = smul.u32 64, %s14
      %p145 = scmp.lt.s32.totalorder %s144, 127
      %s146 = scalar_select %p145, %s144, 127
      %s147 = smul.addr %s146, 4
      %s148 = scalar_lea.vmem %s0, %s147
      %p149 = pneg %p35
      %p150 = pneg %p32
      %p151 = pneg %p56
      %p152 = pneg %p53
      %p153 = pneg %p77
      %p154 = pneg %p74
      %p155 = pneg %p103
      %p156 = pneg %p100
      %s157 = smul.u32 64, %s14
      %p158 = scmp.lt.s32.totalorder %s157, 127
      %s159 = scalar_select %p158, %s157, 127
      %s160 = smul.addr %s159, 8
      %s161 = scalar_lea.vmem %s3, %s160
      %s162 = smul.u32 64, %s14
      %p163 = scmp.lt.s32.totalorder %s162, 127
      %s164 = scalar_select %p163, %s162, 127
      %s165 = smul.addr %s164, 4
      %s166 = scalar_lea.vmem %s0, %s165
      %s167 = smul.u32 64, %s14
      %s168 = smul.u32 64, %s14
      %p169 = scmp.lt.s32.totalorder %s168, 127
      %s170 = scalar_select %p169, %s168, 127
      %s171 = smul.addr %s170, 8
      %s172 = scalar_lea.vmem %s3, %s171
      %s173 = smul.u32 64, %s14
      %v175 = vld [vmem:[%s166] sm:$0xf]
      %v176 = vld [vmem:[%s166 + $0x4] sm:$0xf]
      %v177 = vld [vmem:[%s166 + $0x8] sm:$0xf]
      %v178 = vld [vmem:[%s166 + $0xc] sm:$0xf]
      %v179 = vld [vmem:[%s166 + $0x10] sm:$0xf]
      %v180 = vld [vmem:[%s166 + $0x14] sm:$0xf]
      %v181 = vld [vmem:[%s166 + $0x18] sm:$0xf]
      %v182 = vld [vmem:[%s166 + $0x1c] sm:$0xf]
      %v183 = vld [vmem:[%s166 + $0x20] sm:$0xf]
      %v184 = vld [vmem:[%s166 + $0x24] sm:$0xf]
      %v185 = vld [vmem:[%s166 + $0x28] sm:$0xf]
      %v186 = vld [vmem:[%s166 + $0x2c] sm:$0xf]
      %v187 = vld [vmem:[%s166 + $0x30] sm:$0xf]
      %v188 = vld [vmem:[%s166 + $0x34] sm:$0xf]
      %v189 = vld [vmem:[%s166 + $0x38] sm:$0xf]
      %v190 = vld [vmem:[%s166 + $0x3c] sm:$0xf]
      %v191 = vld [vmem:[%s166 + $0x40] sm:$0xf]
      %v192 = vld [vmem:[%s166 + $0x44] sm:$0xf]
      %v193 = vld [vmem:[%s166 + $0x48] sm:$0xf]
      %v194 = vld [vmem:[%s166 + $0x4c] sm:$0xf]
      %v195 = vld [vmem:[%s166 + $0x50] sm:$0xf]
      %v196 = vld [vmem:[%s166 + $0x54] sm:$0xf]
      %v197 = vld [vmem:[%s166 + $0x58] sm:$0xf]
      %v198 = vld [vmem:[%s166 + $0x5c] sm:$0xf]
      %v199 = vld [vmem:[%s166 + $0x60] sm:$0xf]
      %v200 = vld [vmem:[%s166 + $0x64] sm:$0xf]
      %v201 = vld [vmem:[%s166 + $0x68] sm:$0xf]
      %v202 = vld [vmem:[%s166 + $0x6c] sm:$0xf]
      %v203 = vld [vmem:[%s166 + $0x70] sm:$0xf]
      %v204 = vld [vmem:[%s166 + $0x74] sm:$0xf]
      %v205 = vld [vmem:[%s166 + $0x78] sm:$0xf]
      %v206 = vld [vmem:[%s166 + $0x7c] sm:$0xf]
      %v207 = vld [vmem:[%s166 + $0x80] sm:$0xf]
      %v208 = vld [vmem:[%s166 + $0x84] sm:$0xf]
      %v209 = vld [vmem:[%s166 + $0x88] sm:$0xf]
      %v210 = vld [vmem:[%s166 + $0x8c] sm:$0xf]
      %v211 = vld [vmem:[%s166 + $0x90] sm:$0xf]
      %v212 = vld [vmem:[%s166 + $0x94] sm:$0xf]
      %v213 = vld [vmem:[%s166 + $0x98] sm:$0xf]
      %v214 = vld [vmem:[%s166 + $0x9c] sm:$0xf]
      %v215 = vld [vmem:[%s166 + $0xa0] sm:$0xf]
      %v216 = vld [vmem:[%s166 + $0xa4] sm:$0xf]
      %v217 = vld [vmem:[%s166 + $0xa8] sm:$0xf]
      %v218 = vld [vmem:[%s166 + $0xac] sm:$0xf]
      %v219 = vld [vmem:[%s166 + $0xb0] sm:$0xf]
      %v220 = vld [vmem:[%s166 + $0xb4] sm:$0xf]
      %v221 = vld [vmem:[%s166 + $0xb8] sm:$0xf]
      %v222 = vld [vmem:[%s166 + $0xbc] sm:$0xf]
      %v223 = vld [vmem:[%s166 + $0xc0] sm:$0xf]
      %v224 = vld [vmem:[%s166 + $0xc4] sm:$0xf]
      %v225 = vld [vmem:[%s166 + $0xc8] sm:$0xf]
      %v226 = vld [vmem:[%s166 + $0xcc] sm:$0xf]
      %v227 = vld [vmem:[%s166 + $0xd0] sm:$0xf]
      %v228 = vld [vmem:[%s166 + $0xd4] sm:$0xf]
      %v229 = vld [vmem:[%s166 + $0xd8] sm:$0xf]
      %v230 = vld [vmem:[%s166 + $0xdc] sm:$0xf]
      %v231 = vld [vmem:[%s166 + $0xe0] sm:$0xf]
      %v232 = vld [vmem:[%s166 + $0xe4] sm:$0xf]
      %v233 = vld [vmem:[%s166 + $0xe8] sm:$0xf]
      %v234 = vld [vmem:[%s166 + $0xec] sm:$0xf]
      %v235 = vld [vmem:[%s166 + $0xf0] sm:$0xf]
      %v236 = vld [vmem:[%s166 + $0xf4] sm:$0xf]
      %v237 = vld [vmem:[%s166 + $0xf8] sm:$0xf]
      %v238 = vld [vmem:[%s166 + $0xfc] sm:$0xf]
      %v239 = vld [vmem:[%s1] sm:$0xf]
      %v240 = vld [vmem:[%s1 + $0x4] sm:$0xf]
      %v241 = vld [vmem:[%s1 + $0x8] sm:$0x1]
      %v242 = vld [vmem:[%s2] sm:$0x1]
      %v244 = vlaneseq
      %v245 = vshrl.u32 %v244, 7
      %v246 = vsub.s32 0, %v245
      %v247 = vrot.slane %v242, %v246
      %v313 = vunpack.c.l.b16 %v175
      %v314 = vunpack.c.l.b16 %v176
      %v315 = vunpack.c.l.b16 %v177
      %v316 = vunpack.c.l.b16 %v178
      %v317 = vunpack.c.l.b16 %v179
      %v318 = vunpack.c.l.b16 %v180
      %v319 = vunpack.c.l.b16 %v181
      %v320 = vunpack.c.l.b16 %v182
      %v321 = vunpack.c.l.b16 %v183
      %v322 = vunpack.c.l.b16 %v184
      %v323 = vunpack.c.l.b16 %v185
      %v324 = vunpack.c.l.b16 %v186
      %v325 = vunpack.c.l.b16 %v187
      %v326 = vunpack.c.l.b16 %v188
      %v327 = vunpack.c.l.b16 %v189
      %v328 = vunpack.c.l.b16 %v190
      %v329 = vunpack.c.l.b16 %v191
      %v330 = vunpack.c.l.b16 %v192
      %v331 = vunpack.c.l.b16 %v193
      %v332 = vunpack.c.l.b16 %v194
      %v333 = vunpack.c.l.b16 %v195
      %v334 = vunpack.c.l.b16 %v196
      %v335 = vunpack.c.l.b16 %v197
      %v336 = vunpack.c.l.b16 %v198
      %v337 = vunpack.c.l.b16 %v199
      %v338 = vunpack.c.l.b16 %v200
      %v339 = vunpack.c.l.b16 %v201
      %v340 = vunpack.c.l.b16 %v202
      %v341 = vunpack.c.l.b16 %v203
      %v342 = vunpack.c.l.b16 %v204
      %v343 = vunpack.c.l.b16 %v205
      %v344 = vunpack.c.l.b16 %v206
      %v345 = vunpack.c.l.b16 %v207
      %v346 = vunpack.c.l.b16 %v208
      %v347 = vunpack.c.l.b16 %v209
      %v348 = vunpack.c.l.b16 %v210
      %v349 = vunpack.c.l.b16 %v211
      %v350 = vunpack.c.l.b16 %v212
      %v351 = vunpack.c.l.b16 %v213
      %v352 = vunpack.c.l.b16 %v214
      %v353 = vunpack.c.l.b16 %v215
      %v354 = vunpack.c.l.b16 %v216
      %v355 = vunpack.c.l.b16 %v217
      %v356 = vunpack.c.l.b16 %v218
      %v357 = vunpack.c.l.b16 %v219
      %v358 = vunpack.c.l.b16 %v220
      %v359 = vunpack.c.l.b16 %v221
      %v360 = vunpack.c.l.b16 %v222
      %v361 = vunpack.c.l.b16 %v223
      %v362 = vunpack.c.l.b16 %v224
      %v363 = vunpack.c.l.b16 %v225
      %v364 = vunpack.c.l.b16 %v226
      %v365 = vunpack.c.l.b16 %v227
      %v366 = vunpack.c.l.b16 %v228
      %v367 = vunpack.c.l.b16 %v229
      %v368 = vunpack.c.l.b16 %v230
      %v369 = vunpack.c.l.b16 %v231
      %v370 = vunpack.c.l.b16 %v232
      %v371 = vunpack.c.l.b16 %v233
      %v372 = vunpack.c.l.b16 %v234
      %v373 = vunpack.c.l.b16 %v235
      %v374 = vunpack.c.l.b16 %v236
      %v375 = vunpack.c.l.b16 %v237
      %v376 = vunpack.c.l.b16 %v238
      %v377 = vpack.c.b16 %v314, %v313
      %v378 = vpack.c.b16 %v316, %v315
      %v379 = vpack.c.b16 %v318, %v317
      %v380 = vpack.c.b16 %v320, %v319
      %v381 = vpack.c.b16 %v322, %v321
      %v382 = vpack.c.b16 %v324, %v323
      %v383 = vpack.c.b16 %v326, %v325
      %v384 = vpack.c.b16 %v328, %v327
      %v385 = vpack.c.b16 %v330, %v329
      %v386 = vpack.c.b16 %v332, %v331
      %v387 = vpack.c.b16 %v334, %v333
      %v388 = vpack.c.b16 %v336, %v335
      %v389 = vpack.c.b16 %v338, %v337
      %v390 = vpack.c.b16 %v340, %v339
      %v391 = vpack.c.b16 %v342, %v341
      %v392 = vpack.c.b16 %v344, %v343
      %v393 = vpack.c.b16 %v346, %v345
      %v394 = vpack.c.b16 %v348, %v347
      %v395 = vpack.c.b16 %v350, %v349
      %v396 = vpack.c.b16 %v352, %v351
      %v397 = vpack.c.b16 %v354, %v353
      %v398 = vpack.c.b16 %v356, %v355
      %v399 = vpack.c.b16 %v358, %v357
      %v400 = vpack.c.b16 %v360, %v359
      %v401 = vpack.c.b16 %v362, %v361
      %v402 = vpack.c.b16 %v364, %v363
      %v403 = vpack.c.b16 %v366, %v365
      %v404 = vpack.c.b16 %v368, %v367
      %v405 = vpack.c.b16 %v370, %v369
      %v406 = vpack.c.b16 %v372, %v371
      %v407 = vpack.c.b16 %v374, %v373
      %v408 = vpack.c.b16 %v376, %v375
      %v412 = vunpack.c.l.b16 %v239
      %v413 = vunpack.c.l.b16 %v240
      %v414 = vunpack.c.l.b16 %v241
      %v415 = vpack.c.b16 %v413, %v412
      %v416 = vpack.c.b16 %v414, %v414
      %vm418 = vcmask 146432
      %v420 = vsel %vm418, %v377, 0
      %v423 = vsel %vm418, %v378, 0
      %v426 = vsel %vm418, %v379, 0
      %v429 = vsel %vm418, %v380, 0
      %v432 = vsel %vm418, %v381, 0
      %v435 = vsel %vm418, %v382, 0
      %v438 = vsel %vm418, %v383, 0
      %v441 = vsel %vm418, %v384, 0
      %v444 = vsel %vm418, %v385, 0
      %v447 = vsel %vm418, %v386, 0
      %v450 = vsel %vm418, %v387, 0
      %v453 = vsel %vm418, %v388, 0
      %v456 = vsel %vm418, %v389, 0
      %v459 = vsel %vm418, %v390, 0
      %v462 = vsel %vm418, %v391, 0
      %v465 = vsel %vm418, %v392, 0
      %v468 = vsel %vm418, %v393, 0
      %v471 = vsel %vm418, %v394, 0
      %v474 = vsel %vm418, %v395, 0
      %v477 = vsel %vm418, %v396, 0
      %v480 = vsel %vm418, %v397, 0
      %v483 = vsel %vm418, %v398, 0
      %v486 = vsel %vm418, %v399, 0
      %v489 = vsel %vm418, %v400, 0
      %v492 = vsel %vm418, %v401, 0
      %v495 = vsel %vm418, %v402, 0
      %v498 = vsel %vm418, %v403, 0
      %v501 = vsel %vm418, %v404, 0
      %v504 = vsel %vm418, %v405, 0
      %v507 = vsel %vm418, %v406, 0
      %v510 = vsel %vm418, %v407, 0
      %v513 = vsel %vm418, %v408, 0
      %vm515 = vcmask 1040384
      %v517 = vsel %vm515, %v416, 0
      %519 = vmatprep.subr.bf16.mxu0 0
      %520 = vmatpush1.bf16.msra.mxu0 %v415
      %521 = vmatprep.subr.bf16.mxu0 0
      %522 = vmatpush1.bf16.msra.mxu0 %v517
      %523 = vmatprep.subr.bf16.mxu0 0
      %524 = vmatpush1.bf16.msra.mxu0 0
      %525 = vmatprep.subr.bf16.mxu0 0
      %526 = vmatpush1.bf16.msra.mxu0 0
      %527 = vmatprep.subr.bf16.mxu0 0
      %528 = vmatpush1.bf16.msra.mxu0 0
      %529 = vmatprep.subr.bf16.mxu0 0
      %530 = vmatpush1.bf16.msra.mxu0 0
      %531 = vmatprep.subr.bf16.mxu0 0
      %532 = vmatpush1.bf16.msra.mxu0 0
      %533 = vmatprep.subr.bf16.mxu0 0
      %534 = vmatpush1.bf16.msra.mxu0 0
      %535 = vmatprep.subr.bf16.mxu0 0
      %536 = vmatpush1.bf16.msra.mxu0 0
      %537 = vmatprep.subr.bf16.mxu0 0
      %538 = vmatpush1.bf16.msra.mxu0 0
      %539 = vmatprep.subr.bf16.mxu0 0
      %540 = vmatpush1.bf16.msra.mxu0 0
      %541 = vmatprep.subr.bf16.mxu0 0
      %542 = vmatpush1.bf16.msra.mxu0 0
      %543 = vmatprep.subr.bf16.mxu0 0
      %544 = vmatpush1.bf16.msra.mxu0 0
      %545 = vmatprep.subr.bf16.mxu0 0
      %546 = vmatpush1.bf16.msra.mxu0 0
      %547 = vmatprep.subr.bf16.mxu0 0
      %548 = vmatpush1.bf16.msra.mxu0 0
      %549 = vmatprep.subr.bf16.mxu0 0
      %550 = vmatpush1.bf16.msra.mxu0 0
      %551 = vmatprep.mubr.bf16.mxu0 0
      %552 = vmatmul.mubr.bf16.gmra.mrb[0].mxu0 %v420
      %v553 = vpop.f32.mrb[0].mxu0
      %v554 = vadd.f32 %v247, %v553
      %v555 = vpop.f32.mrb[0].mxu0
      %v556 = vpop.f32.mrb[0].mxu0
      %v557 = vadd.f32 %v247, %v556
      %v558 = vpop.f32.mrb[0].mxu0
      %559 = vmatprep.mubr.bf16.mxu0 0
      %560 = vmatmul.mubr.bf16.gmra.mrb[0].mxu0 %v423
      %v561 = vpop.f32.mrb[0].mxu0
      %v562 = vadd.f32 %v247, %v561
      %v563 = vpop.f32.mrb[0].mxu0
      %v564 = vpop.f32.mrb[0].mxu0
      %v565 = vadd.f32 %v247, %v564
      %v566 = vpop.f32.mrb[0].mxu0
      %567 = vmatprep.mubr.bf16.mxu0 0
      %568 = vmatmul.mubr.bf16.gmra.mrb[0].mxu0 %v426
      %v569 = vpop.f32.mrb[0].mxu0
      %v570 = vadd.f32 %v247, %v569
      %v571 = vpop.f32.mrb[0].mxu0
      %v572 = vpop.f32.mrb[0].mxu0
      %v573 = vadd.f32 %v247, %v572
      %v574 = vpop.f32.mrb[0].mxu0
      %575 = vmatprep.mubr.bf16.mxu0 0
      %576 = vmatmul.mubr.bf16.gmra.mrb[0].mxu0 %v429
      %v577 = vpop.f32.mrb[0].mxu0
      %v578 = vadd.f32 %v247, %v577
      %v579 = vpop.f32.mrb[0].mxu0
      %v580 = vpop.f32.mrb[0].mxu0
      %v581 = vadd.f32 %v247, %v580
      %v582 = vpop.f32.mrb[0].mxu0
      %583 = vmatprep.mubr.bf16.mxu0 0
      %584 = vmatmul.mubr.bf16.gmra.mrb[0].mxu0 %v432
      %v585 = vpop.f32.mrb[0].mxu0
      %v586 = vadd.f32 %v247, %v585
      %v587 = vpop.f32.mrb[0].mxu0
      %v588 = vpop.f32.mrb[0].mxu0
      %v589 = vadd.f32 %v247, %v588
      %v590 = vpop.f32.mrb[0].mxu0
      %591 = vmatprep.mubr.bf16.mxu0 0
      %592 = vmatmul.mubr.bf16.gmra.mrb[0].mxu0 %v435
      %v593 = vpop.f32.mrb[0].mxu0
      %v594 = vadd.f32 %v247, %v593
      %v595 = vpop.f32.mrb[0].mxu0
      %v596 = vpop.f32.mrb[0].mxu0
      %v597 = vadd.f32 %v247, %v596
      %v598 = vpop.f32.mrb[0].mxu0
      %599 = vmatprep.mubr.bf16.mxu0 0
      %600 = vmatmul.mubr.bf16.gmra.mrb[0].mxu0 %v438
      %v601 = vpop.f32.mrb[0].mxu0
      %v602 = vadd.f32 %v247, %v601
      %v603 = vpop.f32.mrb[0].mxu0
      %v604 = vpop.f32.mrb[0].mxu0
      %v605 = vadd.f32 %v247, %v604
      %v606 = vpop.f32.mrb[0].mxu0
      %607 = vmatprep.mubr.bf16.mxu0 0
      %608 = vmatmul.mubr.bf16.gmra.mrb[0].mxu0 %v441
      %v609 = vpop.f32.mrb[0].mxu0
      %v610 = vadd.f32 %v247, %v609
      %v611 = vpop.f32.mrb[0].mxu0
      %v612 = vpop.f32.mrb[0].mxu0
      %v613 = vadd.f32 %v247, %v612
      %v614 = vpop.f32.mrb[0].mxu0
      %615 = vmatprep.mubr.bf16.mxu0 0
      %616 = vmatmul.mubr.bf16.gmra.mrb[0].mxu0 %v444
      %v617 = vpop.f32.mrb[0].mxu0
      %v618 = vadd.f32 %v247, %v617
      %v619 = vpop.f32.mrb[0].mxu0
      %v620 = vpop.f32.mrb[0].mxu0
      %v621 = vadd.f32 %v247, %v620
      %v622 = vpop.f32.mrb[0].mxu0
      %623 = vmatprep.mubr.bf16.mxu0 0
      %624 = vmatmul.mubr.bf16.gmra.mrb[0].mxu0 %v447
      %v625 = vpop.f32.mrb[0].mxu0
      %v626 = vadd.f32 %v247, %v625
      %v627 = vpop.f32.mrb[0].mxu0
      %v628 = vpop.f32.mrb[0].mxu0
      %v629 = vadd.f32 %v247, %v628
      %v630 = vpop.f32.mrb[0].mxu0
      %631 = vmatprep.mubr.bf16.mxu0 0
      %632 = vmatmul.mubr.bf16.gmra.mrb[0].mxu0 %v450
      %v633 = vpop.f32.mrb[0].mxu0
      %v634 = vadd.f32 %v247, %v633
      %v635 = vpop.f32.mrb[0].mxu0
      %v636 = vpop.f32.mrb[0].mxu0
      %v637 = vadd.f32 %v247, %v636
      %v638 = vpop.f32.mrb[0].mxu0
      %639 = vmatprep.mubr.bf16.mxu0 0
      %640 = vmatmul.mubr.bf16.gmra.mrb[0].mxu0 %v453
      %v641 = vpop.f32.mrb[0].mxu0
      %v642 = vadd.f32 %v247, %v641
      %v643 = vpop.f32.mrb[0].mxu0
      %v644 = vpop.f32.mrb[0].mxu0
      %v645 = vadd.f32 %v247, %v644
      %v646 = vpop.f32.mrb[0].mxu0
      %647 = vmatprep.mubr.bf16.mxu0 0
      %648 = vmatmul.mubr.bf16.gmra.mrb[0].mxu0 %v456
      %v649 = vpop.f32.mrb[0].mxu0
      %v650 = vadd.f32 %v247, %v649
      %v651 = vpop.f32.mrb[0].mxu0
      %v652 = vpop.f32.mrb[0].mxu0
      %v653 = vadd.f32 %v247, %v652
      %v654 = vpop.f32.mrb[0].mxu0
      %655 = vmatprep.mubr.bf16.mxu0 0
      %656 = vmatmul.mubr.bf16.gmra.mrb[0].mxu0 %v459
      %v657 = vpop.f32.mrb[0].mxu0
      %v658 = vadd.f32 %v247, %v657
      %v659 = vpop.f32.mrb[0].mxu0
      %v660 = vpop.f32.mrb[0].mxu0
      %v661 = vadd.f32 %v247, %v660
      %v662 = vpop.f32.mrb[0].mxu0
      %663 = vmatprep.mubr.bf16.mxu0 0
      %664 = vmatmul.mubr.bf16.gmra.mrb[0].mxu0 %v462
      %v665 = vpop.f32.mrb[0].mxu0
      %v666 = vadd.f32 %v247, %v665
      %v667 = vpop.f32.mrb[0].mxu0
      %v668 = vpop.f32.mrb[0].mxu0
      %v669 = vadd.f32 %v247, %v668
      %v670 = vpop.f32.mrb[0].mxu0
      %671 = vmatprep.mubr.bf16.mxu0 0
      %672 = vmatmul.mubr.bf16.gmra.mrb[0].mxu0 %v465
      %v673 = vpop.f32.mrb[0].mxu0
      %v674 = vadd.f32 %v247, %v673
      %v675 = vpop.f32.mrb[0].mxu0
      %v676 = vpop.f32.mrb[0].mxu0
      %v677 = vadd.f32 %v247, %v676
      %v678 = vpop.f32.mrb[0].mxu0
      %679 = vmatprep.mubr.bf16.mxu0 0
      %680 = vmatmul.mubr.bf16.gmra.mrb[0].mxu0 %v468
      %v681 = vpop.f32.mrb[0].mxu0
      %v682 = vadd.f32 %v247, %v681
      %v683 = vpop.f32.mrb[0].mxu0
      %v684 = vpop.f32.mrb[0].mxu0
      %v685 = vadd.f32 %v247, %v684
      %v686 = vpop.f32.mrb[0].mxu0
      %687 = vmatprep.mubr.bf16.mxu0 0
      %688 = vmatmul.mubr.bf16.gmra.mrb[0].mxu0 %v471
      %v689 = vpop.f32.mrb[0].mxu0
      %v690 = vadd.f32 %v247, %v689
      %v691 = vpop.f32.mrb[0].mxu0
      %v692 = vpop.f32.mrb[0].mxu0
      %v693 = vadd.f32 %v247, %v692
      %v694 = vpop.f32.mrb[0].mxu0
      %695 = vmatprep.mubr.bf16.mxu0 0
      %696 = vmatmul.mubr.bf16.gmra.mrb[0].mxu0 %v474
      %v697 = vpop.f32.mrb[0].mxu0
      %v698 = vadd.f32 %v247, %v697
      %v699 = vpop.f32.mrb[0].mxu0
      %v700 = vpop.f32.mrb[0].mxu0
      %v701 = vadd.f32 %v247, %v700
      %v702 = vpop.f32.mrb[0].mxu0
      %703 = vmatprep.mubr.bf16.mxu0 0
      %704 = vmatmul.mubr.bf16.gmra.mrb[0].mxu0 %v477
      %v705 = vpop.f32.mrb[0].mxu0
      %v706 = vadd.f32 %v247, %v705
      %v707 = vpop.f32.mrb[0].mxu0
      %v708 = vpop.f32.mrb[0].mxu0
      %v709 = vadd.f32 %v247, %v708
      %v710 = vpop.f32.mrb[0].mxu0
      %711 = vmatprep.mubr.bf16.mxu0 0
      %712 = vmatmul.mubr.bf16.gmra.mrb[0].mxu0 %v480
      %v713 = vpop.f32.mrb[0].mxu0
      %v714 = vadd.f32 %v247, %v713
      %v715 = vpop.f32.mrb[0].mxu0
      %v716 = vpop.f32.mrb[0].mxu0
      %v717 = vadd.f32 %v247, %v716
      %v718 = vpop.f32.mrb[0].mxu0
      %719 = vmatprep.mubr.bf16.mxu0 0
      %720 = vmatmul.mubr.bf16.gmra.mrb[0].mxu0 %v483
      %v721 = vpop.f32.mrb[0].mxu0
      %v722 = vadd.f32 %v247, %v721
      %v723 = vpop.f32.mrb[0].mxu0
      %v724 = vpop.f32.mrb[0].mxu0
      %v725 = vadd.f32 %v247, %v724
      %v726 = vpop.f32.mrb[0].mxu0
      %727 = vmatprep.mubr.bf16.mxu0 0
      %728 = vmatmul.mubr.bf16.gmra.mrb[0].mxu0 %v486
      %v729 = vpop.f32.mrb[0].mxu0
      %v730 = vadd.f32 %v247, %v729
      %v731 = vpop.f32.mrb[0].mxu0
      %v732 = vpop.f32.mrb[0].mxu0
      %v733 = vadd.f32 %v247, %v732
      %v734 = vpop.f32.mrb[0].mxu0
      %735 = vmatprep.mubr.bf16.mxu0 0
      %736 = vmatmul.mubr.bf16.gmra.mrb[0].mxu0 %v489
      %v737 = vpop.f32.mrb[0].mxu0
      %v738 = vadd.f32 %v247, %v737
      %v739 = vpop.f32.mrb[0].mxu0
      %v740 = vpop.f32.mrb[0].mxu0
      %v741 = vadd.f32 %v247, %v740
      %v742 = vpop.f32.mrb[0].mxu0
      %743 = vmatprep.mubr.bf16.mxu0 0
      %744 = vmatmul.mubr.bf16.gmra.mrb[0].mxu0 %v492
      %v745 = vpop.f32.mrb[0].mxu0
      %v746 = vadd.f32 %v247, %v745
      %v747 = vpop.f32.mrb[0].mxu0
      %v748 = vpop.f32.mrb[0].mxu0
      %v749 = vadd.f32 %v247, %v748
      %v750 = vpop.f32.mrb[0].mxu0
      %751 = vmatprep.mubr.bf16.mxu0 0
      %752 = vmatmul.mubr.bf16.gmra.mrb[0].mxu0 %v495
      %v753 = vpop.f32.mrb[0].mxu0
      %v754 = vadd.f32 %v247, %v753
      %v755 = vpop.f32.mrb[0].mxu0
      %v756 = vpop.f32.mrb[0].mxu0
      %v757 = vadd.f32 %v247, %v756
      %v758 = vpop.f32.mrb[0].mxu0
      %759 = vmatprep.mubr.bf16.mxu0 0
      %760 = vmatmul.mubr.bf16.gmra.mrb[0].mxu0 %v498
      %v761 = vpop.f32.mrb[0].mxu0
      %v762 = vadd.f32 %v247, %v761
      %v763 = vpop.f32.mrb[0].mxu0
      %v764 = vpop.f32.mrb[0].mxu0
      %v765 = vadd.f32 %v247, %v764
      %v766 = vpop.f32.mrb[0].mxu0
      %767 = vmatprep.mubr.bf16.mxu0 0
      %768 = vmatmul.mubr.bf16.gmra.mrb[0].mxu0 %v501
      %v769 = vpop.f32.mrb[0].mxu0
      %v770 = vadd.f32 %v247, %v769
      %v771 = vpop.f32.mrb[0].mxu0
      %v772 = vpop.f32.mrb[0].mxu0
      %v773 = vadd.f32 %v247, %v772
      %v774 = vpop.f32.mrb[0].mxu0
      %775 = vmatprep.mubr.bf16.mxu0 0
      %776 = vmatmul.mubr.bf16.gmra.mrb[0].mxu0 %v504
      %v777 = vpop.f32.mrb[0].mxu0
      %v778 = vadd.f32 %v247, %v777
      %v779 = vpop.f32.mrb[0].mxu0
      %v780 = vpop.f32.mrb[0].mxu0
      %v781 = vadd.f32 %v247, %v780
      %v782 = vpop.f32.mrb[0].mxu0
      %783 = vmatprep.mubr.bf16.mxu0 0
      %784 = vmatmul.mubr.bf16.gmra.mrb[0].mxu0 %v507
      %v785 = vpop.f32.mrb[0].mxu0
      %v786 = vadd.f32 %v247, %v785
      %v787 = vpop.f32.mrb[0].mxu0
      %v788 = vpop.f32.mrb[0].mxu0
      %v789 = vadd.f32 %v247, %v788
      %v790 = vpop.f32.mrb[0].mxu0
      %791 = vmatprep.mubr.bf16.mxu0 0
      %792 = vmatmul.mubr.bf16.gmra.mrb[0].mxu0 %v510
      %v793 = vpop.f32.mrb[0].mxu0
      %v794 = vadd.f32 %v247, %v793
      %v795 = vpop.f32.mrb[0].mxu0
      %v796 = vpop.f32.mrb[0].mxu0
      %v797 = vadd.f32 %v247, %v796
      %v798 = vpop.f32.mrb[0].mxu0
      %799 = vmatprep.mubr.bf16.mxu0 0
      %800 = vmatmul.mubr.bf16.gmra.mrb[0].mxu0 %v513
      %v801 = vpop.f32.mrb[0].mxu0
      %v802 = vadd.f32 %v247, %v801
      %v803 = vpop.f32.mrb[0].mxu0
      %v804 = vpop.f32.mrb[0].mxu0
      %v805 = vadd.f32 %v247, %v804
      %v806 = vpop.f32.mrb[0].mxu0
      %807 = vdwg.mxu0
      %v808 = vmax.f32 %v554, 0.0
      %v809 = vmax.f32 %v557, 0.0
      %v810 = vmax.f32 %v562, 0.0
      %v811 = vmax.f32 %v565, 0.0
      %v812 = vmax.f32 %v570, 0.0
      %v813 = vmax.f32 %v573, 0.0
      %v814 = vmax.f32 %v578, 0.0
      %v815 = vmax.f32 %v581, 0.0
      %v816 = vmax.f32 %v586, 0.0
      %v817 = vmax.f32 %v589, 0.0
      %v818 = vmax.f32 %v594, 0.0
      %v819 = vmax.f32 %v597, 0.0
      %v820 = vmax.f32 %v602, 0.0
      %v821 = vmax.f32 %v605, 0.0
      %v822 = vmax.f32 %v610, 0.0
      %v823 = vmax.f32 %v613, 0.0
      %v824 = vmax.f32 %v618, 0.0
      %v825 = vmax.f32 %v621, 0.0
      %v826 = vmax.f32 %v626, 0.0
      %v827 = vmax.f32 %v629, 0.0
      %v828 = vmax.f32 %v634, 0.0
      %v829 = vmax.f32 %v637, 0.0
      %v830 = vmax.f32 %v642, 0.0
      %v831 = vmax.f32 %v645, 0.0
      %v832 = vmax.f32 %v650, 0.0
      %v833 = vmax.f32 %v653, 0.0
      %v834 = vmax.f32 %v658, 0.0
      %v835 = vmax.f32 %v661, 0.0
      %v836 = vmax.f32 %v666, 0.0
      %v837 = vmax.f32 %v669, 0.0
      %v838 = vmax.f32 %v674, 0.0
      %v839 = vmax.f32 %v677, 0.0
      %v840 = vmax.f32 %v682, 0.0
      %v841 = vmax.f32 %v685, 0.0
      %v842 = vmax.f32 %v690, 0.0
      %v843 = vmax.f32 %v693, 0.0
      %v844 = vmax.f32 %v698, 0.0
      %v845 = vmax.f32 %v701, 0.0
      %v846 = vmax.f32 %v706, 0.0
      %v847 = vmax.f32 %v709, 0.0
      %v848 = vmax.f32 %v714, 0.0
      %v849 = vmax.f32 %v717, 0.0
      %v850 = vmax.f32 %v722, 0.0
      %v851 = vmax.f32 %v725, 0.0
      %v852 = vmax.f32 %v730, 0.0
      %v853 = vmax.f32 %v733, 0.0
      %v854 = vmax.f32 %v738, 0.0
      %v855 = vmax.f32 %v741, 0.0
      %v856 = vmax.f32 %v746, 0.0
      %v857 = vmax.f32 %v749, 0.0
      %v858 = vmax.f32 %v754, 0.0
      %v859 = vmax.f32 %v757, 0.0
      %v860 = vmax.f32 %v762, 0.0
      %v861 = vmax.f32 %v765, 0.0
      %v862 = vmax.f32 %v770, 0.0
      %v863 = vmax.f32 %v773, 0.0
      %v864 = vmax.f32 %v778, 0.0
      %v865 = vmax.f32 %v781, 0.0
      %v866 = vmax.f32 %v786, 0.0
      %v867 = vmax.f32 %v789, 0.0
      %v868 = vmax.f32 %v794, 0.0
      %v869 = vmax.f32 %v797, 0.0
      %v870 = vmax.f32 %v802, 0.0
      %v871 = vmax.f32 %v805, 0.0
      %vm872 = vcmask 15360
      %873 = vst.msk [vmem:[%s172] sm:$0xff] %vm872, %v808
      %874 = vst.msk [vmem:[%s172 + $0x8] sm:$0xff] %vm872, %v809
      %875 = vst.msk [vmem:[%s172 + $0x10] sm:$0xff] %vm872, %v810
      %876 = vst.msk [vmem:[%s172 + $0x18] sm:$0xff] %vm872, %v811
      %877 = vst.msk [vmem:[%s172 + $0x20] sm:$0xff] %vm872, %v812
      %878 = vst.msk [vmem:[%s172 + $0x28] sm:$0xff] %vm872, %v813
      %879 = vst.msk [vmem:[%s172 + $0x30] sm:$0xff] %vm872, %v814
      %880 = vst.msk [vmem:[%s172 + $0x38] sm:$0xff] %vm872, %v815
      %881 = vst.msk [vmem:[%s172 + $0x40] sm:$0xff] %vm872, %v816
      %882 = vst.msk [vmem:[%s172 + $0x48] sm:$0xff] %vm872, %v817
      %883 = vst.msk [vmem:[%s172 + $0x50] sm:$0xff] %vm872, %v818
      %884 = vst.msk [vmem:[%s172 + $0x58] sm:$0xff] %vm872, %v819
      %885 = vst.msk [vmem:[%s172 + $0x60] sm:$0xff] %vm872, %v820
      %886 = vst.msk [vmem:[%s172 + $0x68] sm:$0xff] %vm872, %v821
      %887 = vst.msk [vmem:[%s172 + $0x70] sm:$0xff] %vm872, %v822
      %888 = vst.msk [vmem:[%s172 + $0x78] sm:$0xff] %vm872, %v823
      %889 = vst.msk [vmem:[%s172 + $0x80] sm:$0xff] %vm872, %v824
      %890 = vst.msk [vmem:[%s172 + $0x88] sm:$0xff] %vm872, %v825
      %891 = vst.msk [vmem:[%s172 + $0x90] sm:$0xff] %vm872, %v826
      %892 = vst.msk [vmem:[%s172 + $0x98] sm:$0xff] %vm872, %v827
      %893 = vst.msk [vmem:[%s172 + $0xa0] sm:$0xff] %vm872, %v828
      %894 = vst.msk [vmem:[%s172 + $0xa8] sm:$0xff] %vm872, %v829
      %895 = vst.msk [vmem:[%s172 + $0xb0] sm:$0xff] %vm872, %v830
      %896 = vst.msk [vmem:[%s172 + $0xb8] sm:$0xff] %vm872, %v831
      %897 = vst.msk [vmem:[%s172 + $0xc0] sm:$0xff] %vm872, %v832
      %898 = vst.msk [vmem:[%s172 + $0xc8] sm:$0xff] %vm872, %v833
      %899 = vst.msk [vmem:[%s172 + $0xd0] sm:$0xff] %vm872, %v834
      %900 = vst.msk [vmem:[%s172 + $0xd8] sm:$0xff] %vm872, %v835
      %901 = vst.msk [vmem:[%s172 + $0xe0] sm:$0xff] %vm872, %v836
      %902 = vst.msk [vmem:[%s172 + $0xe8] sm:$0xff] %vm872, %v837
      %903 = vst.msk [vmem:[%s172 + $0xf0] sm:$0xff] %vm872, %v838
      %904 = vst.msk [vmem:[%s172 + $0xf8] sm:$0xff] %vm872, %v839
      %905 = vst.msk [vmem:[%s172 + $0x100] sm:$0xff] %vm872, %v840
      %906 = vst.msk [vmem:[%s172 + $0x108] sm:$0xff] %vm872, %v841
      %907 = vst.msk [vmem:[%s172 + $0x110] sm:$0xff] %vm872, %v842
      %908 = vst.msk [vmem:[%s172 + $0x118] sm:$0xff] %vm872, %v843
      %909 = vst.msk [vmem:[%s172 + $0x120] sm:$0xff] %vm872, %v844
      %910 = vst.msk [vmem:[%s172 + $0x128] sm:$0xff] %vm872, %v845
      %911 = vst.msk [vmem:[%s172 + $0x130] sm:$0xff] %vm872, %v846
      %912 = vst.msk [vmem:[%s172 + $0x138] sm:$0xff] %vm872, %v847
      %913 = vst.msk [vmem:[%s172 + $0x140] sm:$0xff] %vm872, %v848
      %914 = vst.msk [vmem:[%s172 + $0x148] sm:$0xff] %vm872, %v849
      %915 = vst.msk [vmem:[%s172 + $0x150] sm:$0xff] %vm872, %v850
      %916 = vst.msk [vmem:[%s172 + $0x158] sm:$0xff] %vm872, %v851
      %917 = vst.msk [vmem:[%s172 + $0x160] sm:$0xff] %vm872, %v852
      %918 = vst.msk [vmem:[%s172 + $0x168] sm:$0xff] %vm872, %v853
      %919 = vst.msk [vmem:[%s172 + $0x170] sm:$0xff] %vm872, %v854
      %920 = vst.msk [vmem:[%s172 + $0x178] sm:$0xff] %vm872, %v855
      %921 = vst.msk [vmem:[%s172 + $0x180] sm:$0xff] %vm872, %v856
      %922 = vst.msk [vmem:[%s172 + $0x188] sm:$0xff] %vm872, %v857
      %923 = vst.msk [vmem:[%s172 + $0x190] sm:$0xff] %vm872, %v858
      %924 = vst.msk [vmem:[%s172 + $0x198] sm:$0xff] %vm872, %v859
      %925 = vst.msk [vmem:[%s172 + $0x1a0] sm:$0xff] %vm872, %v860
      %926 = vst.msk [vmem:[%s172 + $0x1a8] sm:$0xff] %vm872, %v861
      %927 = vst.msk [vmem:[%s172 + $0x1b0] sm:$0xff] %vm872, %v862
      %928 = vst.msk [vmem:[%s172 + $0x1b8] sm:$0xff] %vm872, %v863
      %929 = vst.msk [vmem:[%s172 + $0x1c0] sm:$0xff] %vm872, %v864
      %930 = vst.msk [vmem:[%s172 + $0x1c8] sm:$0xff] %vm872, %v865
      %931 = vst.msk [vmem:[%s172 + $0x1d0] sm:$0xff] %vm872, %v866
      %932 = vst.msk [vmem:[%s172 + $0x1d8] sm:$0xff] %vm872, %v867
      %933 = vst.msk [vmem:[%s172 + $0x1e0] sm:$0xff] %vm872, %v868
      %934 = vst.msk [vmem:[%s172 + $0x1e8] sm:$0xff] %vm872, %v869
      %935 = vst.msk [vmem:[%s172 + $0x1f0] sm:$0xff] %vm872, %v870
      %936 = vst.msk [vmem:[%s172 + $0x1f8] sm:$0xff] %vm872, %v871
      %s937 = smul.u32 64, %s14
      %p938 = scmp.lt.s32.totalorder %s937, 127
      %s939 = scalar_select %p938, %s937, 127
      %s940 = smul.addr %s939, 8
      %s941 = scalar_lea.vmem %s3, %s940
      // Predicated region
      $region33: #{decoder_forward.11} parent=31 // pred_check
        %p942 = pneg %p100
      $region34: #{decoder_forward.11} parent=31 // pred_check_branch
        %944 = sbr.rel (%p942) target = $region36
      $region35: #{decoder_forward.11} parent=31 // pred_region
        %s945 = smul.u32 64, %s14
      $region36: #{decoder_forward.11} parent=31 // pred_fallthru
        _
    $region32: #{decoder_forward.11} parent=5 // pred_fallthru
      _
    %p946 = scmp.le.s32.totalorder 2, %s9
    // Predicated region
    $region37: #{decoder_forward.11} parent=5 // pred_check
      %p947 = pneg %p946
    $region38: #{decoder_forward.11} parent=5 // pred_check_branch
      %949 = sbr.rel (%p947) target = $region40
    $region39: #{decoder_forward.11} parent=5 // pred_region
      %s950 = ssub.s32 %s9, 2
      // Predicated region
      $region41: #{decoder_forward.11} parent=39 // pred_check
        %p951 = pneg %p106
      $region42: #{decoder_forward.11} parent=39 // pred_check_branch
        %953 = sbr.rel (%p951) target = $region44
      $region43: #{decoder_forward.11} parent=39 // pred_region
        %s954 = smul.u32 64, %s15
        %p955 = scmp.lt.s32.totalorder %s954, 127
        %s956 = scalar_select %p955, %s954, 127
        %s957 = smul.addr %s956, 8
        %s958 = scalar_lea.vmem %s3, %s957
      $region44: #{decoder_forward.11} parent=39 // pred_fallthru
        _
    $region40: #{decoder_forward.11} parent=5 // pred_fallthru
      _
  $region6: #{decoder_forward.11} parent=0 // loop_footer
    %s13 = sadd.s32 1, %s9
  $region7: #{decoder_forward.11} parent=0 // loop_footer_branch
    %8 = sbr.rel target = $region3
  $region8: #{decoder_forward.11} parent=0 // loop_exit
    _

</llo_original>
